<compile_context>
chip_gen: v6e
topology: v6e:2x2x1
jax: 0.10.0
libtpu: 0.0.40
codegen_flags: <defaults>
</compile_context>

<pallas_src>
import functools

import jax
import jax.numpy as jnp
from jax.experimental import pallas as pl
from jax.experimental.pallas import tpu as pltpu


# ----------------------------------------------------------------------------
# Fused kernel: QKV projection + multi-head attention + output projection
# ----------------------------------------------------------------------------
def _attn_fused_kernel(x_ref, wqkv_ref, wproj_ref, bias_ref, o_ref,
                       qkv_ref, attn_ref, *, num_heads):
    # x_ref:     (Bb, N, C)   bf16 tokens of the current batch block
    # wqkv_ref:  (C, 3C)      bf16 pre-transposed fused qkv weight (scale in q)
    # wproj_ref: (C, C)       bf16 pre-transposed output-projection weight
    # bias_ref:  (1, C)       f32 output-projection bias
    # o_ref:     (Bb, N, C)   output block (f32)
    # qkv_ref:   (Bb*N, 3C)   f32 VMEM scratch for the fused qkv result
    # attn_ref:  (Bb*N, C)    f32 VMEM scratch for the concatenated head outputs
    Bb, N, C = x_ref.shape
    H = num_heads
    hd = C // H
    R = Bb * N

    # One wide MXU matmul produces q, k, v for all heads / all rows at once.
    xb = x_ref[...].reshape(R, C)                                     # layout-preserving merge
    qkv_ref[...] = jnp.dot(xb, wqkv_ref[...],
                           preferred_element_type=jnp.float32)        # (R, 3C) f32

    for b in range(Bb):                      # static, unrolled loops
        r0 = b * N
        for h in range(H):
            c0 = h * hd
            # Ref slices (static) -> plain vector loads, no value-slice relayouts.
            qh = qkv_ref[r0:r0 + N, c0:c0 + hd]                        # (N, hd), scale pre-folded
            kh = qkv_ref[r0:r0 + N, C + c0:C + c0 + hd]                # (N, hd)
            vh = qkv_ref[r0:r0 + N, 2 * C + c0:2 * C + c0 + hd]        # (N, hd)

            # q @ k^T without an in-kernel transpose (contract last dim of both).
            s = jnp.einsum("qd,kd->qk",
                           qh.astype(jnp.bfloat16), kh.astype(jnp.bfloat16),
                           preferred_element_type=jnp.float32)         # (N, N) f32
            s = s - jnp.max(s, axis=-1, keepdims=True)
            p = jnp.exp(s)                                             # unnormalized, in (0, 1]
            denom = jnp.sum(p, axis=-1, keepdims=True)
            # EUP approximate reciprocal + one Newton step (~f32 accuracy, VPU-free divide).
            r = pl.reciprocal(denom, approx=True)
            r = r * (2.0 - denom * r)

            o_h = jnp.dot(p.astype(jnp.bfloat16), vh.astype(jnp.bfloat16),
                          preferred_element_type=jnp.float32)          # (N, hd)
            # Normalize the (N, hd) output instead of the (N, N) score matrix,
            # and write straight into the lane-dense (R, C) scratch slab.
            attn_ref[r0:r0 + N, c0:c0 + hd] = o_h * r

    # Fused output projection epilogue — written straight to the output block.
    y = jnp.dot(attn_ref[...].astype(jnp.bfloat16), wproj_ref[...],
                preferred_element_type=jnp.float32)                    # (R, C)
    o_ref[...] = (y + bias_ref[...]).astype(o_ref.dtype).reshape(Bb, N, C)


# ----------------------------------------------------------------------------
# Wrapper helpers
# ----------------------------------------------------------------------------
def _pick_batch_block(B, N, target_rows=256):
    """Largest divisor of B with Bb * N <= target_rows (packs sublanes / MXU M,
    and removes grid-step overhead at tiny shapes)."""
    bb = 1
    for cand in range(1, B + 1):
        if B % cand == 0 and cand * N <= target_rows:
            bb = cand
    return bb


def _vmem_limit_bytes(Bb, N, C):
    rows = Bb * N
    bf, f4 = 2, 4
    xblk = rows * C * bf                       # bf16 input block
    oblk = rows * C * f4                       # f32 output block
    wts = (3 * C * C + C * C) * bf + C * f4    # resident weights + bias
    scratch = rows * 3 * C * f4 + rows * C * f4
    score = N * N * f4
    est = int((2 * (xblk + oblk) + 2 * wts + scratch + 2 * score) * 1.5)
    # Raise above the 16/32 MiB default scoped limit, stay under v7x's 64 MiB physical.
    return max(32 * 1024 * 1024, min(est, 64 * 1024 * 1024))


def prepare_attention_params(w_qkv, w_proj, b_proj, num_heads,
                             compute_dtype=jnp.bfloat16):
    """One-time weight prep (hoisted out of the per-forward-call path):
    transpose to x @ W layout, fold the softmax scale into the q columns,
    cast to the bf16 MXU compute dtype."""
    C = w_proj.shape[0]
    hd = C // num_heads
    scale = hd ** (-0.5)
    wqkv_t = jnp.transpose(w_qkv).astype(jnp.float32)            # (C, 3C)
    wqkv_t = wqkv_t.at[:, :C].multiply(scale)                    # fold scale into q cols
    wqkv_t = wqkv_t.astype(compute_dtype)
    wproj_t = jnp.transpose(w_proj).astype(compute_dtype)        # (C, C)
    bias2d = b_proj.reshape(1, C).astype(jnp.float32)            # added post-accum in f32
    return wqkv_t, wproj_t, bias2d


def attention_forward(x, params, num_heads):
    """Pallas implementation of Attention.forward.

    x:      (B, N, C) float32
    params: output of prepare_attention_params
    """
    wqkv_t, wproj_t, bias2d = params
    B, N, C = x.shape
    Bb = _pick_batch_block(B, N)
    grid = (B // Bb,)
    x_in = x.astype(wqkv_t.dtype)          # halve HBM DMA bytes for the activations
    vmem_limit = _vmem_limit_bytes(Bb, N, C)

    def call(single_buffer_weights):
        wkw = {}
        if single_buffer_weights and hasattr(pl, "Buffered"):
            # Constant index_map -> weights stay resident; a single VMEM buffer
            # (no double buffering) halves their footprint.
            wkw = dict(pipeline_mode=pl.Buffered(1))
        return pl.pallas_call(
            functools.partial(_attn_fused_kernel, num_heads=num_heads),
            out_shape=jax.ShapeDtypeStruct((B, N, C), x.dtype),
            grid=grid,
            in_specs=[
                pl.BlockSpec((Bb, N, C), lambda g: (g, 0, 0)),
                pl.BlockSpec((C, 3 * C), lambda g: (0, 0), **wkw),
                pl.BlockSpec((C, C), lambda g: (0, 0), **wkw),
                pl.BlockSpec((1, C), lambda g: (0, 0), **wkw),
            ],
            out_specs=pl.BlockSpec((Bb, N, C), lambda g: (g, 0, 0)),
            scratch_shapes=[
                pltpu.VMEM((Bb * N, 3 * C), jnp.float32),   # fused qkv result
                pltpu.VMEM((Bb * N, C), jnp.float32),       # concatenated head outputs
            ],
            compiler_params=pltpu.CompilerParams(
                dimension_semantics=("parallel",),
                vmem_limit_bytes=vmem_limit),
        )(x_in, wqkv_t, wproj_t, bias2d)

    try:
        return call(True)
    except Exception:
        # pipeline_mode / Buffered(1) not supported by this jax version:
        # fall back to default (double-buffered) weight specs.
        return call(False)


# ----------------------------------------------------------------------------
# Pure-JAX reference (for correctness check)
# ----------------------------------------------------------------------------
def attention_ref(x, w_qkv, w_proj, b_proj, num_heads):
    B, N, C = x.shape
    H = num_heads
    hd = C // H
    scale = hd ** (-0.5)
    qkv = jnp.einsum("bnc,oc->bno", x, w_qkv)               # (B, N, 3C)
    qkv = qkv.reshape(B, N, 3, H, hd).transpose(2, 0, 3, 1, 4)
    q, k, v = qkv[0], qkv[1], qkv[2]                        # (B, H, N, hd)
    attn = jnp.einsum("bhqd,bhkd->bhqk", q, k) * scale
    attn = jax.nn.softmax(attn, axis=-1)
    out = jnp.einsum("bhqk,bhkd->bhqd", attn, v)            # (B, H, N, hd)
    out = out.transpose(0, 2, 1, 3).reshape(B, N, C)
    return jnp.einsum("bnc,oc->bno", out, w_proj) + b_proj


if __name__ == "__main__":
    B, N, C, H = 2, 8, 32, 8   # head_dim = 4

    key = jax.random.PRNGKey(0)
    kx, kw1, kw2, kb = jax.random.split(key, 4)

    x = jax.random.normal(kx, (B, N, C), dtype=jnp.float32)
    # Deterministic parameter init (uniform, roughly like torch Linear default scale).
    w_qkv = jax.random.uniform(kw1, (3 * C, C), jnp.float32, -1.0, 1.0) / jnp.sqrt(C)
    w_proj = jax.random.uniform(kw2, (C, C), jnp.float32, -1.0, 1.0) / jnp.sqrt(C)
    b_proj = jax.random.uniform(kb, (C,), jnp.float32, -1.0, 1.0) / jnp.sqrt(C)

    params = prepare_attention_params(w_qkv, w_proj, b_proj, num_heads=H)
    out = attention_forward(x, params, num_heads=H)
    out = jax.block_until_ready(out)

    ref = attention_ref(x, w_qkv, w_proj, b_proj, num_heads=H)
    assert out.shape == (B, N, C)
    # bf16 MXU operands (f32 accumulation) -> compare against the f32 reference
    # with a correspondingly looser tolerance.
    assert jnp.allclose(out, ref, atol=3e-2, rtol=3e-2), "mismatch vs reference"

    print("KERNEL_OK")
</pallas_src>

<mosaic_0001>
module attributes {stable_mosaic.version = 11 : i64} {
  func.func @_attn_fused_kernel(%arg0: i32, %arg1: memref<2x8x32xbf16, #tpu.memory_space<vmem>>, %arg2: memref<32x96xbf16, #tpu.memory_space<vmem>>, %arg3: memref<32x32xbf16, #tpu.memory_space<vmem>>, %arg4: memref<1x32xf32, #tpu.memory_space<vmem>>, %arg5: memref<2x8x32xf32, #tpu.memory_space<vmem>>, %arg6: memref<16x96xf32, #tpu.memory_space<vmem>>, %arg7: memref<16x32xf32, #tpu.memory_space<vmem>>) attributes {dimension_semantics = [#tpu.dimension_semantics<parallel>], iteration_bounds = array<i64: 1>, scalar_prefetch = 0 : i64, scratch_operands = 2 : i64, tpu.core_type = #tpu.core_type<tc>, window_params = [{transform_indices = @transform_0, window_bounds = array<i64: 2, 8, 32>}, {pipeline_mode = #tpu.pipeline_mode<synchronous>, transform_indices = @transform_1, window_bounds = array<i64: 32, 96>}, {pipeline_mode = #tpu.pipeline_mode<synchronous>, transform_indices = @transform_2, window_bounds = array<i64: 32, 32>}, {pipeline_mode = #tpu.pipeline_mode<synchronous>, transform_indices = @transform_3, window_bounds = array<i64: 1, 32>}, {transform_indices = @transform_4, window_bounds = array<i64: 2, 8, 32>}]} {
    %c0 = arith.constant 0 : index
    %c0_0 = arith.constant 0 : index
    %c0_1 = arith.constant 0 : index
    %0 = vector.load %arg1[%c0, %c0_0, %c0_1] : memref<2x8x32xbf16, #tpu.memory_space<vmem>>, vector<2x8x32xbf16>
    %1 = vector.shape_cast %0 : vector<2x8x32xbf16> to vector<16x32xbf16>
    %c0_2 = arith.constant 0 : index
    %c0_3 = arith.constant 0 : index
    %2 = vector.load %arg2[%c0_2, %c0_3] : memref<32x96xbf16, #tpu.memory_space<vmem>>, vector<32x96xbf16>
    %cst = arith.constant dense<0.000000e+00> : vector<16x96xf32>
    %3 = tpu.matmul %1, %2, %cst {dimension_numbers = #tpu.dot_dimension_numbers<[1], [0], [0], [1], [0, 0, 1, 1], [], []>} : vector<16x32xbf16>, vector<32x96xbf16>, vector<16x96xf32> -> vector<16x96xf32>
    %c0_4 = arith.constant 0 : index
    %c0_5 = arith.constant 0 : index
    %4 = vector.load %arg6[%c0_4, %c0_5] : memref<16x96xf32, #tpu.memory_space<vmem>>, vector<16x96xf32>
    tpu.vector_store %arg6[%c0_4, %c0_5], %3 {strides = array<i32>} : memref<16x96xf32, #tpu.memory_space<vmem>>, vector<16x96xf32>,
    %c0_6 = arith.constant 0 : index
    %c0_7 = arith.constant 0 : index
    %5 = vector.load %arg6[%c0_6, %c0_7] : memref<16x96xf32, #tpu.memory_space<vmem>>, vector<8x4xf32>
    %c0_8 = arith.constant 0 : index
    %c32 = arith.constant 32 : index
    %6 = vector.load %arg6[%c0_8, %c32] : memref<16x96xf32, #tpu.memory_space<vmem>>, vector<8x4xf32>
    %c0_9 = arith.constant 0 : index
    %c64 = arith.constant 64 : index
    %7 = vector.load %arg6[%c0_9, %c64] : memref<16x96xf32, #tpu.memory_space<vmem>>, vector<8x4xf32>
    %8 = arith.truncf %5 : vector<8x4xf32> to vector<8x4xbf16>
    %9 = arith.truncf %6 : vector<8x4xf32> to vector<8x4xbf16>
    "tpu.trace_start"() <{level = 10 : i32, message = "qd,kd->qk"}> : () -> ()
    %cst_10 = arith.constant dense<0.000000e+00> : vector<8x8xf32>
    %10 = tpu.matmul %8, %9, %cst_10 {dimension_numbers = #tpu.dot_dimension_numbers<[1], [1], [0], [0], [0, 0, 1, 0], [], []>} : vector<8x4xbf16>, vector<8x4xbf16>, vector<8x8xf32> -> vector<8x8xf32>
    "tpu.trace_stop"() : () -> ()
    %cst_11 = arith.constant dense<0xFF800000> : vector<8xf32>
    %11 = vector.multi_reduction <maximumf>, %10, %cst_11 [1] : vector<8x8xf32> to vector<8xf32>
    %12 = vector.shape_cast %11 : vector<8xf32> to vector<8x1xf32>
    %13 = vector.broadcast %12 : vector<8x1xf32> to vector<8x8xf32>
    %14 = arith.subf %10, %13 : vector<8x8xf32>
    %15 = math.exp %14 : vector<8x8xf32>
    %cst_12 = arith.constant dense<0.000000e+00> : vector<8xf32>
    %16 = vector.multi_reduction <add>, %15, %cst_12 [1] : vector<8x8xf32> to vector<8xf32>
    %17 = vector.shape_cast %16 : vector<8xf32> to vector<8x1xf32>
    %18 = tpu.reciprocal %17 {approx = true} : vector<8x1xf32> -> vector<8x1xf32>
    %19 = arith.mulf %17, %18 : vector<8x1xf32>
    %cst_13 = arith.constant 2.000000e+00 : f32
    %20 = vector.broadcast %cst_13 : f32 to vector<8x1xf32>
    %21 = arith.subf %20, %19 : vector<8x1xf32>
    %22 = arith.mulf %18, %21 : vector<8x1xf32>
    %23 = arith.truncf %15 : vector<8x8xf32> to vector<8x8xbf16>
    %24 = arith.truncf %7 : vector<8x4xf32> to vector<8x4xbf16>
    %cst_14 = arith.constant dense<0.000000e+00> : vector<8x4xf32>
    %25 = tpu.matmul %23, %24, %cst_14 {dimension_numbers = #tpu.dot_dimension_numbers<[1], [0], [0], [1], [0, 0, 1, 1], [], []>} : vector<8x8xbf16>, vector<8x4xbf16>, vector<8x4xf32> -> vector<8x4xf32>
    %26 = vector.broadcast %22 : vector<8x1xf32> to vector<8x4xf32>
    %27 = arith.mulf %25, %26 : vector<8x4xf32>
    %c0_15 = arith.constant 0 : index
    %c0_16 = arith.constant 0 : index
    %28 = vector.load %arg7[%c0_15, %c0_16] : memref<16x32xf32, #tpu.memory_space<vmem>>, vector<8x4xf32>
    tpu.vector_store %arg7[%c0_15, %c0_16], %27 {strides = array<i32>} : memref<16x32xf32, #tpu.memory_space<vmem>>, vector<8x4xf32>,
    %c0_17 = arith.constant 0 : index
    %c4 = arith.constant 4 : index
    %29 = vector.load %arg6[%c0_17, %c4] : memref<16x96xf32, #tpu.memory_space<vmem>>, vector<8x4xf32>
    %c0_18 = arith.constant 0 : index
    %c36 = arith.constant 36 : index
    %30 = vector.load %arg6[%c0_18, %c36] : memref<16x96xf32, #tpu.memory_space<vmem>>, vector<8x4xf32>
    %c0_19 = arith.constant 0 : index
    %c68 = arith.constant 68 : index
    %31 = vector.load %arg6[%c0_19, %c68] : memref<16x96xf32, #tpu.memory_space<vmem>>, vector<8x4xf32>
    %32 = arith.truncf %29 : vector<8x4xf32> to vector<8x4xbf16>
    %33 = arith.truncf %30 : vector<8x4xf32> to vector<8x4xbf16>
    "tpu.trace_start"() <{level = 10 : i32, message = "qd,kd->qk"}> : () -> ()
    %cst_20 = arith.constant dense<0.000000e+00> : vector<8x8xf32>
    %34 = tpu.matmul %32, %33, %cst_20 {dimension_numbers = #tpu.dot_dimension_numbers<[1], [1], [0], [0], [0, 0, 1, 0], [], []>} : vector<8x4xbf16>, vector<8x4xbf16>, vector<8x8xf32> -> vector<8x8xf32>
    "tpu.trace_stop"() : () -> ()
    %cst_21 = arith.constant dense<0xFF800000> : vector<8xf32>
    %35 = vector.multi_reduction <maximumf>, %34, %cst_21 [1] : vector<8x8xf32> to vector<8xf32>
    %36 = vector.shape_cast %35 : vector<8xf32> to vector<8x1xf32>
    %37 = vector.broadcast %36 : vector<8x1xf32> to vector<8x8xf32>
    %38 = arith.subf %34, %37 : vector<8x8xf32>
    %39 = math.exp %38 : vector<8x8xf32>
    %cst_22 = arith.constant dense<0.000000e+00> : vector<8xf32>
    %40 = vector.multi_reduction <add>, %39, %cst_22 [1] : vector<8x8xf32> to vector<8xf32>
    %41 = vector.shape_cast %40 : vector<8xf32> to vector<8x1xf32>
    %42 = tpu.reciprocal %41 {approx = true} : vector<8x1xf32> -> vector<8x1xf32>
    %43 = arith.mulf %41, %42 : vector<8x1xf32>
    %cst_23 = arith.constant 2.000000e+00 : f32
    %44 = vector.broadcast %cst_23 : f32 to vector<8x1xf32>
    %45 = arith.subf %44, %43 : vector<8x1xf32>
    %46 = arith.mulf %42, %45 : vector<8x1xf32>
    %47 = arith.truncf %39 : vector<8x8xf32> to vector<8x8xbf16>
    %48 = arith.truncf %31 : vector<8x4xf32> to vector<8x4xbf16>
    %cst_24 = arith.constant dense<0.000000e+00> : vector<8x4xf32>
    %49 = tpu.matmul %47, %48, %cst_24 {dimension_numbers = #tpu.dot_dimension_numbers<[1], [0], [0], [1], [0, 0, 1, 1], [], []>} : vector<8x8xbf16>, vector<8x4xbf16>, vector<8x4xf32> -> vector<8x4xf32>
    %50 = vector.broadcast %46 : vector<8x1xf32> to vector<8x4xf32>
    %51 = arith.mulf %49, %50 : vector<8x4xf32>
    %c0_25 = arith.constant 0 : index
    %c4_26 = arith.constant 4 : index
    %52 = vector.load %arg7[%c0_25, %c4_26] : memref<16x32xf32, #tpu.memory_space<vmem>>, vector<8x4xf32>
    tpu.vector_store %arg7[%c0_25, %c4_26], %51 {strides = array<i32>} : memref<16x32xf32, #tpu.memory_space<vmem>>, vector<8x4xf32>,
    %c0_27 = arith.constant 0 : index
    %c8 = arith.constant 8 : index
    %53 = vector.load %arg6[%c0_27, %c8] : memref<16x96xf32, #tpu.memory_space<vmem>>, vector<8x4xf32>
    %c0_28 = arith.constant 0 : index
    %c40 = arith.constant 40 : index
    %54 = vector.load %arg6[%c0_28, %c40] : memref<16x96xf32, #tpu.memory_space<vmem>>, vector<8x4xf32>
    %c0_29 = arith.constant 0 : index
    %c72 = arith.constant 72 : index
    %55 = vector.load %arg6[%c0_29, %c72] : memref<16x96xf32, #tpu.memory_space<vmem>>, vector<8x4xf32>
    %56 = arith.truncf %53 : vector<8x4xf32> to vector<8x4xbf16>
    %57 = arith.truncf %54 : vector<8x4xf32> to vector<8x4xbf16>
    "tpu.trace_start"() <{level = 10 : i32, message = "qd,kd->qk"}> : () -> ()
    %cst_30 = arith.constant dense<0.000000e+00> : vector<8x8xf32>
    %58 = tpu.matmul %56, %57, %cst_30 {dimension_numbers = #tpu.dot_dimension_numbers<[1], [1], [0], [0], [0, 0, 1, 0], [], []>} : vector<8x4xbf16>, vector<8x4xbf16>, vector<8x8xf32> -> vector<8x8xf32>
    "tpu.trace_stop"() : () -> ()
    %cst_31 = arith.constant dense<0xFF800000> : vector<8xf32>
    %59 = vector.multi_reduction <maximumf>, %58, %cst_31 [1] : vector<8x8xf32> to vector<8xf32>
    %60 = vector.shape_cast %59 : vector<8xf32> to vector<8x1xf32>
    %61 = vector.broadcast %60 : vector<8x1xf32> to vector<8x8xf32>
    %62 = arith.subf %58, %61 : vector<8x8xf32>
    %63 = math.exp %62 : vector<8x8xf32>
    %cst_32 = arith.constant dense<0.000000e+00> : vector<8xf32>
    %64 = vector.multi_reduction <add>, %63, %cst_32 [1] : vector<8x8xf32> to vector<8xf32>
    %65 = vector.shape_cast %64 : vector<8xf32> to vector<8x1xf32>
    %66 = tpu.reciprocal %65 {approx = true} : vector<8x1xf32> -> vector<8x1xf32>
    %67 = arith.mulf %65, %66 : vector<8x1xf32>
    %cst_33 = arith.constant 2.000000e+00 : f32
    %68 = vector.broadcast %cst_33 : f32 to vector<8x1xf32>
    %69 = arith.subf %68, %67 : vector<8x1xf32>
    %70 = arith.mulf %66, %69 : vector<8x1xf32>
    %71 = arith.truncf %63 : vector<8x8xf32> to vector<8x8xbf16>
    %72 = arith.truncf %55 : vector<8x4xf32> to vector<8x4xbf16>
    %cst_34 = arith.constant dense<0.000000e+00> : vector<8x4xf32>
    %73 = tpu.matmul %71, %72, %cst_34 {dimension_numbers = #tpu.dot_dimension_numbers<[1], [0], [0], [1], [0, 0, 1, 1], [], []>} : vector<8x8xbf16>, vector<8x4xbf16>, vector<8x4xf32> -> vector<8x4xf32>
    %74 = vector.broadcast %70 : vector<8x1xf32> to vector<8x4xf32>
    %75 = arith.mulf %73, %74 : vector<8x4xf32>
    %c0_35 = arith.constant 0 : index
    %c8_36 = arith.constant 8 : index
    %76 = vector.load %arg7[%c0_35, %c8_36] : memref<16x32xf32, #tpu.memory_space<vmem>>, vector<8x4xf32>
    tpu.vector_store %arg7[%c0_35, %c8_36], %75 {strides = array<i32>} : memref<16x32xf32, #tpu.memory_space<vmem>>, vector<8x4xf32>,
    %c0_37 = arith.constant 0 : index
    %c12 = arith.constant 12 : index
    %77 = vector.load %arg6[%c0_37, %c12] : memref<16x96xf32, #tpu.memory_space<vmem>>, vector<8x4xf32>
    %c0_38 = arith.constant 0 : index
    %c44 = arith.constant 44 : index
    %78 = vector.load %arg6[%c0_38, %c44] : memref<16x96xf32, #tpu.memory_space<vmem>>, vector<8x4xf32>
    %c0_39 = arith.constant 0 : index
    %c76 = arith.constant 76 : index
    %79 = vector.load %arg6[%c0_39, %c76] : memref<16x96xf32, #tpu.memory_space<vmem>>, vector<8x4xf32>
    %80 = arith.truncf %77 : vector<8x4xf32> to vector<8x4xbf16>
    %81 = arith.truncf %78 : vector<8x4xf32> to vector<8x4xbf16>
    "tpu.trace_start"() <{level = 10 : i32, message = "qd,kd->qk"}> : () -> ()
    %cst_40 = arith.constant dense<0.000000e+00> : vector<8x8xf32>
    %82 = tpu.matmul %80, %81, %cst_40 {dimension_numbers = #tpu.dot_dimension_numbers<[1], [1], [0], [0], [0, 0, 1, 0], [], []>} : vector<8x4xbf16>, vector<8x4xbf16>, vector<8x8xf32> -> vector<8x8xf32>
    "tpu.trace_stop"() : () -> ()
    %cst_41 = arith.constant dense<0xFF800000> : vector<8xf32>
    %83 = vector.multi_reduction <maximumf>, %82, %cst_41 [1] : vector<8x8xf32> to vector<8xf32>
    %84 = vector.shape_cast %83 : vector<8xf32> to vector<8x1xf32>
    %85 = vector.broadcast %84 : vector<8x1xf32> to vector<8x8xf32>
    %86 = arith.subf %82, %85 : vector<8x8xf32>
    %87 = math.exp %86 : vector<8x8xf32>
    %cst_42 = arith.constant dense<0.000000e+00> : vector<8xf32>
    %88 = vector.multi_reduction <add>, %87, %cst_42 [1] : vector<8x8xf32> to vector<8xf32>
    %89 = vector.shape_cast %88 : vector<8xf32> to vector<8x1xf32>
    %90 = tpu.reciprocal %89 {approx = true} : vector<8x1xf32> -> vector<8x1xf32>
    %91 = arith.mulf %89, %90 : vector<8x1xf32>
    %cst_43 = arith.constant 2.000000e+00 : f32
    %92 = vector.broadcast %cst_43 : f32 to vector<8x1xf32>
    %93 = arith.subf %92, %91 : vector<8x1xf32>
    %94 = arith.mulf %90, %93 : vector<8x1xf32>
    %95 = arith.truncf %87 : vector<8x8xf32> to vector<8x8xbf16>
    %96 = arith.truncf %79 : vector<8x4xf32> to vector<8x4xbf16>
    %cst_44 = arith.constant dense<0.000000e+00> : vector<8x4xf32>
    %97 = tpu.matmul %95, %96, %cst_44 {dimension_numbers = #tpu.dot_dimension_numbers<[1], [0], [0], [1], [0, 0, 1, 1], [], []>} : vector<8x8xbf16>, vector<8x4xbf16>, vector<8x4xf32> -> vector<8x4xf32>
    %98 = vector.broadcast %94 : vector<8x1xf32> to vector<8x4xf32>
    %99 = arith.mulf %97, %98 : vector<8x4xf32>
    %c0_45 = arith.constant 0 : index
    %c12_46 = arith.constant 12 : index
    %100 = vector.load %arg7[%c0_45, %c12_46] : memref<16x32xf32, #tpu.memory_space<vmem>>, vector<8x4xf32>
    tpu.vector_store %arg7[%c0_45, %c12_46], %99 {strides = array<i32>} : memref<16x32xf32, #tpu.memory_space<vmem>>, vector<8x4xf32>,
    %c0_47 = arith.constant 0 : index
    %c16 = arith.constant 16 : index
    %101 = vector.load %arg6[%c0_47, %c16] : memref<16x96xf32, #tpu.memory_space<vmem>>, vector<8x4xf32>
    %c0_48 = arith.constant 0 : index
    %c48 = arith.constant 48 : index
    %102 = vector.load %arg6[%c0_48, %c48] : memref<16x96xf32, #tpu.memory_space<vmem>>, vector<8x4xf32>
    %c0_49 = arith.constant 0 : index
    %c80 = arith.constant 80 : index
    %103 = vector.load %arg6[%c0_49, %c80] : memref<16x96xf32, #tpu.memory_space<vmem>>, vector<8x4xf32>
    %104 = arith.truncf %101 : vector<8x4xf32> to vector<8x4xbf16>
    %105 = arith.truncf %102 : vector<8x4xf32> to vector<8x4xbf16>
    "tpu.trace_start"() <{level = 10 : i32, message = "qd,kd->qk"}> : () -> ()
    %cst_50 = arith.constant dense<0.000000e+00> : vector<8x8xf32>
    %106 = tpu.matmul %104, %105, %cst_50 {dimension_numbers = #tpu.dot_dimension_numbers<[1], [1], [0], [0], [0, 0, 1, 0], [], []>} : vector<8x4xbf16>, vector<8x4xbf16>, vector<8x8xf32> -> vector<8x8xf32>
    "tpu.trace_stop"() : () -> ()
    %cst_51 = arith.constant dense<0xFF800000> : vector<8xf32>
    %107 = vector.multi_reduction <maximumf>, %106, %cst_51 [1] : vector<8x8xf32> to vector<8xf32>
    %108 = vector.shape_cast %107 : vector<8xf32> to vector<8x1xf32>
    %109 = vector.broadcast %108 : vector<8x1xf32> to vector<8x8xf32>
    %110 = arith.subf %106, %109 : vector<8x8xf32>
    %111 = math.exp %110 : vector<8x8xf32>
    %cst_52 = arith.constant dense<0.000000e+00> : vector<8xf32>
    %112 = vector.multi_reduction <add>, %111, %cst_52 [1] : vector<8x8xf32> to vector<8xf32>
    %113 = vector.shape_cast %112 : vector<8xf32> to vector<8x1xf32>
    %114 = tpu.reciprocal %113 {approx = true} : vector<8x1xf32> -> vector<8x1xf32>
    %115 = arith.mulf %113, %114 : vector<8x1xf32>
    %cst_53 = arith.constant 2.000000e+00 : f32
    %116 = vector.broadcast %cst_53 : f32 to vector<8x1xf32>
    %117 = arith.subf %116, %115 : vector<8x1xf32>
    %118 = arith.mulf %114, %117 : vector<8x1xf32>
    %119 = arith.truncf %111 : vector<8x8xf32> to vector<8x8xbf16>
    %120 = arith.truncf %103 : vector<8x4xf32> to vector<8x4xbf16>
    %cst_54 = arith.constant dense<0.000000e+00> : vector<8x4xf32>
    %121 = tpu.matmul %119, %120, %cst_54 {dimension_numbers = #tpu.dot_dimension_numbers<[1], [0], [0], [1], [0, 0, 1, 1], [], []>} : vector<8x8xbf16>, vector<8x4xbf16>, vector<8x4xf32> -> vector<8x4xf32>
    %122 = vector.broadcast %118 : vector<8x1xf32> to vector<8x4xf32>
    %123 = arith.mulf %121, %122 : vector<8x4xf32>
    %c0_55 = arith.constant 0 : index
    %c16_56 = arith.constant 16 : index
    %124 = vector.load %arg7[%c0_55, %c16_56] : memref<16x32xf32, #tpu.memory_space<vmem>>, vector<8x4xf32>
    tpu.vector_store %arg7[%c0_55, %c16_56], %123 {strides = array<i32>} : memref<16x32xf32, #tpu.memory_space<vmem>>, vector<8x4xf32>,
    %c0_57 = arith.constant 0 : index
    %c20 = arith.constant 20 : index
    %125 = vector.load %arg6[%c0_57, %c20] : memref<16x96xf32, #tpu.memory_space<vmem>>, vector<8x4xf32>
    %c0_58 = arith.constant 0 : index
    %c52 = arith.constant 52 : index
    %126 = vector.load %arg6[%c0_58, %c52] : memref<16x96xf32, #tpu.memory_space<vmem>>, vector<8x4xf32>
    %c0_59 = arith.constant 0 : index
    %c84 = arith.constant 84 : index
    %127 = vector.load %arg6[%c0_59, %c84] : memref<16x96xf32, #tpu.memory_space<vmem>>, vector<8x4xf32>
    %128 = arith.truncf %125 : vector<8x4xf32> to vector<8x4xbf16>
    %129 = arith.truncf %126 : vector<8x4xf32> to vector<8x4xbf16>
    "tpu.trace_start"() <{level = 10 : i32, message = "qd,kd->qk"}> : () -> ()
    %cst_60 = arith.constant dense<0.000000e+00> : vector<8x8xf32>
    %130 = tpu.matmul %128, %129, %cst_60 {dimension_numbers = #tpu.dot_dimension_numbers<[1], [1], [0], [0], [0, 0, 1, 0], [], []>} : vector<8x4xbf16>, vector<8x4xbf16>, vector<8x8xf32> -> vector<8x8xf32>
    "tpu.trace_stop"() : () -> ()
    %cst_61 = arith.constant dense<0xFF800000> : vector<8xf32>
    %131 = vector.multi_reduction <maximumf>, %130, %cst_61 [1] : vector<8x8xf32> to vector<8xf32>
    %132 = vector.shape_cast %131 : vector<8xf32> to vector<8x1xf32>
    %133 = vector.broadcast %132 : vector<8x1xf32> to vector<8x8xf32>
    %134 = arith.subf %130, %133 : vector<8x8xf32>
    %135 = math.exp %134 : vector<8x8xf32>
    %cst_62 = arith.constant dense<0.000000e+00> : vector<8xf32>
    %136 = vector.multi_reduction <add>, %135, %cst_62 [1] : vector<8x8xf32> to vector<8xf32>
    %137 = vector.shape_cast %136 : vector<8xf32> to vector<8x1xf32>
    %138 = tpu.reciprocal %137 {approx = true} : vector<8x1xf32> -> vector<8x1xf32>
    %139 = arith.mulf %137, %138 : vector<8x1xf32>
    %cst_63 = arith.constant 2.000000e+00 : f32
    %140 = vector.broadcast %cst_63 : f32 to vector<8x1xf32>
    %141 = arith.subf %140, %139 : vector<8x1xf32>
    %142 = arith.mulf %138, %141 : vector<8x1xf32>
    %143 = arith.truncf %135 : vector<8x8xf32> to vector<8x8xbf16>
    %144 = arith.truncf %127 : vector<8x4xf32> to vector<8x4xbf16>
    %cst_64 = arith.constant dense<0.000000e+00> : vector<8x4xf32>
    %145 = tpu.matmul %143, %144, %cst_64 {dimension_numbers = #tpu.dot_dimension_numbers<[1], [0], [0], [1], [0, 0, 1, 1], [], []>} : vector<8x8xbf16>, vector<8x4xbf16>, vector<8x4xf32> -> vector<8x4xf32>
    %146 = vector.broadcast %142 : vector<8x1xf32> to vector<8x4xf32>
    %147 = arith.mulf %145, %146 : vector<8x4xf32>
    %c0_65 = arith.constant 0 : index
    %c20_66 = arith.constant 20 : index
    %148 = vector.load %arg7[%c0_65, %c20_66] : memref<16x32xf32, #tpu.memory_space<vmem>>, vector<8x4xf32>
    tpu.vector_store %arg7[%c0_65, %c20_66], %147 {strides = array<i32>} : memref<16x32xf32, #tpu.memory_space<vmem>>, vector<8x4xf32>,
    %c0_67 = arith.constant 0 : index
    %c24 = arith.constant 24 : index
    %149 = vector.load %arg6[%c0_67, %c24] : memref<16x96xf32, #tpu.memory_space<vmem>>, vector<8x4xf32>
    %c0_68 = arith.constant 0 : index
    %c56 = arith.constant 56 : index
    %150 = vector.load %arg6[%c0_68, %c56] : memref<16x96xf32, #tpu.memory_space<vmem>>, vector<8x4xf32>
    %c0_69 = arith.constant 0 : index
    %c88 = arith.constant 88 : index
    %151 = vector.load %arg6[%c0_69, %c88] : memref<16x96xf32, #tpu.memory_space<vmem>>, vector<8x4xf32>
    %152 = arith.truncf %149 : vector<8x4xf32> to vector<8x4xbf16>
    %153 = arith.truncf %150 : vector<8x4xf32> to vector<8x4xbf16>
    "tpu.trace_start"() <{level = 10 : i32, message = "qd,kd->qk"}> : () -> ()
    %cst_70 = arith.constant dense<0.000000e+00> : vector<8x8xf32>
    %154 = tpu.matmul %152, %153, %cst_70 {dimension_numbers = #tpu.dot_dimension_numbers<[1], [1], [0], [0], [0, 0, 1, 0], [], []>} : vector<8x4xbf16>, vector<8x4xbf16>, vector<8x8xf32> -> vector<8x8xf32>
    "tpu.trace_stop"() : () -> ()
    %cst_71 = arith.constant dense<0xFF800000> : vector<8xf32>
    %155 = vector.multi_reduction <maximumf>, %154, %cst_71 [1] : vector<8x8xf32> to vector<8xf32>
    %156 = vector.shape_cast %155 : vector<8xf32> to vector<8x1xf32>
    %157 = vector.broadcast %156 : vector<8x1xf32> to vector<8x8xf32>
    %158 = arith.subf %154, %157 : vector<8x8xf32>
    %159 = math.exp %158 : vector<8x8xf32>
    %cst_72 = arith.constant dense<0.000000e+00> : vector<8xf32>
    %160 = vector.multi_reduction <add>, %159, %cst_72 [1] : vector<8x8xf32> to vector<8xf32>
    %161 = vector.shape_cast %160 : vector<8xf32> to vector<8x1xf32>
    %162 = tpu.reciprocal %161 {approx = true} : vector<8x1xf32> -> vector<8x1xf32>
    %163 = arith.mulf %161, %162 : vector<8x1xf32>
    %cst_73 = arith.constant 2.000000e+00 : f32
    %164 = vector.broadcast %cst_73 : f32 to vector<8x1xf32>
    %165 = arith.subf %164, %163 : vector<8x1xf32>
    %166 = arith.mulf %162, %165 : vector<8x1xf32>
    %167 = arith.truncf %159 : vector<8x8xf32> to vector<8x8xbf16>
    %168 = arith.truncf %151 : vector<8x4xf32> to vector<8x4xbf16>
    %cst_74 = arith.constant dense<0.000000e+00> : vector<8x4xf32>
    %169 = tpu.matmul %167, %168, %cst_74 {dimension_numbers = #tpu.dot_dimension_numbers<[1], [0], [0], [1], [0, 0, 1, 1], [], []>} : vector<8x8xbf16>, vector<8x4xbf16>, vector<8x4xf32> -> vector<8x4xf32>
    %170 = vector.broadcast %166 : vector<8x1xf32> to vector<8x4xf32>
    %171 = arith.mulf %169, %170 : vector<8x4xf32>
    %c0_75 = arith.constant 0 : index
    %c24_76 = arith.constant 24 : index
    %172 = vector.load %arg7[%c0_75, %c24_76] : memref<16x32xf32, #tpu.memory_space<vmem>>, vector<8x4xf32>
    tpu.vector_store %arg7[%c0_75, %c24_76], %171 {strides = array<i32>} : memref<16x32xf32, #tpu.memory_space<vmem>>, vector<8x4xf32>,
    %c0_77 = arith.constant 0 : index
    %c28 = arith.constant 28 : index
    %173 = vector.load %arg6[%c0_77, %c28] : memref<16x96xf32, #tpu.memory_space<vmem>>, vector<8x4xf32>
    %c0_78 = arith.constant 0 : index
    %c60 = arith.constant 60 : index
    %174 = vector.load %arg6[%c0_78, %c60] : memref<16x96xf32, #tpu.memory_space<vmem>>, vector<8x4xf32>
    %c0_79 = arith.constant 0 : index
    %c92 = arith.constant 92 : index
    %175 = vector.load %arg6[%c0_79, %c92] : memref<16x96xf32, #tpu.memory_space<vmem>>, vector<8x4xf32>
    %176 = arith.truncf %173 : vector<8x4xf32> to vector<8x4xbf16>
    %177 = arith.truncf %174 : vector<8x4xf32> to vector<8x4xbf16>
    "tpu.trace_start"() <{level = 10 : i32, message = "qd,kd->qk"}> : () -> ()
    %cst_80 = arith.constant dense<0.000000e+00> : vector<8x8xf32>
    %178 = tpu.matmul %176, %177, %cst_80 {dimension_numbers = #tpu.dot_dimension_numbers<[1], [1], [0], [0], [0, 0, 1, 0], [], []>} : vector<8x4xbf16>, vector<8x4xbf16>, vector<8x8xf32> -> vector<8x8xf32>
    "tpu.trace_stop"() : () -> ()
    %cst_81 = arith.constant dense<0xFF800000> : vector<8xf32>
    %179 = vector.multi_reduction <maximumf>, %178, %cst_81 [1] : vector<8x8xf32> to vector<8xf32>
    %180 = vector.shape_cast %179 : vector<8xf32> to vector<8x1xf32>
    %181 = vector.broadcast %180 : vector<8x1xf32> to vector<8x8xf32>
    %182 = arith.subf %178, %181 : vector<8x8xf32>
    %183 = math.exp %182 : vector<8x8xf32>
    %cst_82 = arith.constant dense<0.000000e+00> : vector<8xf32>
    %184 = vector.multi_reduction <add>, %183, %cst_82 [1] : vector<8x8xf32> to vector<8xf32>
    %185 = vector.shape_cast %184 : vector<8xf32> to vector<8x1xf32>
    %186 = tpu.reciprocal %185 {approx = true} : vector<8x1xf32> -> vector<8x1xf32>
    %187 = arith.mulf %185, %186 : vector<8x1xf32>
    %cst_83 = arith.constant 2.000000e+00 : f32
    %188 = vector.broadcast %cst_83 : f32 to vector<8x1xf32>
    %189 = arith.subf %188, %187 : vector<8x1xf32>
    %190 = arith.mulf %186, %189 : vector<8x1xf32>
    %191 = arith.truncf %183 : vector<8x8xf32> to vector<8x8xbf16>
    %192 = arith.truncf %175 : vector<8x4xf32> to vector<8x4xbf16>
    %cst_84 = arith.constant dense<0.000000e+00> : vector<8x4xf32>
    %193 = tpu.matmul %191, %192, %cst_84 {dimension_numbers = #tpu.dot_dimension_numbers<[1], [0], [0], [1], [0, 0, 1, 1], [], []>} : vector<8x8xbf16>, vector<8x4xbf16>, vector<8x4xf32> -> vector<8x4xf32>
    %194 = vector.broadcast %190 : vector<8x1xf32> to vector<8x4xf32>
    %195 = arith.mulf %193, %194 : vector<8x4xf32>
    %c0_85 = arith.constant 0 : index
    %c28_86 = arith.constant 28 : index
    %196 = vector.load %arg7[%c0_85, %c28_86] : memref<16x32xf32, #tpu.memory_space<vmem>>, vector<8x4xf32>
    tpu.vector_store %arg7[%c0_85, %c28_86], %195 {strides = array<i32>} : memref<16x32xf32, #tpu.memory_space<vmem>>, vector<8x4xf32>,
    %c8_87 = arith.constant 8 : index
    %c0_88 = arith.constant 0 : index
    %197 = vector.load %arg6[%c8_87, %c0_88] : memref<16x96xf32, #tpu.memory_space<vmem>>, vector<8x4xf32>
    %c8_89 = arith.constant 8 : index
    %c32_90 = arith.constant 32 : index
    %198 = vector.load %arg6[%c8_89, %c32_90] : memref<16x96xf32, #tpu.memory_space<vmem>>, vector<8x4xf32>
    %c8_91 = arith.constant 8 : index
    %c64_92 = arith.constant 64 : index
    %199 = vector.load %arg6[%c8_91, %c64_92] : memref<16x96xf32, #tpu.memory_space<vmem>>, vector<8x4xf32>
    %200 = arith.truncf %197 : vector<8x4xf32> to vector<8x4xbf16>
    %201 = arith.truncf %198 : vector<8x4xf32> to vector<8x4xbf16>
    "tpu.trace_start"() <{level = 10 : i32, message = "qd,kd->qk"}> : () -> ()
    %cst_93 = arith.constant dense<0.000000e+00> : vector<8x8xf32>
    %202 = tpu.matmul %200, %201, %cst_93 {dimension_numbers = #tpu.dot_dimension_numbers<[1], [1], [0], [0], [0, 0, 1, 0], [], []>} : vector<8x4xbf16>, vector<8x4xbf16>, vector<8x8xf32> -> vector<8x8xf32>
    "tpu.trace_stop"() : () -> ()
    %cst_94 = arith.constant dense<0xFF800000> : vector<8xf32>
    %203 = vector.multi_reduction <maximumf>, %202, %cst_94 [1] : vector<8x8xf32> to vector<8xf32>
    %204 = vector.shape_cast %203 : vector<8xf32> to vector<8x1xf32>
    %205 = vector.broadcast %204 : vector<8x1xf32> to vector<8x8xf32>
    %206 = arith.subf %202, %205 : vector<8x8xf32>
    %207 = math.exp %206 : vector<8x8xf32>
    %cst_95 = arith.constant dense<0.000000e+00> : vector<8xf32>
    %208 = vector.multi_reduction <add>, %207, %cst_95 [1] : vector<8x8xf32> to vector<8xf32>
    %209 = vector.shape_cast %208 : vector<8xf32> to vector<8x1xf32>
    %210 = tpu.reciprocal %209 {approx = true} : vector<8x1xf32> -> vector<8x1xf32>
    %211 = arith.mulf %209, %210 : vector<8x1xf32>
    %cst_96 = arith.constant 2.000000e+00 : f32
    %212 = vector.broadcast %cst_96 : f32 to vector<8x1xf32>
    %213 = arith.subf %212, %211 : vector<8x1xf32>
    %214 = arith.mulf %210, %213 : vector<8x1xf32>
    %215 = arith.truncf %207 : vector<8x8xf32> to vector<8x8xbf16>
    %216 = arith.truncf %199 : vector<8x4xf32> to vector<8x4xbf16>
    %cst_97 = arith.constant dense<0.000000e+00> : vector<8x4xf32>
    %217 = tpu.matmul %215, %216, %cst_97 {dimension_numbers = #tpu.dot_dimension_numbers<[1], [0], [0], [1], [0, 0, 1, 1], [], []>} : vector<8x8xbf16>, vector<8x4xbf16>, vector<8x4xf32> -> vector<8x4xf32>
    %218 = vector.broadcast %214 : vector<8x1xf32> to vector<8x4xf32>
    %219 = arith.mulf %217, %218 : vector<8x4xf32>
    %c8_98 = arith.constant 8 : index
    %c0_99 = arith.constant 0 : index
    %220 = vector.load %arg7[%c8_98, %c0_99] : memref<16x32xf32, #tpu.memory_space<vmem>>, vector<8x4xf32>
    tpu.vector_store %arg7[%c8_98, %c0_99], %219 {strides = array<i32>} : memref<16x32xf32, #tpu.memory_space<vmem>>, vector<8x4xf32>,
    %c8_100 = arith.constant 8 : index
    %c4_101 = arith.constant 4 : index
    %221 = vector.load %arg6[%c8_100, %c4_101] : memref<16x96xf32, #tpu.memory_space<vmem>>, vector<8x4xf32>
    %c8_102 = arith.constant 8 : index
    %c36_103 = arith.constant 36 : index
    %222 = vector.load %arg6[%c8_102, %c36_103] : memref<16x96xf32, #tpu.memory_space<vmem>>, vector<8x4xf32>
    %c8_104 = arith.constant 8 : index
    %c68_105 = arith.constant 68 : index
    %223 = vector.load %arg6[%c8_104, %c68_105] : memref<16x96xf32, #tpu.memory_space<vmem>>, vector<8x4xf32>
    %224 = arith.truncf %221 : vector<8x4xf32> to vector<8x4xbf16>
    %225 = arith.truncf %222 : vector<8x4xf32> to vector<8x4xbf16>
    "tpu.trace_start"() <{level = 10 : i32, message = "qd,kd->qk"}> : () -> ()
    %cst_106 = arith.constant dense<0.000000e+00> : vector<8x8xf32>
    %226 = tpu.matmul %224, %225, %cst_106 {dimension_numbers = #tpu.dot_dimension_numbers<[1], [1], [0], [0], [0, 0, 1, 0], [], []>} : vector<8x4xbf16>, vector<8x4xbf16>, vector<8x8xf32> -> vector<8x8xf32>
    "tpu.trace_stop"() : () -> ()
    %cst_107 = arith.constant dense<0xFF800000> : vector<8xf32>
    %227 = vector.multi_reduction <maximumf>, %226, %cst_107 [1] : vector<8x8xf32> to vector<8xf32>
    %228 = vector.shape_cast %227 : vector<8xf32> to vector<8x1xf32>
    %229 = vector.broadcast %228 : vector<8x1xf32> to vector<8x8xf32>
    %230 = arith.subf %226, %229 : vector<8x8xf32>
    %231 = math.exp %230 : vector<8x8xf32>
    %cst_108 = arith.constant dense<0.000000e+00> : vector<8xf32>
    %232 = vector.multi_reduction <add>, %231, %cst_108 [1] : vector<8x8xf32> to vector<8xf32>
    %233 = vector.shape_cast %232 : vector<8xf32> to vector<8x1xf32>
    %234 = tpu.reciprocal %233 {approx = true} : vector<8x1xf32> -> vector<8x1xf32>
    %235 = arith.mulf %233, %234 : vector<8x1xf32>
    %cst_109 = arith.constant 2.000000e+00 : f32
    %236 = vector.broadcast %cst_109 : f32 to vector<8x1xf32>
    %237 = arith.subf %236, %235 : vector<8x1xf32>
    %238 = arith.mulf %234, %237 : vector<8x1xf32>
    %239 = arith.truncf %231 : vector<8x8xf32> to vector<8x8xbf16>
    %240 = arith.truncf %223 : vector<8x4xf32> to vector<8x4xbf16>
    %cst_110 = arith.constant dense<0.000000e+00> : vector<8x4xf32>
    %241 = tpu.matmul %239, %240, %cst_110 {dimension_numbers = #tpu.dot_dimension_numbers<[1], [0], [0], [1], [0, 0, 1, 1], [], []>} : vector<8x8xbf16>, vector<8x4xbf16>, vector<8x4xf32> -> vector<8x4xf32>
    %242 = vector.broadcast %238 : vector<8x1xf32> to vector<8x4xf32>
    %243 = arith.mulf %241, %242 : vector<8x4xf32>
    %c8_111 = arith.constant 8 : index
    %c4_112 = arith.constant 4 : index
    %244 = vector.load %arg7[%c8_111, %c4_112] : memref<16x32xf32, #tpu.memory_space<vmem>>, vector<8x4xf32>
    tpu.vector_store %arg7[%c8_111, %c4_112], %243 {strides = array<i32>} : memref<16x32xf32, #tpu.memory_space<vmem>>, vector<8x4xf32>,
    %c8_113 = arith.constant 8 : index
    %c8_114 = arith.constant 8 : index
    %245 = vector.load %arg6[%c8_113, %c8_114] : memref<16x96xf32, #tpu.memory_space<vmem>>, vector<8x4xf32>
    %c8_115 = arith.constant 8 : index
    %c40_116 = arith.constant 40 : index
    %246 = vector.load %arg6[%c8_115, %c40_116] : memref<16x96xf32, #tpu.memory_space<vmem>>, vector<8x4xf32>
    %c8_117 = arith.constant 8 : index
    %c72_118 = arith.constant 72 : index
    %247 = vector.load %arg6[%c8_117, %c72_118] : memref<16x96xf32, #tpu.memory_space<vmem>>, vector<8x4xf32>
    %248 = arith.truncf %245 : vector<8x4xf32> to vector<8x4xbf16>
    %249 = arith.truncf %246 : vector<8x4xf32> to vector<8x4xbf16>
    "tpu.trace_start"() <{level = 10 : i32, message = "qd,kd->qk"}> : () -> ()
    %cst_119 = arith.constant dense<0.000000e+00> : vector<8x8xf32>
    %250 = tpu.matmul %248, %249, %cst_119 {dimension_numbers = #tpu.dot_dimension_numbers<[1], [1], [0], [0], [0, 0, 1, 0], [], []>} : vector<8x4xbf16>, vector<8x4xbf16>, vector<8x8xf32> -> vector<8x8xf32>
    "tpu.trace_stop"() : () -> ()
    %cst_120 = arith.constant dense<0xFF800000> : vector<8xf32>
    %251 = vector.multi_reduction <maximumf>, %250, %cst_120 [1] : vector<8x8xf32> to vector<8xf32>
    %252 = vector.shape_cast %251 : vector<8xf32> to vector<8x1xf32>
    %253 = vector.broadcast %252 : vector<8x1xf32> to vector<8x8xf32>
    %254 = arith.subf %250, %253 : vector<8x8xf32>
    %255 = math.exp %254 : vector<8x8xf32>
    %cst_121 = arith.constant dense<0.000000e+00> : vector<8xf32>
    %256 = vector.multi_reduction <add>, %255, %cst_121 [1] : vector<8x8xf32> to vector<8xf32>
    %257 = vector.shape_cast %256 : vector<8xf32> to vector<8x1xf32>
    %258 = tpu.reciprocal %257 {approx = true} : vector<8x1xf32> -> vector<8x1xf32>
    %259 = arith.mulf %257, %258 : vector<8x1xf32>
    %cst_122 = arith.constant 2.000000e+00 : f32
    %260 = vector.broadcast %cst_122 : f32 to vector<8x1xf32>
    %261 = arith.subf %260, %259 : vector<8x1xf32>
    %262 = arith.mulf %258, %261 : vector<8x1xf32>
    %263 = arith.truncf %255 : vector<8x8xf32> to vector<8x8xbf16>
    %264 = arith.truncf %247 : vector<8x4xf32> to vector<8x4xbf16>
    %cst_123 = arith.constant dense<0.000000e+00> : vector<8x4xf32>
    %265 = tpu.matmul %263, %264, %cst_123 {dimension_numbers = #tpu.dot_dimension_numbers<[1], [0], [0], [1], [0, 0, 1, 1], [], []>} : vector<8x8xbf16>, vector<8x4xbf16>, vector<8x4xf32> -> vector<8x4xf32>
    %266 = vector.broadcast %262 : vector<8x1xf32> to vector<8x4xf32>
    %267 = arith.mulf %265, %266 : vector<8x4xf32>
    %c8_124 = arith.constant 8 : index
    %c8_125 = arith.constant 8 : index
    %268 = vector.load %arg7[%c8_124, %c8_125] : memref<16x32xf32, #tpu.memory_space<vmem>>, vector<8x4xf32>
    tpu.vector_store %arg7[%c8_124, %c8_125], %267 {strides = array<i32>} : memref<16x32xf32, #tpu.memory_space<vmem>>, vector<8x4xf32>,
    %c8_126 = arith.constant 8 : index
    %c12_127 = arith.constant 12 : index
    %269 = vector.load %arg6[%c8_126, %c12_127] : memref<16x96xf32, #tpu.memory_space<vmem>>, vector<8x4xf32>
    %c8_128 = arith.constant 8 : index
    %c44_129 = arith.constant 44 : index
    %270 = vector.load %arg6[%c8_128, %c44_129] : memref<16x96xf32, #tpu.memory_space<vmem>>, vector<8x4xf32>
    %c8_130 = arith.constant 8 : index
    %c76_131 = arith.constant 76 : index
    %271 = vector.load %arg6[%c8_130, %c76_131] : memref<16x96xf32, #tpu.memory_space<vmem>>, vector<8x4xf32>
    %272 = arith.truncf %269 : vector<8x4xf32> to vector<8x4xbf16>
    %273 = arith.truncf %270 : vector<8x4xf32> to vector<8x4xbf16>
    "tpu.trace_start"() <{level = 10 : i32, message = "qd,kd->qk"}> : () -> ()
    %cst_132 = arith.constant dense<0.000000e+00> : vector<8x8xf32>
    %274 = tpu.matmul %272, %273, %cst_132 {dimension_numbers = #tpu.dot_dimension_numbers<[1], [1], [0], [0], [0, 0, 1, 0], [], []>} : vector<8x4xbf16>, vector<8x4xbf16>, vector<8x8xf32> -> vector<8x8xf32>
    "tpu.trace_stop"() : () -> ()
    %cst_133 = arith.constant dense<0xFF800000> : vector<8xf32>
    %275 = vector.multi_reduction <maximumf>, %274, %cst_133 [1] : vector<8x8xf32> to vector<8xf32>
    %276 = vector.shape_cast %275 : vector<8xf32> to vector<8x1xf32>
    %277 = vector.broadcast %276 : vector<8x1xf32> to vector<8x8xf32>
    %278 = arith.subf %274, %277 : vector<8x8xf32>
    %279 = math.exp %278 : vector<8x8xf32>
    %cst_134 = arith.constant dense<0.000000e+00> : vector<8xf32>
    %280 = vector.multi_reduction <add>, %279, %cst_134 [1] : vector<8x8xf32> to vector<8xf32>
    %281 = vector.shape_cast %280 : vector<8xf32> to vector<8x1xf32>
    %282 = tpu.reciprocal %281 {approx = true} : vector<8x1xf32> -> vector<8x1xf32>
    %283 = arith.mulf %281, %282 : vector<8x1xf32>
    %cst_135 = arith.constant 2.000000e+00 : f32
    %284 = vector.broadcast %cst_135 : f32 to vector<8x1xf32>
    %285 = arith.subf %284, %283 : vector<8x1xf32>
    %286 = arith.mulf %282, %285 : vector<8x1xf32>
    %287 = arith.truncf %279 : vector<8x8xf32> to vector<8x8xbf16>
    %288 = arith.truncf %271 : vector<8x4xf32> to vector<8x4xbf16>
    %cst_136 = arith.constant dense<0.000000e+00> : vector<8x4xf32>
    %289 = tpu.matmul %287, %288, %cst_136 {dimension_numbers = #tpu.dot_dimension_numbers<[1], [0], [0], [1], [0, 0, 1, 1], [], []>} : vector<8x8xbf16>, vector<8x4xbf16>, vector<8x4xf32> -> vector<8x4xf32>
    %290 = vector.broadcast %286 : vector<8x1xf32> to vector<8x4xf32>
    %291 = arith.mulf %289, %290 : vector<8x4xf32>
    %c8_137 = arith.constant 8 : index
    %c12_138 = arith.constant 12 : index
    %292 = vector.load %arg7[%c8_137, %c12_138] : memref<16x32xf32, #tpu.memory_space<vmem>>, vector<8x4xf32>
    tpu.vector_store %arg7[%c8_137, %c12_138], %291 {strides = array<i32>} : memref<16x32xf32, #tpu.memory_space<vmem>>, vector<8x4xf32>,
    %c8_139 = arith.constant 8 : index
    %c16_140 = arith.constant 16 : index
    %293 = vector.load %arg6[%c8_139, %c16_140] : memref<16x96xf32, #tpu.memory_space<vmem>>, vector<8x4xf32>
    %c8_141 = arith.constant 8 : index
    %c48_142 = arith.constant 48 : index
    %294 = vector.load %arg6[%c8_141, %c48_142] : memref<16x96xf32, #tpu.memory_space<vmem>>, vector<8x4xf32>
    %c8_143 = arith.constant 8 : index
    %c80_144 = arith.constant 80 : index
    %295 = vector.load %arg6[%c8_143, %c80_144] : memref<16x96xf32, #tpu.memory_space<vmem>>, vector<8x4xf32>
    %296 = arith.truncf %293 : vector<8x4xf32> to vector<8x4xbf16>
    %297 = arith.truncf %294 : vector<8x4xf32> to vector<8x4xbf16>
    "tpu.trace_start"() <{level = 10 : i32, message = "qd,kd->qk"}> : () -> ()
    %cst_145 = arith.constant dense<0.000000e+00> : vector<8x8xf32>
    %298 = tpu.matmul %296, %297, %cst_145 {dimension_numbers = #tpu.dot_dimension_numbers<[1], [1], [0], [0], [0, 0, 1, 0], [], []>} : vector<8x4xbf16>, vector<8x4xbf16>, vector<8x8xf32> -> vector<8x8xf32>
    "tpu.trace_stop"() : () -> ()
    %cst_146 = arith.constant dense<0xFF800000> : vector<8xf32>
    %299 = vector.multi_reduction <maximumf>, %298, %cst_146 [1] : vector<8x8xf32> to vector<8xf32>
    %300 = vector.shape_cast %299 : vector<8xf32> to vector<8x1xf32>
    %301 = vector.broadcast %300 : vector<8x1xf32> to vector<8x8xf32>
    %302 = arith.subf %298, %301 : vector<8x8xf32>
    %303 = math.exp %302 : vector<8x8xf32>
    %cst_147 = arith.constant dense<0.000000e+00> : vector<8xf32>
    %304 = vector.multi_reduction <add>, %303, %cst_147 [1] : vector<8x8xf32> to vector<8xf32>
    %305 = vector.shape_cast %304 : vector<8xf32> to vector<8x1xf32>
    %306 = tpu.reciprocal %305 {approx = true} : vector<8x1xf32> -> vector<8x1xf32>
    %307 = arith.mulf %305, %306 : vector<8x1xf32>
    %cst_148 = arith.constant 2.000000e+00 : f32
    %308 = vector.broadcast %cst_148 : f32 to vector<8x1xf32>
    %309 = arith.subf %308, %307 : vector<8x1xf32>
    %310 = arith.mulf %306, %309 : vector<8x1xf32>
    %311 = arith.truncf %303 : vector<8x8xf32> to vector<8x8xbf16>
    %312 = arith.truncf %295 : vector<8x4xf32> to vector<8x4xbf16>
    %cst_149 = arith.constant dense<0.000000e+00> : vector<8x4xf32>
    %313 = tpu.matmul %311, %312, %cst_149 {dimension_numbers = #tpu.dot_dimension_numbers<[1], [0], [0], [1], [0, 0, 1, 1], [], []>} : vector<8x8xbf16>, vector<8x4xbf16>, vector<8x4xf32> -> vector<8x4xf32>
    %314 = vector.broadcast %310 : vector<8x1xf32> to vector<8x4xf32>
    %315 = arith.mulf %313, %314 : vector<8x4xf32>
    %c8_150 = arith.constant 8 : index
    %c16_151 = arith.constant 16 : index
    %316 = vector.load %arg7[%c8_150, %c16_151] : memref<16x32xf32, #tpu.memory_space<vmem>>, vector<8x4xf32>
    tpu.vector_store %arg7[%c8_150, %c16_151], %315 {strides = array<i32>} : memref<16x32xf32, #tpu.memory_space<vmem>>, vector<8x4xf32>,
    %c8_152 = arith.constant 8 : index
    %c20_153 = arith.constant 20 : index
    %317 = vector.load %arg6[%c8_152, %c20_153] : memref<16x96xf32, #tpu.memory_space<vmem>>, vector<8x4xf32>
    %c8_154 = arith.constant 8 : index
    %c52_155 = arith.constant 52 : index
    %318 = vector.load %arg6[%c8_154, %c52_155] : memref<16x96xf32, #tpu.memory_space<vmem>>, vector<8x4xf32>
    %c8_156 = arith.constant 8 : index
    %c84_157 = arith.constant 84 : index
    %319 = vector.load %arg6[%c8_156, %c84_157] : memref<16x96xf32, #tpu.memory_space<vmem>>, vector<8x4xf32>
    %320 = arith.truncf %317 : vector<8x4xf32> to vector<8x4xbf16>
    %321 = arith.truncf %318 : vector<8x4xf32> to vector<8x4xbf16>
    "tpu.trace_start"() <{level = 10 : i32, message = "qd,kd->qk"}> : () -> ()
    %cst_158 = arith.constant dense<0.000000e+00> : vector<8x8xf32>
    %322 = tpu.matmul %320, %321, %cst_158 {dimension_numbers = #tpu.dot_dimension_numbers<[1], [1], [0], [0], [0, 0, 1, 0], [], []>} : vector<8x4xbf16>, vector<8x4xbf16>, vector<8x8xf32> -> vector<8x8xf32>
    "tpu.trace_stop"() : () -> ()
    %cst_159 = arith.constant dense<0xFF800000> : vector<8xf32>
    %323 = vector.multi_reduction <maximumf>, %322, %cst_159 [1] : vector<8x8xf32> to vector<8xf32>
    %324 = vector.shape_cast %323 : vector<8xf32> to vector<8x1xf32>
    %325 = vector.broadcast %324 : vector<8x1xf32> to vector<8x8xf32>
    %326 = arith.subf %322, %325 : vector<8x8xf32>
    %327 = math.exp %326 : vector<8x8xf32>
    %cst_160 = arith.constant dense<0.000000e+00> : vector<8xf32>
    %328 = vector.multi_reduction <add>, %327, %cst_160 [1] : vector<8x8xf32> to vector<8xf32>
    %329 = vector.shape_cast %328 : vector<8xf32> to vector<8x1xf32>
    %330 = tpu.reciprocal %329 {approx = true} : vector<8x1xf32> -> vector<8x1xf32>
    %331 = arith.mulf %329, %330 : vector<8x1xf32>
    %cst_161 = arith.constant 2.000000e+00 : f32
    %332 = vector.broadcast %cst_161 : f32 to vector<8x1xf32>
    %333 = arith.subf %332, %331 : vector<8x1xf32>
    %334 = arith.mulf %330, %333 : vector<8x1xf32>
    %335 = arith.truncf %327 : vector<8x8xf32> to vector<8x8xbf16>
    %336 = arith.truncf %319 : vector<8x4xf32> to vector<8x4xbf16>
    %cst_162 = arith.constant dense<0.000000e+00> : vector<8x4xf32>
    %337 = tpu.matmul %335, %336, %cst_162 {dimension_numbers = #tpu.dot_dimension_numbers<[1], [0], [0], [1], [0, 0, 1, 1], [], []>} : vector<8x8xbf16>, vector<8x4xbf16>, vector<8x4xf32> -> vector<8x4xf32>
    %338 = vector.broadcast %334 : vector<8x1xf32> to vector<8x4xf32>
    %339 = arith.mulf %337, %338 : vector<8x4xf32>
    %c8_163 = arith.constant 8 : index
    %c20_164 = arith.constant 20 : index
    %340 = vector.load %arg7[%c8_163, %c20_164] : memref<16x32xf32, #tpu.memory_space<vmem>>, vector<8x4xf32>
    tpu.vector_store %arg7[%c8_163, %c20_164], %339 {strides = array<i32>} : memref<16x32xf32, #tpu.memory_space<vmem>>, vector<8x4xf32>,
    %c8_165 = arith.constant 8 : index
    %c24_166 = arith.constant 24 : index
    %341 = vector.load %arg6[%c8_165, %c24_166] : memref<16x96xf32, #tpu.memory_space<vmem>>, vector<8x4xf32>
    %c8_167 = arith.constant 8 : index
    %c56_168 = arith.constant 56 : index
    %342 = vector.load %arg6[%c8_167, %c56_168] : memref<16x96xf32, #tpu.memory_space<vmem>>, vector<8x4xf32>
    %c8_169 = arith.constant 8 : index
    %c88_170 = arith.constant 88 : index
    %343 = vector.load %arg6[%c8_169, %c88_170] : memref<16x96xf32, #tpu.memory_space<vmem>>, vector<8x4xf32>
    %344 = arith.truncf %341 : vector<8x4xf32> to vector<8x4xbf16>
    %345 = arith.truncf %342 : vector<8x4xf32> to vector<8x4xbf16>
    "tpu.trace_start"() <{level = 10 : i32, message = "qd,kd->qk"}> : () -> ()
    %cst_171 = arith.constant dense<0.000000e+00> : vector<8x8xf32>
    %346 = tpu.matmul %344, %345, %cst_171 {dimension_numbers = #tpu.dot_dimension_numbers<[1], [1], [0], [0], [0, 0, 1, 0], [], []>} : vector<8x4xbf16>, vector<8x4xbf16>, vector<8x8xf32> -> vector<8x8xf32>
    "tpu.trace_stop"() : () -> ()
    %cst_172 = arith.constant dense<0xFF800000> : vector<8xf32>
    %347 = vector.multi_reduction <maximumf>, %346, %cst_172 [1] : vector<8x8xf32> to vector<8xf32>
    %348 = vector.shape_cast %347 : vector<8xf32> to vector<8x1xf32>
    %349 = vector.broadcast %348 : vector<8x1xf32> to vector<8x8xf32>
    %350 = arith.subf %346, %349 : vector<8x8xf32>
    %351 = math.exp %350 : vector<8x8xf32>
    %cst_173 = arith.constant dense<0.000000e+00> : vector<8xf32>
    %352 = vector.multi_reduction <add>, %351, %cst_173 [1] : vector<8x8xf32> to vector<8xf32>
    %353 = vector.shape_cast %352 : vector<8xf32> to vector<8x1xf32>
    %354 = tpu.reciprocal %353 {approx = true} : vector<8x1xf32> -> vector<8x1xf32>
    %355 = arith.mulf %353, %354 : vector<8x1xf32>
    %cst_174 = arith.constant 2.000000e+00 : f32
    %356 = vector.broadcast %cst_174 : f32 to vector<8x1xf32>
    %357 = arith.subf %356, %355 : vector<8x1xf32>
    %358 = arith.mulf %354, %357 : vector<8x1xf32>
    %359 = arith.truncf %351 : vector<8x8xf32> to vector<8x8xbf16>
    %360 = arith.truncf %343 : vector<8x4xf32> to vector<8x4xbf16>
    %cst_175 = arith.constant dense<0.000000e+00> : vector<8x4xf32>
    %361 = tpu.matmul %359, %360, %cst_175 {dimension_numbers = #tpu.dot_dimension_numbers<[1], [0], [0], [1], [0, 0, 1, 1], [], []>} : vector<8x8xbf16>, vector<8x4xbf16>, vector<8x4xf32> -> vector<8x4xf32>
    %362 = vector.broadcast %358 : vector<8x1xf32> to vector<8x4xf32>
    %363 = arith.mulf %361, %362 : vector<8x4xf32>
    %c8_176 = arith.constant 8 : index
    %c24_177 = arith.constant 24 : index
    %364 = vector.load %arg7[%c8_176, %c24_177] : memref<16x32xf32, #tpu.memory_space<vmem>>, vector<8x4xf32>
    tpu.vector_store %arg7[%c8_176, %c24_177], %363 {strides = array<i32>} : memref<16x32xf32, #tpu.memory_space<vmem>>, vector<8x4xf32>,
    %c8_178 = arith.constant 8 : index
    %c28_179 = arith.constant 28 : index
    %365 = vector.load %arg6[%c8_178, %c28_179] : memref<16x96xf32, #tpu.memory_space<vmem>>, vector<8x4xf32>
    %c8_180 = arith.constant 8 : index
    %c60_181 = arith.constant 60 : index
    %366 = vector.load %arg6[%c8_180, %c60_181] : memref<16x96xf32, #tpu.memory_space<vmem>>, vector<8x4xf32>
    %c8_182 = arith.constant 8 : index
    %c92_183 = arith.constant 92 : index
    %367 = vector.load %arg6[%c8_182, %c92_183] : memref<16x96xf32, #tpu.memory_space<vmem>>, vector<8x4xf32>
    %368 = arith.truncf %365 : vector<8x4xf32> to vector<8x4xbf16>
    %369 = arith.truncf %366 : vector<8x4xf32> to vector<8x4xbf16>
    "tpu.trace_start"() <{level = 10 : i32, message = "qd,kd->qk"}> : () -> ()
    %cst_184 = arith.constant dense<0.000000e+00> : vector<8x8xf32>
    %370 = tpu.matmul %368, %369, %cst_184 {dimension_numbers = #tpu.dot_dimension_numbers<[1], [1], [0], [0], [0, 0, 1, 0], [], []>} : vector<8x4xbf16>, vector<8x4xbf16>, vector<8x8xf32> -> vector<8x8xf32>
    "tpu.trace_stop"() : () -> ()
    %cst_185 = arith.constant dense<0xFF800000> : vector<8xf32>
    %371 = vector.multi_reduction <maximumf>, %370, %cst_185 [1] : vector<8x8xf32> to vector<8xf32>
    %372 = vector.shape_cast %371 : vector<8xf32> to vector<8x1xf32>
    %373 = vector.broadcast %372 : vector<8x1xf32> to vector<8x8xf32>
    %374 = arith.subf %370, %373 : vector<8x8xf32>
    %375 = math.exp %374 : vector<8x8xf32>
    %cst_186 = arith.constant dense<0.000000e+00> : vector<8xf32>
    %376 = vector.multi_reduction <add>, %375, %cst_186 [1] : vector<8x8xf32> to vector<8xf32>
    %377 = vector.shape_cast %376 : vector<8xf32> to vector<8x1xf32>
    %378 = tpu.reciprocal %377 {approx = true} : vector<8x1xf32> -> vector<8x1xf32>
    %379 = arith.mulf %377, %378 : vector<8x1xf32>
    %cst_187 = arith.constant 2.000000e+00 : f32
    %380 = vector.broadcast %cst_187 : f32 to vector<8x1xf32>
    %381 = arith.subf %380, %379 : vector<8x1xf32>
    %382 = arith.mulf %378, %381 : vector<8x1xf32>
    %383 = arith.truncf %375 : vector<8x8xf32> to vector<8x8xbf16>
    %384 = arith.truncf %367 : vector<8x4xf32> to vector<8x4xbf16>
    %cst_188 = arith.constant dense<0.000000e+00> : vector<8x4xf32>
    %385 = tpu.matmul %383, %384, %cst_188 {dimension_numbers = #tpu.dot_dimension_numbers<[1], [0], [0], [1], [0, 0, 1, 1], [], []>} : vector<8x8xbf16>, vector<8x4xbf16>, vector<8x4xf32> -> vector<8x4xf32>
    %386 = vector.broadcast %382 : vector<8x1xf32> to vector<8x4xf32>
    %387 = arith.mulf %385, %386 : vector<8x4xf32>
    %c8_189 = arith.constant 8 : index
    %c28_190 = arith.constant 28 : index
    %388 = vector.load %arg7[%c8_189, %c28_190] : memref<16x32xf32, #tpu.memory_space<vmem>>, vector<8x4xf32>
    tpu.vector_store %arg7[%c8_189, %c28_190], %387 {strides = array<i32>} : memref<16x32xf32, #tpu.memory_space<vmem>>, vector<8x4xf32>,
    %c0_191 = arith.constant 0 : index
    %c0_192 = arith.constant 0 : index
    %389 = vector.load %arg7[%c0_191, %c0_192] : memref<16x32xf32, #tpu.memory_space<vmem>>, vector<16x32xf32>
    %390 = arith.truncf %389 : vector<16x32xf32> to vector<16x32xbf16>
    %c0_193 = arith.constant 0 : index
    %c0_194 = arith.constant 0 : index
    %391 = vector.load %arg3[%c0_193, %c0_194] : memref<32x32xbf16, #tpu.memory_space<vmem>>, vector<32x32xbf16>
    %cst_195 = arith.constant dense<0.000000e+00> : vector<16x32xf32>
    %392 = tpu.matmul %390, %391, %cst_195 {dimension_numbers = #tpu.dot_dimension_numbers<[1], [0], [0], [1], [0, 0, 1, 1], [], []>} : vector<16x32xbf16>, vector<32x32xbf16>, vector<16x32xf32> -> vector<16x32xf32>
    %c0_196 = arith.constant 0 : index
    %c0_197 = arith.constant 0 : index
    %393 = vector.load %arg4[%c0_196, %c0_197] : memref<1x32xf32, #tpu.memory_space<vmem>>, vector<1x32xf32>
    %394 = vector.broadcast %393 : vector<1x32xf32> to vector<16x32xf32>
    %395 = arith.addf %392, %394 : vector<16x32xf32>
    %396 = vector.shape_cast %395 : vector<16x32xf32> to vector<2x8x32xf32>
    %c0_198 = arith.constant 0 : index
    %c0_199 = arith.constant 0 : index
    %c0_200 = arith.constant 0 : index
    %397 = vector.load %arg5[%c0_198, %c0_199, %c0_200] : memref<2x8x32xf32, #tpu.memory_space<vmem>>, vector<2x8x32xf32>
    tpu.vector_store %arg5[%c0_198, %c0_199, %c0_200], %396 {strides = array<i32>} : memref<2x8x32xf32, #tpu.memory_space<vmem>>, vector<2x8x32xf32>,
    return
  }
  func.func @transform_0(%arg0: i32) -> (i32, i32, i32) {
    %c0_i32 = arith.constant 0 : i32
    %c0_i32_0 = arith.constant 0 : i32
    %c0_i32_1 = arith.constant 0 : i32
    return %arg0, %c0_i32, %c0_i32_0 : i32, i32, i32
  }
  func.func @transform_1(%arg0: i32) -> (i32, i32) {
    %c0_i32 = arith.constant 0 : i32
    %c0_i32_0 = arith.constant 0 : i32
    %c0_i32_1 = arith.constant 0 : i32
    return %c0_i32, %c0_i32_0 : i32, i32
  }
  func.func @transform_2(%arg0: i32) -> (i32, i32) {
    %c0_i32 = arith.constant 0 : i32
    %c0_i32_0 = arith.constant 0 : i32
    %c0_i32_1 = arith.constant 0 : i32
    return %c0_i32, %c0_i32_0 : i32, i32
  }
  func.func @transform_3(%arg0: i32) -> (i32, i32) {
    %c0_i32 = arith.constant 0 : i32
    %c0_i32_0 = arith.constant 0 : i32
    %c0_i32_1 = arith.constant 0 : i32
    return %c0_i32, %c0_i32_0 : i32, i32
  }
  func.func @transform_4(%arg0: i32) -> (i32, i32, i32) {
    %c0_i32 = arith.constant 0 : i32
    %c0_i32_0 = arith.constant 0 : i32
    %c0_i32_1 = arith.constant 0 : i32
    return %arg0, %c0_i32, %c0_i32_0 : i32, i32, i32
  }
}

module attributes {stable_mosaic.version = 11 : i64} {
  func.func @_attn_fused_kernel(%arg0: i32, %arg1: memref<2x8x32xbf16, #tpu.memory_space<vmem>>, %arg2: memref<32x96xbf16, #tpu.memory_space<vmem>>, %arg3: memref<32x32xbf16, #tpu.memory_space<vmem>>, %arg4: memref<1x32xf32, #tpu.memory_space<vmem>>, %arg5: memref<2x8x32xf32, #tpu.memory_space<vmem>>, %arg6: memref<16x96xf32, #tpu.memory_space<vmem>>, %arg7: memref<16x32xf32, #tpu.memory_space<vmem>>) attributes {dimension_semantics = [#tpu.dimension_semantics<parallel>], iteration_bounds = array<i64: 1>, scalar_prefetch = 0 : i64, scratch_operands = 2 : i64, tpu.core_type = #tpu.core_type<tc>, window_params = [{transform_indices = @transform_0, window_bounds = array<i64: 2, 8, 32>}, {pipeline_mode = #tpu.pipeline_mode<synchronous>, transform_indices = @transform_1, window_bounds = array<i64: 32, 96>}, {pipeline_mode = #tpu.pipeline_mode<synchronous>, transform_indices = @transform_2, window_bounds = array<i64: 32, 32>}, {pipeline_mode = #tpu.pipeline_mode<synchronous>, transform_indices = @transform_3, window_bounds = array<i64: 1, 32>}, {transform_indices = @transform_4, window_bounds = array<i64: 2, 8, 32>}]} {
    %c0 = arith.constant 0 : index
    %c0_0 = arith.constant 0 : index
    %c0_1 = arith.constant 0 : index
    %0 = vector.load %arg1[%c0, %c0_0, %c0_1] : memref<2x8x32xbf16, #tpu.memory_space<vmem>>, vector<2x8x32xbf16>
    %1 = vector.shape_cast %0 : vector<2x8x32xbf16> to vector<16x32xbf16>
    %c0_2 = arith.constant 0 : index
    %c0_3 = arith.constant 0 : index
    %2 = vector.load %arg2[%c0_2, %c0_3] : memref<32x96xbf16, #tpu.memory_space<vmem>>, vector<32x96xbf16>
    %cst = arith.constant dense<0.000000e+00> : vector<16x96xf32>
    %3 = tpu.matmul %1, %2, %cst {dimension_numbers = #tpu.dot_dimension_numbers<[1], [0], [0], [1], [0, 0, 1, 1], [], []>} : vector<16x32xbf16>, vector<32x96xbf16>, vector<16x96xf32> -> vector<16x96xf32>
    %c0_4 = arith.constant 0 : index
    %c0_5 = arith.constant 0 : index
    %4 = vector.load %arg6[%c0_4, %c0_5] : memref<16x96xf32, #tpu.memory_space<vmem>>, vector<16x96xf32>
    tpu.vector_store %arg6[%c0_4, %c0_5], %3 {strides = array<i32>} : memref<16x96xf32, #tpu.memory_space<vmem>>, vector<16x96xf32>,
    %c0_6 = arith.constant 0 : index
    %c0_7 = arith.constant 0 : index
    %5 = vector.load %arg6[%c0_6, %c0_7] : memref<16x96xf32, #tpu.memory_space<vmem>>, vector<8x4xf32>
    %c0_8 = arith.constant 0 : index
    %c32 = arith.constant 32 : index
    %6 = vector.load %arg6[%c0_8, %c32] : memref<16x96xf32, #tpu.memory_space<vmem>>, vector<8x4xf32>
    %c0_9 = arith.constant 0 : index
    %c64 = arith.constant 64 : index
    %7 = vector.load %arg6[%c0_9, %c64] : memref<16x96xf32, #tpu.memory_space<vmem>>, vector<8x4xf32>
    %8 = arith.truncf %5 : vector<8x4xf32> to vector<8x4xbf16>
    %9 = arith.truncf %6 : vector<8x4xf32> to vector<8x4xbf16>
    "tpu.trace_start"() <{level = 10 : i32, message = "qd,kd->qk"}> : () -> ()
    %cst_10 = arith.constant dense<0.000000e+00> : vector<8x8xf32>
    %10 = tpu.matmul %8, %9, %cst_10 {dimension_numbers = #tpu.dot_dimension_numbers<[1], [1], [0], [0], [0, 0, 1, 0], [], []>} : vector<8x4xbf16>, vector<8x4xbf16>, vector<8x8xf32> -> vector<8x8xf32>
    "tpu.trace_stop"() : () -> ()
    %cst_11 = arith.constant dense<0xFF800000> : vector<8xf32>
    %11 = vector.multi_reduction <maximumf>, %10, %cst_11 [1] : vector<8x8xf32> to vector<8xf32>
    %12 = vector.shape_cast %11 : vector<8xf32> to vector<8x1xf32>
    %13 = vector.broadcast %12 : vector<8x1xf32> to vector<8x8xf32>
    %14 = arith.subf %10, %13 : vector<8x8xf32>
    %15 = math.exp %14 : vector<8x8xf32>
    %cst_12 = arith.constant dense<0.000000e+00> : vector<8xf32>
    %16 = vector.multi_reduction <add>, %15, %cst_12 [1] : vector<8x8xf32> to vector<8xf32>
    %17 = vector.shape_cast %16 : vector<8xf32> to vector<8x1xf32>
    %18 = tpu.reciprocal %17 {approx = true} : vector<8x1xf32> -> vector<8x1xf32>
    %19 = arith.mulf %17, %18 : vector<8x1xf32>
    %cst_13 = arith.constant 2.000000e+00 : f32
    %20 = vector.broadcast %cst_13 : f32 to vector<8x1xf32>
    %21 = arith.subf %20, %19 : vector<8x1xf32>
    %22 = arith.mulf %18, %21 : vector<8x1xf32>
    %23 = arith.truncf %15 : vector<8x8xf32> to vector<8x8xbf16>
    %24 = arith.truncf %7 : vector<8x4xf32> to vector<8x4xbf16>
    %cst_14 = arith.constant dense<0.000000e+00> : vector<8x4xf32>
    %25 = tpu.matmul %23, %24, %cst_14 {dimension_numbers = #tpu.dot_dimension_numbers<[1], [0], [0], [1], [0, 0, 1, 1], [], []>} : vector<8x8xbf16>, vector<8x4xbf16>, vector<8x4xf32> -> vector<8x4xf32>
    %26 = vector.broadcast %22 : vector<8x1xf32> to vector<8x4xf32>
    %27 = arith.mulf %25, %26 : vector<8x4xf32>
    %c0_15 = arith.constant 0 : index
    %c0_16 = arith.constant 0 : index
    %28 = vector.load %arg7[%c0_15, %c0_16] : memref<16x32xf32, #tpu.memory_space<vmem>>, vector<8x4xf32>
    tpu.vector_store %arg7[%c0_15, %c0_16], %27 {strides = array<i32>} : memref<16x32xf32, #tpu.memory_space<vmem>>, vector<8x4xf32>,
    %c0_17 = arith.constant 0 : index
    %c4 = arith.constant 4 : index
    %29 = vector.load %arg6[%c0_17, %c4] : memref<16x96xf32, #tpu.memory_space<vmem>>, vector<8x4xf32>
    %c0_18 = arith.constant 0 : index
    %c36 = arith.constant 36 : index
    %30 = vector.load %arg6[%c0_18, %c36] : memref<16x96xf32, #tpu.memory_space<vmem>>, vector<8x4xf32>
    %c0_19 = arith.constant 0 : index
    %c68 = arith.constant 68 : index
    %31 = vector.load %arg6[%c0_19, %c68] : memref<16x96xf32, #tpu.memory_space<vmem>>, vector<8x4xf32>
    %32 = arith.truncf %29 : vector<8x4xf32> to vector<8x4xbf16>
    %33 = arith.truncf %30 : vector<8x4xf32> to vector<8x4xbf16>
    "tpu.trace_start"() <{level = 10 : i32, message = "qd,kd->qk"}> : () -> ()
    %cst_20 = arith.constant dense<0.000000e+00> : vector<8x8xf32>
    %34 = tpu.matmul %32, %33, %cst_20 {dimension_numbers = #tpu.dot_dimension_numbers<[1], [1], [0], [0], [0, 0, 1, 0], [], []>} : vector<8x4xbf16>, vector<8x4xbf16>, vector<8x8xf32> -> vector<8x8xf32>
    "tpu.trace_stop"() : () -> ()
    %cst_21 = arith.constant dense<0xFF800000> : vector<8xf32>
    %35 = vector.multi_reduction <maximumf>, %34, %cst_21 [1] : vector<8x8xf32> to vector<8xf32>
    %36 = vector.shape_cast %35 : vector<8xf32> to vector<8x1xf32>
    %37 = vector.broadcast %36 : vector<8x1xf32> to vector<8x8xf32>
    %38 = arith.subf %34, %37 : vector<8x8xf32>
    %39 = math.exp %38 : vector<8x8xf32>
    %cst_22 = arith.constant dense<0.000000e+00> : vector<8xf32>
    %40 = vector.multi_reduction <add>, %39, %cst_22 [1] : vector<8x8xf32> to vector<8xf32>
    %41 = vector.shape_cast %40 : vector<8xf32> to vector<8x1xf32>
    %42 = tpu.reciprocal %41 {approx = true} : vector<8x1xf32> -> vector<8x1xf32>
    %43 = arith.mulf %41, %42 : vector<8x1xf32>
    %cst_23 = arith.constant 2.000000e+00 : f32
    %44 = vector.broadcast %cst_23 : f32 to vector<8x1xf32>
    %45 = arith.subf %44, %43 : vector<8x1xf32>
    %46 = arith.mulf %42, %45 : vector<8x1xf32>
    %47 = arith.truncf %39 : vector<8x8xf32> to vector<8x8xbf16>
    %48 = arith.truncf %31 : vector<8x4xf32> to vector<8x4xbf16>
    %cst_24 = arith.constant dense<0.000000e+00> : vector<8x4xf32>
    %49 = tpu.matmul %47, %48, %cst_24 {dimension_numbers = #tpu.dot_dimension_numbers<[1], [0], [0], [1], [0, 0, 1, 1], [], []>} : vector<8x8xbf16>, vector<8x4xbf16>, vector<8x4xf32> -> vector<8x4xf32>
    %50 = vector.broadcast %46 : vector<8x1xf32> to vector<8x4xf32>
    %51 = arith.mulf %49, %50 : vector<8x4xf32>
    %c0_25 = arith.constant 0 : index
    %c4_26 = arith.constant 4 : index
    %52 = vector.load %arg7[%c0_25, %c4_26] : memref<16x32xf32, #tpu.memory_space<vmem>>, vector<8x4xf32>
    tpu.vector_store %arg7[%c0_25, %c4_26], %51 {strides = array<i32>} : memref<16x32xf32, #tpu.memory_space<vmem>>, vector<8x4xf32>,
    %c0_27 = arith.constant 0 : index
    %c8 = arith.constant 8 : index
    %53 = vector.load %arg6[%c0_27, %c8] : memref<16x96xf32, #tpu.memory_space<vmem>>, vector<8x4xf32>
    %c0_28 = arith.constant 0 : index
    %c40 = arith.constant 40 : index
    %54 = vector.load %arg6[%c0_28, %c40] : memref<16x96xf32, #tpu.memory_space<vmem>>, vector<8x4xf32>
    %c0_29 = arith.constant 0 : index
    %c72 = arith.constant 72 : index
    %55 = vector.load %arg6[%c0_29, %c72] : memref<16x96xf32, #tpu.memory_space<vmem>>, vector<8x4xf32>
    %56 = arith.truncf %53 : vector<8x4xf32> to vector<8x4xbf16>
    %57 = arith.truncf %54 : vector<8x4xf32> to vector<8x4xbf16>
    "tpu.trace_start"() <{level = 10 : i32, message = "qd,kd->qk"}> : () -> ()
    %cst_30 = arith.constant dense<0.000000e+00> : vector<8x8xf32>
    %58 = tpu.matmul %56, %57, %cst_30 {dimension_numbers = #tpu.dot_dimension_numbers<[1], [1], [0], [0], [0, 0, 1, 0], [], []>} : vector<8x4xbf16>, vector<8x4xbf16>, vector<8x8xf32> -> vector<8x8xf32>
    "tpu.trace_stop"() : () -> ()
    %cst_31 = arith.constant dense<0xFF800000> : vector<8xf32>
    %59 = vector.multi_reduction <maximumf>, %58, %cst_31 [1] : vector<8x8xf32> to vector<8xf32>
    %60 = vector.shape_cast %59 : vector<8xf32> to vector<8x1xf32>
    %61 = vector.broadcast %60 : vector<8x1xf32> to vector<8x8xf32>
    %62 = arith.subf %58, %61 : vector<8x8xf32>
    %63 = math.exp %62 : vector<8x8xf32>
    %cst_32 = arith.constant dense<0.000000e+00> : vector<8xf32>
    %64 = vector.multi_reduction <add>, %63, %cst_32 [1] : vector<8x8xf32> to vector<8xf32>
    %65 = vector.shape_cast %64 : vector<8xf32> to vector<8x1xf32>
    %66 = tpu.reciprocal %65 {approx = true} : vector<8x1xf32> -> vector<8x1xf32>
    %67 = arith.mulf %65, %66 : vector<8x1xf32>
    %cst_33 = arith.constant 2.000000e+00 : f32
    %68 = vector.broadcast %cst_33 : f32 to vector<8x1xf32>
    %69 = arith.subf %68, %67 : vector<8x1xf32>
    %70 = arith.mulf %66, %69 : vector<8x1xf32>
    %71 = arith.truncf %63 : vector<8x8xf32> to vector<8x8xbf16>
    %72 = arith.truncf %55 : vector<8x4xf32> to vector<8x4xbf16>
    %cst_34 = arith.constant dense<0.000000e+00> : vector<8x4xf32>
    %73 = tpu.matmul %71, %72, %cst_34 {dimension_numbers = #tpu.dot_dimension_numbers<[1], [0], [0], [1], [0, 0, 1, 1], [], []>} : vector<8x8xbf16>, vector<8x4xbf16>, vector<8x4xf32> -> vector<8x4xf32>
    %74 = vector.broadcast %70 : vector<8x1xf32> to vector<8x4xf32>
    %75 = arith.mulf %73, %74 : vector<8x4xf32>
    %c0_35 = arith.constant 0 : index
    %c8_36 = arith.constant 8 : index
    %76 = vector.load %arg7[%c0_35, %c8_36] : memref<16x32xf32, #tpu.memory_space<vmem>>, vector<8x4xf32>
    tpu.vector_store %arg7[%c0_35, %c8_36], %75 {strides = array<i32>} : memref<16x32xf32, #tpu.memory_space<vmem>>, vector<8x4xf32>,
    %c0_37 = arith.constant 0 : index
    %c12 = arith.constant 12 : index
    %77 = vector.load %arg6[%c0_37, %c12] : memref<16x96xf32, #tpu.memory_space<vmem>>, vector<8x4xf32>
    %c0_38 = arith.constant 0 : index
    %c44 = arith.constant 44 : index
    %78 = vector.load %arg6[%c0_38, %c44] : memref<16x96xf32, #tpu.memory_space<vmem>>, vector<8x4xf32>
    %c0_39 = arith.constant 0 : index
    %c76 = arith.constant 76 : index
    %79 = vector.load %arg6[%c0_39, %c76] : memref<16x96xf32, #tpu.memory_space<vmem>>, vector<8x4xf32>
    %80 = arith.truncf %77 : vector<8x4xf32> to vector<8x4xbf16>
    %81 = arith.truncf %78 : vector<8x4xf32> to vector<8x4xbf16>
    "tpu.trace_start"() <{level = 10 : i32, message = "qd,kd->qk"}> : () -> ()
    %cst_40 = arith.constant dense<0.000000e+00> : vector<8x8xf32>
    %82 = tpu.matmul %80, %81, %cst_40 {dimension_numbers = #tpu.dot_dimension_numbers<[1], [1], [0], [0], [0, 0, 1, 0], [], []>} : vector<8x4xbf16>, vector<8x4xbf16>, vector<8x8xf32> -> vector<8x8xf32>
    "tpu.trace_stop"() : () -> ()
    %cst_41 = arith.constant dense<0xFF800000> : vector<8xf32>
    %83 = vector.multi_reduction <maximumf>, %82, %cst_41 [1] : vector<8x8xf32> to vector<8xf32>
    %84 = vector.shape_cast %83 : vector<8xf32> to vector<8x1xf32>
    %85 = vector.broadcast %84 : vector<8x1xf32> to vector<8x8xf32>
    %86 = arith.subf %82, %85 : vector<8x8xf32>
    %87 = math.exp %86 : vector<8x8xf32>
    %cst_42 = arith.constant dense<0.000000e+00> : vector<8xf32>
    %88 = vector.multi_reduction <add>, %87, %cst_42 [1] : vector<8x8xf32> to vector<8xf32>
    %89 = vector.shape_cast %88 : vector<8xf32> to vector<8x1xf32>
    %90 = tpu.reciprocal %89 {approx = true} : vector<8x1xf32> -> vector<8x1xf32>
    %91 = arith.mulf %89, %90 : vector<8x1xf32>
    %cst_43 = arith.constant 2.000000e+00 : f32
    %92 = vector.broadcast %cst_43 : f32 to vector<8x1xf32>
    %93 = arith.subf %92, %91 : vector<8x1xf32>
    %94 = arith.mulf %90, %93 : vector<8x1xf32>
    %95 = arith.truncf %87 : vector<8x8xf32> to vector<8x8xbf16>
    %96 = arith.truncf %79 : vector<8x4xf32> to vector<8x4xbf16>
    %cst_44 = arith.constant dense<0.000000e+00> : vector<8x4xf32>
    %97 = tpu.matmul %95, %96, %cst_44 {dimension_numbers = #tpu.dot_dimension_numbers<[1], [0], [0], [1], [0, 0, 1, 1], [], []>} : vector<8x8xbf16>, vector<8x4xbf16>, vector<8x4xf32> -> vector<8x4xf32>
    %98 = vector.broadcast %94 : vector<8x1xf32> to vector<8x4xf32>
    %99 = arith.mulf %97, %98 : vector<8x4xf32>
    %c0_45 = arith.constant 0 : index
    %c12_46 = arith.constant 12 : index
    %100 = vector.load %arg7[%c0_45, %c12_46] : memref<16x32xf32, #tpu.memory_space<vmem>>, vector<8x4xf32>
    tpu.vector_store %arg7[%c0_45, %c12_46], %99 {strides = array<i32>} : memref<16x32xf32, #tpu.memory_space<vmem>>, vector<8x4xf32>,
    %c0_47 = arith.constant 0 : index
    %c16 = arith.constant 16 : index
    %101 = vector.load %arg6[%c0_47, %c16] : memref<16x96xf32, #tpu.memory_space<vmem>>, vector<8x4xf32>
    %c0_48 = arith.constant 0 : index
    %c48 = arith.constant 48 : index
    %102 = vector.load %arg6[%c0_48, %c48] : memref<16x96xf32, #tpu.memory_space<vmem>>, vector<8x4xf32>
    %c0_49 = arith.constant 0 : index
    %c80 = arith.constant 80 : index
    %103 = vector.load %arg6[%c0_49, %c80] : memref<16x96xf32, #tpu.memory_space<vmem>>, vector<8x4xf32>
    %104 = arith.truncf %101 : vector<8x4xf32> to vector<8x4xbf16>
    %105 = arith.truncf %102 : vector<8x4xf32> to vector<8x4xbf16>
    "tpu.trace_start"() <{level = 10 : i32, message = "qd,kd->qk"}> : () -> ()
    %cst_50 = arith.constant dense<0.000000e+00> : vector<8x8xf32>
    %106 = tpu.matmul %104, %105, %cst_50 {dimension_numbers = #tpu.dot_dimension_numbers<[1], [1], [0], [0], [0, 0, 1, 0], [], []>} : vector<8x4xbf16>, vector<8x4xbf16>, vector<8x8xf32> -> vector<8x8xf32>
    "tpu.trace_stop"() : () -> ()
    %cst_51 = arith.constant dense<0xFF800000> : vector<8xf32>
    %107 = vector.multi_reduction <maximumf>, %106, %cst_51 [1] : vector<8x8xf32> to vector<8xf32>
    %108 = vector.shape_cast %107 : vector<8xf32> to vector<8x1xf32>
    %109 = vector.broadcast %108 : vector<8x1xf32> to vector<8x8xf32>
    %110 = arith.subf %106, %109 : vector<8x8xf32>
    %111 = math.exp %110 : vector<8x8xf32>
    %cst_52 = arith.constant dense<0.000000e+00> : vector<8xf32>
    %112 = vector.multi_reduction <add>, %111, %cst_52 [1] : vector<8x8xf32> to vector<8xf32>
    %113 = vector.shape_cast %112 : vector<8xf32> to vector<8x1xf32>
    %114 = tpu.reciprocal %113 {approx = true} : vector<8x1xf32> -> vector<8x1xf32>
    %115 = arith.mulf %113, %114 : vector<8x1xf32>
    %cst_53 = arith.constant 2.000000e+00 : f32
    %116 = vector.broadcast %cst_53 : f32 to vector<8x1xf32>
    %117 = arith.subf %116, %115 : vector<8x1xf32>
    %118 = arith.mulf %114, %117 : vector<8x1xf32>
    %119 = arith.truncf %111 : vector<8x8xf32> to vector<8x8xbf16>
    %120 = arith.truncf %103 : vector<8x4xf32> to vector<8x4xbf16>
    %cst_54 = arith.constant dense<0.000000e+00> : vector<8x4xf32>
    %121 = tpu.matmul %119, %120, %cst_54 {dimension_numbers = #tpu.dot_dimension_numbers<[1], [0], [0], [1], [0, 0, 1, 1], [], []>} : vector<8x8xbf16>, vector<8x4xbf16>, vector<8x4xf32> -> vector<8x4xf32>
    %122 = vector.broadcast %118 : vector<8x1xf32> to vector<8x4xf32>
    %123 = arith.mulf %121, %122 : vector<8x4xf32>
    %c0_55 = arith.constant 0 : index
    %c16_56 = arith.constant 16 : index
    %124 = vector.load %arg7[%c0_55, %c16_56] : memref<16x32xf32, #tpu.memory_space<vmem>>, vector<8x4xf32>
    tpu.vector_store %arg7[%c0_55, %c16_56], %123 {strides = array<i32>} : memref<16x32xf32, #tpu.memory_space<vmem>>, vector<8x4xf32>,
    %c0_57 = arith.constant 0 : index
    %c20 = arith.constant 20 : index
    %125 = vector.load %arg6[%c0_57, %c20] : memref<16x96xf32, #tpu.memory_space<vmem>>, vector<8x4xf32>
    %c0_58 = arith.constant 0 : index
    %c52 = arith.constant 52 : index
    %126 = vector.load %arg6[%c0_58, %c52] : memref<16x96xf32, #tpu.memory_space<vmem>>, vector<8x4xf32>
    %c0_59 = arith.constant 0 : index
    %c84 = arith.constant 84 : index
    %127 = vector.load %arg6[%c0_59, %c84] : memref<16x96xf32, #tpu.memory_space<vmem>>, vector<8x4xf32>
    %128 = arith.truncf %125 : vector<8x4xf32> to vector<8x4xbf16>
    %129 = arith.truncf %126 : vector<8x4xf32> to vector<8x4xbf16>
    "tpu.trace_start"() <{level = 10 : i32, message = "qd,kd->qk"}> : () -> ()
    %cst_60 = arith.constant dense<0.000000e+00> : vector<8x8xf32>
    %130 = tpu.matmul %128, %129, %cst_60 {dimension_numbers = #tpu.dot_dimension_numbers<[1], [1], [0], [0], [0, 0, 1, 0], [], []>} : vector<8x4xbf16>, vector<8x4xbf16>, vector<8x8xf32> -> vector<8x8xf32>
    "tpu.trace_stop"() : () -> ()
    %cst_61 = arith.constant dense<0xFF800000> : vector<8xf32>
    %131 = vector.multi_reduction <maximumf>, %130, %cst_61 [1] : vector<8x8xf32> to vector<8xf32>
    %132 = vector.shape_cast %131 : vector<8xf32> to vector<8x1xf32>
    %133 = vector.broadcast %132 : vector<8x1xf32> to vector<8x8xf32>
    %134 = arith.subf %130, %133 : vector<8x8xf32>
    %135 = math.exp %134 : vector<8x8xf32>
    %cst_62 = arith.constant dense<0.000000e+00> : vector<8xf32>
    %136 = vector.multi_reduction <add>, %135, %cst_62 [1] : vector<8x8xf32> to vector<8xf32>
    %137 = vector.shape_cast %136 : vector<8xf32> to vector<8x1xf32>
    %138 = tpu.reciprocal %137 {approx = true} : vector<8x1xf32> -> vector<8x1xf32>
    %139 = arith.mulf %137, %138 : vector<8x1xf32>
    %cst_63 = arith.constant 2.000000e+00 : f32
    %140 = vector.broadcast %cst_63 : f32 to vector<8x1xf32>
    %141 = arith.subf %140, %139 : vector<8x1xf32>
    %142 = arith.mulf %138, %141 : vector<8x1xf32>
    %143 = arith.truncf %135 : vector<8x8xf32> to vector<8x8xbf16>
    %144 = arith.truncf %127 : vector<8x4xf32> to vector<8x4xbf16>
    %cst_64 = arith.constant dense<0.000000e+00> : vector<8x4xf32>
    %145 = tpu.matmul %143, %144, %cst_64 {dimension_numbers = #tpu.dot_dimension_numbers<[1], [0], [0], [1], [0, 0, 1, 1], [], []>} : vector<8x8xbf16>, vector<8x4xbf16>, vector<8x4xf32> -> vector<8x4xf32>
    %146 = vector.broadcast %142 : vector<8x1xf32> to vector<8x4xf32>
    %147 = arith.mulf %145, %146 : vector<8x4xf32>
    %c0_65 = arith.constant 0 : index
    %c20_66 = arith.constant 20 : index
    %148 = vector.load %arg7[%c0_65, %c20_66] : memref<16x32xf32, #tpu.memory_space<vmem>>, vector<8x4xf32>
    tpu.vector_store %arg7[%c0_65, %c20_66], %147 {strides = array<i32>} : memref<16x32xf32, #tpu.memory_space<vmem>>, vector<8x4xf32>,
    %c0_67 = arith.constant 0 : index
    %c24 = arith.constant 24 : index
    %149 = vector.load %arg6[%c0_67, %c24] : memref<16x96xf32, #tpu.memory_space<vmem>>, vector<8x4xf32>
    %c0_68 = arith.constant 0 : index
    %c56 = arith.constant 56 : index
    %150 = vector.load %arg6[%c0_68, %c56] : memref<16x96xf32, #tpu.memory_space<vmem>>, vector<8x4xf32>
    %c0_69 = arith.constant 0 : index
    %c88 = arith.constant 88 : index
    %151 = vector.load %arg6[%c0_69, %c88] : memref<16x96xf32, #tpu.memory_space<vmem>>, vector<8x4xf32>
    %152 = arith.truncf %149 : vector<8x4xf32> to vector<8x4xbf16>
    %153 = arith.truncf %150 : vector<8x4xf32> to vector<8x4xbf16>
    "tpu.trace_start"() <{level = 10 : i32, message = "qd,kd->qk"}> : () -> ()
    %cst_70 = arith.constant dense<0.000000e+00> : vector<8x8xf32>
    %154 = tpu.matmul %152, %153, %cst_70 {dimension_numbers = #tpu.dot_dimension_numbers<[1], [1], [0], [0], [0, 0, 1, 0], [], []>} : vector<8x4xbf16>, vector<8x4xbf16>, vector<8x8xf32> -> vector<8x8xf32>
    "tpu.trace_stop"() : () -> ()
    %cst_71 = arith.constant dense<0xFF800000> : vector<8xf32>
    %155 = vector.multi_reduction <maximumf>, %154, %cst_71 [1] : vector<8x8xf32> to vector<8xf32>
    %156 = vector.shape_cast %155 : vector<8xf32> to vector<8x1xf32>
    %157 = vector.broadcast %156 : vector<8x1xf32> to vector<8x8xf32>
    %158 = arith.subf %154, %157 : vector<8x8xf32>
    %159 = math.exp %158 : vector<8x8xf32>
    %cst_72 = arith.constant dense<0.000000e+00> : vector<8xf32>
    %160 = vector.multi_reduction <add>, %159, %cst_72 [1] : vector<8x8xf32> to vector<8xf32>
    %161 = vector.shape_cast %160 : vector<8xf32> to vector<8x1xf32>
    %162 = tpu.reciprocal %161 {approx = true} : vector<8x1xf32> -> vector<8x1xf32>
    %163 = arith.mulf %161, %162 : vector<8x1xf32>
    %cst_73 = arith.constant 2.000000e+00 : f32
    %164 = vector.broadcast %cst_73 : f32 to vector<8x1xf32>
    %165 = arith.subf %164, %163 : vector<8x1xf32>
    %166 = arith.mulf %162, %165 : vector<8x1xf32>
    %167 = arith.truncf %159 : vector<8x8xf32> to vector<8x8xbf16>
    %168 = arith.truncf %151 : vector<8x4xf32> to vector<8x4xbf16>
    %cst_74 = arith.constant dense<0.000000e+00> : vector<8x4xf32>
    %169 = tpu.matmul %167, %168, %cst_74 {dimension_numbers = #tpu.dot_dimension_numbers<[1], [0], [0], [1], [0, 0, 1, 1], [], []>} : vector<8x8xbf16>, vector<8x4xbf16>, vector<8x4xf32> -> vector<8x4xf32>
    %170 = vector.broadcast %166 : vector<8x1xf32> to vector<8x4xf32>
    %171 = arith.mulf %169, %170 : vector<8x4xf32>
    %c0_75 = arith.constant 0 : index
    %c24_76 = arith.constant 24 : index
    %172 = vector.load %arg7[%c0_75, %c24_76] : memref<16x32xf32, #tpu.memory_space<vmem>>, vector<8x4xf32>
    tpu.vector_store %arg7[%c0_75, %c24_76], %171 {strides = array<i32>} : memref<16x32xf32, #tpu.memory_space<vmem>>, vector<8x4xf32>,
    %c0_77 = arith.constant 0 : index
    %c28 = arith.constant 28 : index
    %173 = vector.load %arg6[%c0_77, %c28] : memref<16x96xf32, #tpu.memory_space<vmem>>, vector<8x4xf32>
    %c0_78 = arith.constant 0 : index
    %c60 = arith.constant 60 : index
    %174 = vector.load %arg6[%c0_78, %c60] : memref<16x96xf32, #tpu.memory_space<vmem>>, vector<8x4xf32>
    %c0_79 = arith.constant 0 : index
    %c92 = arith.constant 92 : index
    %175 = vector.load %arg6[%c0_79, %c92] : memref<16x96xf32, #tpu.memory_space<vmem>>, vector<8x4xf32>
    %176 = arith.truncf %173 : vector<8x4xf32> to vector<8x4xbf16>
    %177 = arith.truncf %174 : vector<8x4xf32> to vector<8x4xbf16>
    "tpu.trace_start"() <{level = 10 : i32, message = "qd,kd->qk"}> : () -> ()
    %cst_80 = arith.constant dense<0.000000e+00> : vector<8x8xf32>
    %178 = tpu.matmul %176, %177, %cst_80 {dimension_numbers = #tpu.dot_dimension_numbers<[1], [1], [0], [0], [0, 0, 1, 0], [], []>} : vector<8x4xbf16>, vector<8x4xbf16>, vector<8x8xf32> -> vector<8x8xf32>
    "tpu.trace_stop"() : () -> ()
    %cst_81 = arith.constant dense<0xFF800000> : vector<8xf32>
    %179 = vector.multi_reduction <maximumf>, %178, %cst_81 [1] : vector<8x8xf32> to vector<8xf32>
    %180 = vector.shape_cast %179 : vector<8xf32> to vector<8x1xf32>
    %181 = vector.broadcast %180 : vector<8x1xf32> to vector<8x8xf32>
    %182 = arith.subf %178, %181 : vector<8x8xf32>
    %183 = math.exp %182 : vector<8x8xf32>
    %cst_82 = arith.constant dense<0.000000e+00> : vector<8xf32>
    %184 = vector.multi_reduction <add>, %183, %cst_82 [1] : vector<8x8xf32> to vector<8xf32>
    %185 = vector.shape_cast %184 : vector<8xf32> to vector<8x1xf32>
    %186 = tpu.reciprocal %185 {approx = true} : vector<8x1xf32> -> vector<8x1xf32>
    %187 = arith.mulf %185, %186 : vector<8x1xf32>
    %cst_83 = arith.constant 2.000000e+00 : f32
    %188 = vector.broadcast %cst_83 : f32 to vector<8x1xf32>
    %189 = arith.subf %188, %187 : vector<8x1xf32>
    %190 = arith.mulf %186, %189 : vector<8x1xf32>
    %191 = arith.truncf %183 : vector<8x8xf32> to vector<8x8xbf16>
    %192 = arith.truncf %175 : vector<8x4xf32> to vector<8x4xbf16>
    %cst_84 = arith.constant dense<0.000000e+00> : vector<8x4xf32>
    %193 = tpu.matmul %191, %192, %cst_84 {dimension_numbers = #tpu.dot_dimension_numbers<[1], [0], [0], [1], [0, 0, 1, 1], [], []>} : vector<8x8xbf16>, vector<8x4xbf16>, vector<8x4xf32> -> vector<8x4xf32>
    %194 = vector.broadcast %190 : vector<8x1xf32> to vector<8x4xf32>
    %195 = arith.mulf %193, %194 : vector<8x4xf32>
    %c0_85 = arith.constant 0 : index
    %c28_86 = arith.constant 28 : index
    %196 = vector.load %arg7[%c0_85, %c28_86] : memref<16x32xf32, #tpu.memory_space<vmem>>, vector<8x4xf32>
    tpu.vector_store %arg7[%c0_85, %c28_86], %195 {strides = array<i32>} : memref<16x32xf32, #tpu.memory_space<vmem>>, vector<8x4xf32>,
    %c8_87 = arith.constant 8 : index
    %c0_88 = arith.constant 0 : index
    %197 = vector.load %arg6[%c8_87, %c0_88] : memref<16x96xf32, #tpu.memory_space<vmem>>, vector<8x4xf32>
    %c8_89 = arith.constant 8 : index
    %c32_90 = arith.constant 32 : index
    %198 = vector.load %arg6[%c8_89, %c32_90] : memref<16x96xf32, #tpu.memory_space<vmem>>, vector<8x4xf32>
    %c8_91 = arith.constant 8 : index
    %c64_92 = arith.constant 64 : index
    %199 = vector.load %arg6[%c8_91, %c64_92] : memref<16x96xf32, #tpu.memory_space<vmem>>, vector<8x4xf32>
    %200 = arith.truncf %197 : vector<8x4xf32> to vector<8x4xbf16>
    %201 = arith.truncf %198 : vector<8x4xf32> to vector<8x4xbf16>
    "tpu.trace_start"() <{level = 10 : i32, message = "qd,kd->qk"}> : () -> ()
    %cst_93 = arith.constant dense<0.000000e+00> : vector<8x8xf32>
    %202 = tpu.matmul %200, %201, %cst_93 {dimension_numbers = #tpu.dot_dimension_numbers<[1], [1], [0], [0], [0, 0, 1, 0], [], []>} : vector<8x4xbf16>, vector<8x4xbf16>, vector<8x8xf32> -> vector<8x8xf32>
    "tpu.trace_stop"() : () -> ()
    %cst_94 = arith.constant dense<0xFF800000> : vector<8xf32>
    %203 = vector.multi_reduction <maximumf>, %202, %cst_94 [1] : vector<8x8xf32> to vector<8xf32>
    %204 = vector.shape_cast %203 : vector<8xf32> to vector<8x1xf32>
    %205 = vector.broadcast %204 : vector<8x1xf32> to vector<8x8xf32>
    %206 = arith.subf %202, %205 : vector<8x8xf32>
    %207 = math.exp %206 : vector<8x8xf32>
    %cst_95 = arith.constant dense<0.000000e+00> : vector<8xf32>
    %208 = vector.multi_reduction <add>, %207, %cst_95 [1] : vector<8x8xf32> to vector<8xf32>
    %209 = vector.shape_cast %208 : vector<8xf32> to vector<8x1xf32>
    %210 = tpu.reciprocal %209 {approx = true} : vector<8x1xf32> -> vector<8x1xf32>
    %211 = arith.mulf %209, %210 : vector<8x1xf32>
    %cst_96 = arith.constant 2.000000e+00 : f32
    %212 = vector.broadcast %cst_96 : f32 to vector<8x1xf32>
    %213 = arith.subf %212, %211 : vector<8x1xf32>
    %214 = arith.mulf %210, %213 : vector<8x1xf32>
    %215 = arith.truncf %207 : vector<8x8xf32> to vector<8x8xbf16>
    %216 = arith.truncf %199 : vector<8x4xf32> to vector<8x4xbf16>
    %cst_97 = arith.constant dense<0.000000e+00> : vector<8x4xf32>
    %217 = tpu.matmul %215, %216, %cst_97 {dimension_numbers = #tpu.dot_dimension_numbers<[1], [0], [0], [1], [0, 0, 1, 1], [], []>} : vector<8x8xbf16>, vector<8x4xbf16>, vector<8x4xf32> -> vector<8x4xf32>
    %218 = vector.broadcast %214 : vector<8x1xf32> to vector<8x4xf32>
    %219 = arith.mulf %217, %218 : vector<8x4xf32>
    %c8_98 = arith.constant 8 : index
    %c0_99 = arith.constant 0 : index
    %220 = vector.load %arg7[%c8_98, %c0_99] : memref<16x32xf32, #tpu.memory_space<vmem>>, vector<8x4xf32>
    tpu.vector_store %arg7[%c8_98, %c0_99], %219 {strides = array<i32>} : memref<16x32xf32, #tpu.memory_space<vmem>>, vector<8x4xf32>,
    %c8_100 = arith.constant 8 : index
    %c4_101 = arith.constant 4 : index
    %221 = vector.load %arg6[%c8_100, %c4_101] : memref<16x96xf32, #tpu.memory_space<vmem>>, vector<8x4xf32>
    %c8_102 = arith.constant 8 : index
    %c36_103 = arith.constant 36 : index
    %222 = vector.load %arg6[%c8_102, %c36_103] : memref<16x96xf32, #tpu.memory_space<vmem>>, vector<8x4xf32>
    %c8_104 = arith.constant 8 : index
    %c68_105 = arith.constant 68 : index
    %223 = vector.load %arg6[%c8_104, %c68_105] : memref<16x96xf32, #tpu.memory_space<vmem>>, vector<8x4xf32>
    %224 = arith.truncf %221 : vector<8x4xf32> to vector<8x4xbf16>
    %225 = arith.truncf %222 : vector<8x4xf32> to vector<8x4xbf16>
    "tpu.trace_start"() <{level = 10 : i32, message = "qd,kd->qk"}> : () -> ()
    %cst_106 = arith.constant dense<0.000000e+00> : vector<8x8xf32>
    %226 = tpu.matmul %224, %225, %cst_106 {dimension_numbers = #tpu.dot_dimension_numbers<[1], [1], [0], [0], [0, 0, 1, 0], [], []>} : vector<8x4xbf16>, vector<8x4xbf16>, vector<8x8xf32> -> vector<8x8xf32>
    "tpu.trace_stop"() : () -> ()
    %cst_107 = arith.constant dense<0xFF800000> : vector<8xf32>
    %227 = vector.multi_reduction <maximumf>, %226, %cst_107 [1] : vector<8x8xf32> to vector<8xf32>
    %228 = vector.shape_cast %227 : vector<8xf32> to vector<8x1xf32>
    %229 = vector.broadcast %228 : vector<8x1xf32> to vector<8x8xf32>
    %230 = arith.subf %226, %229 : vector<8x8xf32>
    %231 = math.exp %230 : vector<8x8xf32>
    %cst_108 = arith.constant dense<0.000000e+00> : vector<8xf32>
    %232 = vector.multi_reduction <add>, %231, %cst_108 [1] : vector<8x8xf32> to vector<8xf32>
    %233 = vector.shape_cast %232 : vector<8xf32> to vector<8x1xf32>
    %234 = tpu.reciprocal %233 {approx = true} : vector<8x1xf32> -> vector<8x1xf32>
    %235 = arith.mulf %233, %234 : vector<8x1xf32>
    %cst_109 = arith.constant 2.000000e+00 : f32
    %236 = vector.broadcast %cst_109 : f32 to vector<8x1xf32>
    %237 = arith.subf %236, %235 : vector<8x1xf32>
    %238 = arith.mulf %234, %237 : vector<8x1xf32>
    %239 = arith.truncf %231 : vector<8x8xf32> to vector<8x8xbf16>
    %240 = arith.truncf %223 : vector<8x4xf32> to vector<8x4xbf16>
    %cst_110 = arith.constant dense<0.000000e+00> : vector<8x4xf32>
    %241 = tpu.matmul %239, %240, %cst_110 {dimension_numbers = #tpu.dot_dimension_numbers<[1], [0], [0], [1], [0, 0, 1, 1], [], []>} : vector<8x8xbf16>, vector<8x4xbf16>, vector<8x4xf32> -> vector<8x4xf32>
    %242 = vector.broadcast %238 : vector<8x1xf32> to vector<8x4xf32>
    %243 = arith.mulf %241, %242 : vector<8x4xf32>
    %c8_111 = arith.constant 8 : index
    %c4_112 = arith.constant 4 : index
    %244 = vector.load %arg7[%c8_111, %c4_112] : memref<16x32xf32, #tpu.memory_space<vmem>>, vector<8x4xf32>
    tpu.vector_store %arg7[%c8_111, %c4_112], %243 {strides = array<i32>} : memref<16x32xf32, #tpu.memory_space<vmem>>, vector<8x4xf32>,
    %c8_113 = arith.constant 8 : index
    %c8_114 = arith.constant 8 : index
    %245 = vector.load %arg6[%c8_113, %c8_114] : memref<16x96xf32, #tpu.memory_space<vmem>>, vector<8x4xf32>
    %c8_115 = arith.constant 8 : index
    %c40_116 = arith.constant 40 : index
    %246 = vector.load %arg6[%c8_115, %c40_116] : memref<16x96xf32, #tpu.memory_space<vmem>>, vector<8x4xf32>
    %c8_117 = arith.constant 8 : index
    %c72_118 = arith.constant 72 : index
    %247 = vector.load %arg6[%c8_117, %c72_118] : memref<16x96xf32, #tpu.memory_space<vmem>>, vector<8x4xf32>
    %248 = arith.truncf %245 : vector<8x4xf32> to vector<8x4xbf16>
    %249 = arith.truncf %246 : vector<8x4xf32> to vector<8x4xbf16>
    "tpu.trace_start"() <{level = 10 : i32, message = "qd,kd->qk"}> : () -> ()
    %cst_119 = arith.constant dense<0.000000e+00> : vector<8x8xf32>
    %250 = tpu.matmul %248, %249, %cst_119 {dimension_numbers = #tpu.dot_dimension_numbers<[1], [1], [0], [0], [0, 0, 1, 0], [], []>} : vector<8x4xbf16>, vector<8x4xbf16>, vector<8x8xf32> -> vector<8x8xf32>
    "tpu.trace_stop"() : () -> ()
    %cst_120 = arith.constant dense<0xFF800000> : vector<8xf32>
    %251 = vector.multi_reduction <maximumf>, %250, %cst_120 [1] : vector<8x8xf32> to vector<8xf32>
    %252 = vector.shape_cast %251 : vector<8xf32> to vector<8x1xf32>
    %253 = vector.broadcast %252 : vector<8x1xf32> to vector<8x8xf32>
    %254 = arith.subf %250, %253 : vector<8x8xf32>
    %255 = math.exp %254 : vector<8x8xf32>
    %cst_121 = arith.constant dense<0.000000e+00> : vector<8xf32>
    %256 = vector.multi_reduction <add>, %255, %cst_121 [1] : vector<8x8xf32> to vector<8xf32>
    %257 = vector.shape_cast %256 : vector<8xf32> to vector<8x1xf32>
    %258 = tpu.reciprocal %257 {approx = true} : vector<8x1xf32> -> vector<8x1xf32>
    %259 = arith.mulf %257, %258 : vector<8x1xf32>
    %cst_122 = arith.constant 2.000000e+00 : f32
    %260 = vector.broadcast %cst_122 : f32 to vector<8x1xf32>
    %261 = arith.subf %260, %259 : vector<8x1xf32>
    %262 = arith.mulf %258, %261 : vector<8x1xf32>
    %263 = arith.truncf %255 : vector<8x8xf32> to vector<8x8xbf16>
    %264 = arith.truncf %247 : vector<8x4xf32> to vector<8x4xbf16>
    %cst_123 = arith.constant dense<0.000000e+00> : vector<8x4xf32>
    %265 = tpu.matmul %263, %264, %cst_123 {dimension_numbers = #tpu.dot_dimension_numbers<[1], [0], [0], [1], [0, 0, 1, 1], [], []>} : vector<8x8xbf16>, vector<8x4xbf16>, vector<8x4xf32> -> vector<8x4xf32>
    %266 = vector.broadcast %262 : vector<8x1xf32> to vector<8x4xf32>
    %267 = arith.mulf %265, %266 : vector<8x4xf32>
    %c8_124 = arith.constant 8 : index
    %c8_125 = arith.constant 8 : index
    %268 = vector.load %arg7[%c8_124, %c8_125] : memref<16x32xf32, #tpu.memory_space<vmem>>, vector<8x4xf32>
    tpu.vector_store %arg7[%c8_124, %c8_125], %267 {strides = array<i32>} : memref<16x32xf32, #tpu.memory_space<vmem>>, vector<8x4xf32>,
    %c8_126 = arith.constant 8 : index
    %c12_127 = arith.constant 12 : index
    %269 = vector.load %arg6[%c8_126, %c12_127] : memref<16x96xf32, #tpu.memory_space<vmem>>, vector<8x4xf32>
    %c8_128 = arith.constant 8 : index
    %c44_129 = arith.constant 44 : index
    %270 = vector.load %arg6[%c8_128, %c44_129] : memref<16x96xf32, #tpu.memory_space<vmem>>, vector<8x4xf32>
    %c8_130 = arith.constant 8 : index
    %c76_131 = arith.constant 76 : index
    %271 = vector.load %arg6[%c8_130, %c76_131] : memref<16x96xf32, #tpu.memory_space<vmem>>, vector<8x4xf32>
    %272 = arith.truncf %269 : vector<8x4xf32> to vector<8x4xbf16>
    %273 = arith.truncf %270 : vector<8x4xf32> to vector<8x4xbf16>
    "tpu.trace_start"() <{level = 10 : i32, message = "qd,kd->qk"}> : () -> ()
    %cst_132 = arith.constant dense<0.000000e+00> : vector<8x8xf32>
    %274 = tpu.matmul %272, %273, %cst_132 {dimension_numbers = #tpu.dot_dimension_numbers<[1], [1], [0], [0], [0, 0, 1, 0], [], []>} : vector<8x4xbf16>, vector<8x4xbf16>, vector<8x8xf32> -> vector<8x8xf32>
    "tpu.trace_stop"() : () -> ()
    %cst_133 = arith.constant dense<0xFF800000> : vector<8xf32>
    %275 = vector.multi_reduction <maximumf>, %274, %cst_133 [1] : vector<8x8xf32> to vector<8xf32>
    %276 = vector.shape_cast %275 : vector<8xf32> to vector<8x1xf32>
    %277 = vector.broadcast %276 : vector<8x1xf32> to vector<8x8xf32>
    %278 = arith.subf %274, %277 : vector<8x8xf32>
    %279 = math.exp %278 : vector<8x8xf32>
    %cst_134 = arith.constant dense<0.000000e+00> : vector<8xf32>
    %280 = vector.multi_reduction <add>, %279, %cst_134 [1] : vector<8x8xf32> to vector<8xf32>
    %281 = vector.shape_cast %280 : vector<8xf32> to vector<8x1xf32>
    %282 = tpu.reciprocal %281 {approx = true} : vector<8x1xf32> -> vector<8x1xf32>
    %283 = arith.mulf %281, %282 : vector<8x1xf32>
    %cst_135 = arith.constant 2.000000e+00 : f32
    %284 = vector.broadcast %cst_135 : f32 to vector<8x1xf32>
    %285 = arith.subf %284, %283 : vector<8x1xf32>
    %286 = arith.mulf %282, %285 : vector<8x1xf32>
    %287 = arith.truncf %279 : vector<8x8xf32> to vector<8x8xbf16>
    %288 = arith.truncf %271 : vector<8x4xf32> to vector<8x4xbf16>
    %cst_136 = arith.constant dense<0.000000e+00> : vector<8x4xf32>
    %289 = tpu.matmul %287, %288, %cst_136 {dimension_numbers = #tpu.dot_dimension_numbers<[1], [0], [0], [1], [0, 0, 1, 1], [], []>} : vector<8x8xbf16>, vector<8x4xbf16>, vector<8x4xf32> -> vector<8x4xf32>
    %290 = vector.broadcast %286 : vector<8x1xf32> to vector<8x4xf32>
    %291 = arith.mulf %289, %290 : vector<8x4xf32>
    %c8_137 = arith.constant 8 : index
    %c12_138 = arith.constant 12 : index
    %292 = vector.load %arg7[%c8_137, %c12_138] : memref<16x32xf32, #tpu.memory_space<vmem>>, vector<8x4xf32>
    tpu.vector_store %arg7[%c8_137, %c12_138], %291 {strides = array<i32>} : memref<16x32xf32, #tpu.memory_space<vmem>>, vector<8x4xf32>,
    %c8_139 = arith.constant 8 : index
    %c16_140 = arith.constant 16 : index
    %293 = vector.load %arg6[%c8_139, %c16_140] : memref<16x96xf32, #tpu.memory_space<vmem>>, vector<8x4xf32>
    %c8_141 = arith.constant 8 : index
    %c48_142 = arith.constant 48 : index
    %294 = vector.load %arg6[%c8_141, %c48_142] : memref<16x96xf32, #tpu.memory_space<vmem>>, vector<8x4xf32>
    %c8_143 = arith.constant 8 : index
    %c80_144 = arith.constant 80 : index
    %295 = vector.load %arg6[%c8_143, %c80_144] : memref<16x96xf32, #tpu.memory_space<vmem>>, vector<8x4xf32>
    %296 = arith.truncf %293 : vector<8x4xf32> to vector<8x4xbf16>
    %297 = arith.truncf %294 : vector<8x4xf32> to vector<8x4xbf16>
    "tpu.trace_start"() <{level = 10 : i32, message = "qd,kd->qk"}> : () -> ()
    %cst_145 = arith.constant dense<0.000000e+00> : vector<8x8xf32>
    %298 = tpu.matmul %296, %297, %cst_145 {dimension_numbers = #tpu.dot_dimension_numbers<[1], [1], [0], [0], [0, 0, 1, 0], [], []>} : vector<8x4xbf16>, vector<8x4xbf16>, vector<8x8xf32> -> vector<8x8xf32>
    "tpu.trace_stop"() : () -> ()
    %cst_146 = arith.constant dense<0xFF800000> : vector<8xf32>
    %299 = vector.multi_reduction <maximumf>, %298, %cst_146 [1] : vector<8x8xf32> to vector<8xf32>
    %300 = vector.shape_cast %299 : vector<8xf32> to vector<8x1xf32>
    %301 = vector.broadcast %300 : vector<8x1xf32> to vector<8x8xf32>
    %302 = arith.subf %298, %301 : vector<8x8xf32>
    %303 = math.exp %302 : vector<8x8xf32>
    %cst_147 = arith.constant dense<0.000000e+00> : vector<8xf32>
    %304 = vector.multi_reduction <add>, %303, %cst_147 [1] : vector<8x8xf32> to vector<8xf32>
    %305 = vector.shape_cast %304 : vector<8xf32> to vector<8x1xf32>
    %306 = tpu.reciprocal %305 {approx = true} : vector<8x1xf32> -> vector<8x1xf32>
    %307 = arith.mulf %305, %306 : vector<8x1xf32>
    %cst_148 = arith.constant 2.000000e+00 : f32
    %308 = vector.broadcast %cst_148 : f32 to vector<8x1xf32>
    %309 = arith.subf %308, %307 : vector<8x1xf32>
    %310 = arith.mulf %306, %309 : vector<8x1xf32>
    %311 = arith.truncf %303 : vector<8x8xf32> to vector<8x8xbf16>
    %312 = arith.truncf %295 : vector<8x4xf32> to vector<8x4xbf16>
    %cst_149 = arith.constant dense<0.000000e+00> : vector<8x4xf32>
    %313 = tpu.matmul %311, %312, %cst_149 {dimension_numbers = #tpu.dot_dimension_numbers<[1], [0], [0], [1], [0, 0, 1, 1], [], []>} : vector<8x8xbf16>, vector<8x4xbf16>, vector<8x4xf32> -> vector<8x4xf32>
    %314 = vector.broadcast %310 : vector<8x1xf32> to vector<8x4xf32>
    %315 = arith.mulf %313, %314 : vector<8x4xf32>
    %c8_150 = arith.constant 8 : index
    %c16_151 = arith.constant 16 : index
    %316 = vector.load %arg7[%c8_150, %c16_151] : memref<16x32xf32, #tpu.memory_space<vmem>>, vector<8x4xf32>
    tpu.vector_store %arg7[%c8_150, %c16_151], %315 {strides = array<i32>} : memref<16x32xf32, #tpu.memory_space<vmem>>, vector<8x4xf32>,
    %c8_152 = arith.constant 8 : index
    %c20_153 = arith.constant 20 : index
    %317 = vector.load %arg6[%c8_152, %c20_153] : memref<16x96xf32, #tpu.memory_space<vmem>>, vector<8x4xf32>
    %c8_154 = arith.constant 8 : index
    %c52_155 = arith.constant 52 : index
    %318 = vector.load %arg6[%c8_154, %c52_155] : memref<16x96xf32, #tpu.memory_space<vmem>>, vector<8x4xf32>
    %c8_156 = arith.constant 8 : index
    %c84_157 = arith.constant 84 : index
    %319 = vector.load %arg6[%c8_156, %c84_157] : memref<16x96xf32, #tpu.memory_space<vmem>>, vector<8x4xf32>
    %320 = arith.truncf %317 : vector<8x4xf32> to vector<8x4xbf16>
    %321 = arith.truncf %318 : vector<8x4xf32> to vector<8x4xbf16>
    "tpu.trace_start"() <{level = 10 : i32, message = "qd,kd->qk"}> : () -> ()
    %cst_158 = arith.constant dense<0.000000e+00> : vector<8x8xf32>
    %322 = tpu.matmul %320, %321, %cst_158 {dimension_numbers = #tpu.dot_dimension_numbers<[1], [1], [0], [0], [0, 0, 1, 0], [], []>} : vector<8x4xbf16>, vector<8x4xbf16>, vector<8x8xf32> -> vector<8x8xf32>
    "tpu.trace_stop"() : () -> ()
    %cst_159 = arith.constant dense<0xFF800000> : vector<8xf32>
    %323 = vector.multi_reduction <maximumf>, %322, %cst_159 [1] : vector<8x8xf32> to vector<8xf32>
    %324 = vector.shape_cast %323 : vector<8xf32> to vector<8x1xf32>
    %325 = vector.broadcast %324 : vector<8x1xf32> to vector<8x8xf32>
    %326 = arith.subf %322, %325 : vector<8x8xf32>
    %327 = math.exp %326 : vector<8x8xf32>
    %cst_160 = arith.constant dense<0.000000e+00> : vector<8xf32>
    %328 = vector.multi_reduction <add>, %327, %cst_160 [1] : vector<8x8xf32> to vector<8xf32>
    %329 = vector.shape_cast %328 : vector<8xf32> to vector<8x1xf32>
    %330 = tpu.reciprocal %329 {approx = true} : vector<8x1xf32> -> vector<8x1xf32>
    %331 = arith.mulf %329, %330 : vector<8x1xf32>
    %cst_161 = arith.constant 2.000000e+00 : f32
    %332 = vector.broadcast %cst_161 : f32 to vector<8x1xf32>
    %333 = arith.subf %332, %331 : vector<8x1xf32>
    %334 = arith.mulf %330, %333 : vector<8x1xf32>
    %335 = arith.truncf %327 : vector<8x8xf32> to vector<8x8xbf16>
    %336 = arith.truncf %319 : vector<8x4xf32> to vector<8x4xbf16>
    %cst_162 = arith.constant dense<0.000000e+00> : vector<8x4xf32>
    %337 = tpu.matmul %335, %336, %cst_162 {dimension_numbers = #tpu.dot_dimension_numbers<[1], [0], [0], [1], [0, 0, 1, 1], [], []>} : vector<8x8xbf16>, vector<8x4xbf16>, vector<8x4xf32> -> vector<8x4xf32>
    %338 = vector.broadcast %334 : vector<8x1xf32> to vector<8x4xf32>
    %339 = arith.mulf %337, %338 : vector<8x4xf32>
    %c8_163 = arith.constant 8 : index
    %c20_164 = arith.constant 20 : index
    %340 = vector.load %arg7[%c8_163, %c20_164] : memref<16x32xf32, #tpu.memory_space<vmem>>, vector<8x4xf32>
    tpu.vector_store %arg7[%c8_163, %c20_164], %339 {strides = array<i32>} : memref<16x32xf32, #tpu.memory_space<vmem>>, vector<8x4xf32>,
    %c8_165 = arith.constant 8 : index
    %c24_166 = arith.constant 24 : index
    %341 = vector.load %arg6[%c8_165, %c24_166] : memref<16x96xf32, #tpu.memory_space<vmem>>, vector<8x4xf32>
    %c8_167 = arith.constant 8 : index
    %c56_168 = arith.constant 56 : index
    %342 = vector.load %arg6[%c8_167, %c56_168] : memref<16x96xf32, #tpu.memory_space<vmem>>, vector<8x4xf32>
    %c8_169 = arith.constant 8 : index
    %c88_170 = arith.constant 88 : index
    %343 = vector.load %arg6[%c8_169, %c88_170] : memref<16x96xf32, #tpu.memory_space<vmem>>, vector<8x4xf32>
    %344 = arith.truncf %341 : vector<8x4xf32> to vector<8x4xbf16>
    %345 = arith.truncf %342 : vector<8x4xf32> to vector<8x4xbf16>
    "tpu.trace_start"() <{level = 10 : i32, message = "qd,kd->qk"}> : () -> ()
    %cst_171 = arith.constant dense<0.000000e+00> : vector<8x8xf32>
    %346 = tpu.matmul %344, %345, %cst_171 {dimension_numbers = #tpu.dot_dimension_numbers<[1], [1], [0], [0], [0, 0, 1, 0], [], []>} : vector<8x4xbf16>, vector<8x4xbf16>, vector<8x8xf32> -> vector<8x8xf32>
    "tpu.trace_stop"() : () -> ()
    %cst_172 = arith.constant dense<0xFF800000> : vector<8xf32>
    %347 = vector.multi_reduction <maximumf>, %346, %cst_172 [1] : vector<8x8xf32> to vector<8xf32>
    %348 = vector.shape_cast %347 : vector<8xf32> to vector<8x1xf32>
    %349 = vector.broadcast %348 : vector<8x1xf32> to vector<8x8xf32>
    %350 = arith.subf %346, %349 : vector<8x8xf32>
    %351 = math.exp %350 : vector<8x8xf32>
    %cst_173 = arith.constant dense<0.000000e+00> : vector<8xf32>
    %352 = vector.multi_reduction <add>, %351, %cst_173 [1] : vector<8x8xf32> to vector<8xf32>
    %353 = vector.shape_cast %352 : vector<8xf32> to vector<8x1xf32>
    %354 = tpu.reciprocal %353 {approx = true} : vector<8x1xf32> -> vector<8x1xf32>
    %355 = arith.mulf %353, %354 : vector<8x1xf32>
    %cst_174 = arith.constant 2.000000e+00 : f32
    %356 = vector.broadcast %cst_174 : f32 to vector<8x1xf32>
    %357 = arith.subf %356, %355 : vector<8x1xf32>
    %358 = arith.mulf %354, %357 : vector<8x1xf32>
    %359 = arith.truncf %351 : vector<8x8xf32> to vector<8x8xbf16>
    %360 = arith.truncf %343 : vector<8x4xf32> to vector<8x4xbf16>
    %cst_175 = arith.constant dense<0.000000e+00> : vector<8x4xf32>
    %361 = tpu.matmul %359, %360, %cst_175 {dimension_numbers = #tpu.dot_dimension_numbers<[1], [0], [0], [1], [0, 0, 1, 1], [], []>} : vector<8x8xbf16>, vector<8x4xbf16>, vector<8x4xf32> -> vector<8x4xf32>
    %362 = vector.broadcast %358 : vector<8x1xf32> to vector<8x4xf32>
    %363 = arith.mulf %361, %362 : vector<8x4xf32>
    %c8_176 = arith.constant 8 : index
    %c24_177 = arith.constant 24 : index
    %364 = vector.load %arg7[%c8_176, %c24_177] : memref<16x32xf32, #tpu.memory_space<vmem>>, vector<8x4xf32>
    tpu.vector_store %arg7[%c8_176, %c24_177], %363 {strides = array<i32>} : memref<16x32xf32, #tpu.memory_space<vmem>>, vector<8x4xf32>,
    %c8_178 = arith.constant 8 : index
    %c28_179 = arith.constant 28 : index
    %365 = vector.load %arg6[%c8_178, %c28_179] : memref<16x96xf32, #tpu.memory_space<vmem>>, vector<8x4xf32>
    %c8_180 = arith.constant 8 : index
    %c60_181 = arith.constant 60 : index
    %366 = vector.load %arg6[%c8_180, %c60_181] : memref<16x96xf32, #tpu.memory_space<vmem>>, vector<8x4xf32>
    %c8_182 = arith.constant 8 : index
    %c92_183 = arith.constant 92 : index
    %367 = vector.load %arg6[%c8_182, %c92_183] : memref<16x96xf32, #tpu.memory_space<vmem>>, vector<8x4xf32>
    %368 = arith.truncf %365 : vector<8x4xf32> to vector<8x4xbf16>
    %369 = arith.truncf %366 : vector<8x4xf32> to vector<8x4xbf16>
    "tpu.trace_start"() <{level = 10 : i32, message = "qd,kd->qk"}> : () -> ()
    %cst_184 = arith.constant dense<0.000000e+00> : vector<8x8xf32>
    %370 = tpu.matmul %368, %369, %cst_184 {dimension_numbers = #tpu.dot_dimension_numbers<[1], [1], [0], [0], [0, 0, 1, 0], [], []>} : vector<8x4xbf16>, vector<8x4xbf16>, vector<8x8xf32> -> vector<8x8xf32>
    "tpu.trace_stop"() : () -> ()
    %cst_185 = arith.constant dense<0xFF800000> : vector<8xf32>
    %371 = vector.multi_reduction <maximumf>, %370, %cst_185 [1] : vector<8x8xf32> to vector<8xf32>
    %372 = vector.shape_cast %371 : vector<8xf32> to vector<8x1xf32>
    %373 = vector.broadcast %372 : vector<8x1xf32> to vector<8x8xf32>
    %374 = arith.subf %370, %373 : vector<8x8xf32>
    %375 = math.exp %374 : vector<8x8xf32>
    %cst_186 = arith.constant dense<0.000000e+00> : vector<8xf32>
    %376 = vector.multi_reduction <add>, %375, %cst_186 [1] : vector<8x8xf32> to vector<8xf32>
    %377 = vector.shape_cast %376 : vector<8xf32> to vector<8x1xf32>
    %378 = tpu.reciprocal %377 {approx = true} : vector<8x1xf32> -> vector<8x1xf32>
    %379 = arith.mulf %377, %378 : vector<8x1xf32>
    %cst_187 = arith.constant 2.000000e+00 : f32
    %380 = vector.broadcast %cst_187 : f32 to vector<8x1xf32>
    %381 = arith.subf %380, %379 : vector<8x1xf32>
    %382 = arith.mulf %378, %381 : vector<8x1xf32>
    %383 = arith.truncf %375 : vector<8x8xf32> to vector<8x8xbf16>
    %384 = arith.truncf %367 : vector<8x4xf32> to vector<8x4xbf16>
    %cst_188 = arith.constant dense<0.000000e+00> : vector<8x4xf32>
    %385 = tpu.matmul %383, %384, %cst_188 {dimension_numbers = #tpu.dot_dimension_numbers<[1], [0], [0], [1], [0, 0, 1, 1], [], []>} : vector<8x8xbf16>, vector<8x4xbf16>, vector<8x4xf32> -> vector<8x4xf32>
    %386 = vector.broadcast %382 : vector<8x1xf32> to vector<8x4xf32>
    %387 = arith.mulf %385, %386 : vector<8x4xf32>
    %c8_189 = arith.constant 8 : index
    %c28_190 = arith.constant 28 : index
    %388 = vector.load %arg7[%c8_189, %c28_190] : memref<16x32xf32, #tpu.memory_space<vmem>>, vector<8x4xf32>
    tpu.vector_store %arg7[%c8_189, %c28_190], %387 {strides = array<i32>} : memref<16x32xf32, #tpu.memory_space<vmem>>, vector<8x4xf32>,
    %c0_191 = arith.constant 0 : index
    %c0_192 = arith.constant 0 : index
    %389 = vector.load %arg7[%c0_191, %c0_192] : memref<16x32xf32, #tpu.memory_space<vmem>>, vector<16x32xf32>
    %390 = arith.truncf %389 : vector<16x32xf32> to vector<16x32xbf16>
    %c0_193 = arith.constant 0 : index
    %c0_194 = arith.constant 0 : index
    %391 = vector.load %arg3[%c0_193, %c0_194] : memref<32x32xbf16, #tpu.memory_space<vmem>>, vector<32x32xbf16>
    %cst_195 = arith.constant dense<0.000000e+00> : vector<16x32xf32>
    %392 = tpu.matmul %390, %391, %cst_195 {dimension_numbers = #tpu.dot_dimension_numbers<[1], [0], [0], [1], [0, 0, 1, 1], [], []>} : vector<16x32xbf16>, vector<32x32xbf16>, vector<16x32xf32> -> vector<16x32xf32>
    %c0_196 = arith.constant 0 : index
    %c0_197 = arith.constant 0 : index
    %393 = vector.load %arg4[%c0_196, %c0_197] : memref<1x32xf32, #tpu.memory_space<vmem>>, vector<1x32xf32>
    %394 = vector.broadcast %393 : vector<1x32xf32> to vector<16x32xf32>
    %395 = arith.addf %392, %394 : vector<16x32xf32>
    %396 = vector.shape_cast %395 : vector<16x32xf32> to vector<2x8x32xf32>
    %c0_198 = arith.constant 0 : index
    %c0_199 = arith.constant 0 : index
    %c0_200 = arith.constant 0 : index
    %397 = vector.load %arg5[%c0_198, %c0_199, %c0_200] : memref<2x8x32xf32, #tpu.memory_space<vmem>>, vector<2x8x32xf32>
    tpu.vector_store %arg5[%c0_198, %c0_199, %c0_200], %396 {strides = array<i32>} : memref<2x8x32xf32, #tpu.memory_space<vmem>>, vector<2x8x32xf32>,
    return
  }
  func.func @transform_0(%arg0: i32) -> (i32, i32, i32) {
    %c0_i32 = arith.constant 0 : i32
    %c0_i32_0 = arith.constant 0 : i32
    %c0_i32_1 = arith.constant 0 : i32
    return %arg0, %c0_i32, %c0_i32_0 : i32, i32, i32
  }
  func.func @transform_1(%arg0: i32) -> (i32, i32) {
    %c0_i32 = arith.constant 0 : i32
    %c0_i32_0 = arith.constant 0 : i32
    %c0_i32_1 = arith.constant 0 : i32
    return %c0_i32, %c0_i32_0 : i32, i32
  }
  func.func @transform_2(%arg0: i32) -> (i32, i32) {
    %c0_i32 = arith.constant 0 : i32
    %c0_i32_0 = arith.constant 0 : i32
    %c0_i32_1 = arith.constant 0 : i32
    return %c0_i32, %c0_i32_0 : i32, i32
  }
  func.func @transform_3(%arg0: i32) -> (i32, i32) {
    %c0_i32 = arith.constant 0 : i32
    %c0_i32_0 = arith.constant 0 : i32
    %c0_i32_1 = arith.constant 0 : i32
    return %c0_i32, %c0_i32_0 : i32, i32
  }
  func.func @transform_4(%arg0: i32) -> (i32, i32, i32) {
    %c0_i32 = arith.constant 0 : i32
    %c0_i32_0 = arith.constant 0 : i32
    %c0_i32_1 = arith.constant 0 : i32
    return %arg0, %c0_i32, %c0_i32_0 : i32, i32, i32
  }
}

</mosaic_0001>

<llo_original>
// kernel: tpu_custom_call.1
$region0: #{tpu_custom_call.1}
  #allocation0 [shape = 'u32[]', space=smem, size = 0x4, offset = 0x4, fixed_abs, tag = 'smem constant byte address 0x4 - core index']
  #allocation1 [shape = 'u32[144,128]{1,0:T(1,128)}', space=vmem, size = 0x12000, scoped, tag = 'internal scratch']
  #allocation2 [shape = 'f32[16,96]{1,0:T(8,128)}', space=vmem, size = 0x2000, scoped, tag = 'scratch operand']
  #allocation3 [shape = 'f32[16,32]{1,0:T(8,128)}', space=vmem, size = 0x2000, scoped, tag = 'scratch operand']
  %s0 = inlined_call_operand.hbm [shape: bf16[2,8,32], index: 0, kind: input, shape index: {}]
  %s1 = inlined_call_operand.hbm [shape: bf16[32,96], index: 1, kind: input, shape index: {}]
  %s2 = inlined_call_operand.hbm [shape: bf16[32,32], index: 2, kind: input, shape index: {}]
  %s3 = inlined_call_operand.vmem [shape: f32[1,32], index: 3, kind: input, shape index: {}]
  %s4 = inlined_call_operand.hbm [shape: f32[2,8,32], index: 4, kind: output, shape index: {}]
  %s5 = sld [smem:[#allocation0]]
  $region38: #{tpu_custom_call.1} parent=0
    _
  %s7 = ssub.s32 1, %s5
  %s8 = scalar_select 0, %s7, %s5
  $region1: #{tpu_custom_call.1} parent=0
    #allocation4 [shape = 'u8[4096]{0}', space=vmem, size = 0x1000, scoped, tag = 'input window, operand 0, single buffered']
    #allocation5 [shape = 's32[1]{0}', space=sflag, size = 0x4, scoped, tag = 'scoped memory for tpu_custom_call.1']
    #allocation6 [shape = 's32[1]{0}', space=sflag, size = 0x4, scoped, tag = 'scoped memory for tpu_custom_call.1']
    #allocation7 [shape = 'u8[8192]{0}', space=vmem, size = 0x2000, scoped, tag = 'input window, operand 1, single buffered']
    #allocation8 [shape = 's32[1]{0}', space=sflag, size = 0x4, scoped, tag = 'scoped memory for tpu_custom_call.1']
    #allocation9 [shape = 'u8[8192]{0}', space=vmem, size = 0x2000, scoped, tag = 'input window, operand 2, single buffered']
    #allocation10 [shape = 'u8[8192]{0}', space=vmem, size = 0x2000, scoped, tag = 'output window, operand 0, single buffered']
    %9 = vsyncpa [#allocation5], 0
    %10 = vsyncpa [#allocation8], 0
    %11 = vsyncpa [#allocation6], 0
    // Predicated region
    $region2: #{tpu_custom_call.1} parent=1 // pred_check
      _
    $region3: #{tpu_custom_call.1} parent=1 // pred_check_branch
      %13 = sbr.rel (0) target = $region5
    $region4: #{tpu_custom_call.1} parent=1 // pred_region
      %s15 = ssub.s32 128, 128
      %16 = vsyncadd [#allocation5], %s15
      %s17 = sshll.u32 [#allocation4], 4
      %s18 = int_to_ptr.vmem [resolvable:$true] %s17
      %23 = dma.hbm_to_vmem [thread:$0]  %s0, 128, %s18, [#allocation5], 64, 64, 4
    $region5: #{tpu_custom_call.1} parent=1 // pred_fallthru
      _
    // Predicated region
    $region6: #{tpu_custom_call.1} parent=1 // pred_check
      _
    $region7: #{tpu_custom_call.1} parent=1 // pred_check_branch
      %25 = sbr.rel (0) target = $region9
    $region8: #{tpu_custom_call.1} parent=1 // pred_region
      %s27 = ssub.s32 256, 256
      %28 = vsyncadd [#allocation8], %s27
      %s29 = sshll.u32 [#allocation7], 4
      %s30 = int_to_ptr.vmem [resolvable:$true] %s29
      %35 = dma.hbm_to_vmem [thread:$0]  %s1, 256, %s30, [#allocation8], 64, 64, 4
    $region9: #{tpu_custom_call.1} parent=1 // pred_fallthru
      _
    // Predicated region
    $region10: #{tpu_custom_call.1} parent=1 // pred_check
      _
    $region11: #{tpu_custom_call.1} parent=1 // pred_check_branch
      %37 = sbr.rel (0) target = $region13
    $region12: #{tpu_custom_call.1} parent=1 // pred_region
      %s39 = ssub.s32 256, 256
      %40 = vsyncadd [#allocation8], %s39
      %s41 = sshll.u32 [#allocation9], 4
      %s42 = int_to_ptr.vmem [resolvable:$true] %s41
      %47 = dma.hbm_to_vmem [thread:$0]  %s2, 256, %s42, [#allocation8], 64, 64, 4
    $region13: #{tpu_custom_call.1} parent=1 // pred_fallthru
      _
    // Predicated region
    $region14: #{tpu_custom_call.1} parent=1 // pred_check
      _
    $region15: #{tpu_custom_call.1} parent=1 // pred_check_branch
      %49 = sbr.rel (0) target = $region17
    $region16: #{tpu_custom_call.1} parent=1 // pred_region
      _
    $region17: #{tpu_custom_call.1} parent=1 // pred_fallthru
      _
    // Predicated region
    $region18: #{tpu_custom_call.1} parent=1 // pred_check
      _
    $region19: #{tpu_custom_call.1} parent=1 // pred_check_branch
      %51 = sbr.rel (0) target = $region21
    $region20: #{tpu_custom_call.1} parent=1 // pred_region
      %52 = dma.done [#allocation5], 128
    $region21: #{tpu_custom_call.1} parent=1 // pred_fallthru
      _
    // Predicated region
    $region22: #{tpu_custom_call.1} parent=1 // pred_check
      _
    $region23: #{tpu_custom_call.1} parent=1 // pred_check_branch
      %54 = sbr.rel (0) target = $region25
    $region24: #{tpu_custom_call.1} parent=1 // pred_region
      %55 = dma.done [#allocation8], 256
    $region25: #{tpu_custom_call.1} parent=1 // pred_fallthru
      _
    // Predicated region
    $region26: #{tpu_custom_call.1} parent=1 // pred_check
      _
    $region27: #{tpu_custom_call.1} parent=1 // pred_check_branch
      %57 = sbr.rel (0) target = $region29
    $region28: #{tpu_custom_call.1} parent=1 // pred_region
      %58 = dma.done [#allocation8], 256
    $region29: #{tpu_custom_call.1} parent=1 // pred_fallthru
      _
    %v60 = vld [vmem:[#allocation4] sm:$0xf]
    %v61 = vld [vmem:[#allocation4 + $0x4] sm:$0xf]
    %v62 = vld [vmem:[#allocation7] sm:$0xf]
    %v63 = vld [vmem:[#allocation7 + $0x4] sm:$0xf]
    %v64 = vld [vmem:[#allocation7 + $0x8] sm:$0xf]
    %v65 = vld [vmem:[#allocation7 + $0xc] sm:$0xf]
    %v68 = vunpack.c.l.b16 %v60
    %v69 = vunpack.c.l.b16 %v61
    %v70 = vpack.c.b16 %v69, %v68
    %v75 = vunpack.c.l.b16 %v62
    %v76 = vunpack.c.l.b16 %v63
    %v77 = vunpack.c.l.b16 %v64
    %v78 = vunpack.c.l.b16 %v65
    %v79 = vpack.c.b16 %v76, %v75
    %v80 = vpack.c.b16 %v78, %v77
    %vm83 = vcmask 261120
    %v85 = vsel %vm83, %v70, 0
    %87 = vmatprep.subr.bf16.mxu0 0
    %88 = vmatpush1.bf16.msra.mxu0 0
    %89 = vmatprep.subr.bf16.mxu0 0
    %90 = vmatpush1.bf16.msra.mxu0 0
    %91 = vmatprep.subr.bf16.mxu0 0
    %92 = vmatpush1.bf16.msra.mxu0 0
    %93 = vmatprep.subr.bf16.mxu0 0
    %94 = vmatpush1.bf16.msra.mxu0 0
    %95 = vmatprep.subr.bf16.mxu0 0
    %96 = vmatpush1.bf16.msra.mxu0 0
    %97 = vmatprep.subr.bf16.mxu0 0
    %98 = vmatpush1.bf16.msra.mxu0 0
    %99 = vmatprep.subr.bf16.mxu0 0
    %100 = vmatpush1.bf16.msra.mxu0 %v80
    %101 = vmatprep.subr.bf16.mxu0 0
    %102 = vmatpush1.bf16.msra.mxu0 %v79
    %103 = vmatprep.subr.bf16.mxu0 0
    %104 = vmatpush2.bf16.msra.mxu0 0
    %105 = vmatprep.subr.bf16.mxu0 0
    %106 = vmatpush2.bf16.msra.mxu0 0
    %107 = vmatprep.subr.bf16.mxu0 0
    %108 = vmatpush2.bf16.msra.mxu0 0
    %109 = vmatprep.subr.bf16.mxu0 0
    %110 = vmatpush2.bf16.msra.mxu0 0
    %111 = vmatprep.subr.bf16.mxu0 0
    %112 = vmatpush2.bf16.msra.mxu0 0
    %113 = vmatprep.subr.bf16.mxu0 0
    %114 = vmatpush2.bf16.msra.mxu0 0
    %115 = vmatprep.subr.bf16.mxu0 0
    %116 = vmatpush2.bf16.msra.mxu0 0
    %117 = vmatprep.subr.bf16.mxu0 0
    %118 = vmatpush2.bf16.msra.mxu0 0
    %119 = vmatprep.mubr.bf16.mxu0 0
    %120 = vmatmul.mubr.bf16.gmra.mxu0 %v85
    %v121 = vpop.f32.mrf.mxu0
    %v122 = vadd.f32 0.0, %v121
    %v123 = vpop.f32.mrf.mxu0
    %v124 = vpop.f32.mrf.mxu0
    %v125 = vadd.f32 0.0, %v124
    %v126 = vpop.f32.mrf.mxu0
    %127 = vdwg.mxu0
    %vm128 = vcmask 785408
    %129 = vst.msk [vmem:[#allocation2] sm:$0xff] %vm128, %v122
    %130 = vst.msk [vmem:[#allocation2 + $0x8] sm:$0xff] %vm128, %v125
    %v131 = vld [vmem:[#allocation2] sm:$0xff]
    %v132 = vpack.c.bf16 %v131, %v131
    %134 = vrot.lane.b32.xlu0 %v132, 96
    %v135 = vpop.permute.xlu0 %134
    %vm136 = vcmask 31744
    %v138 = vsel %vm136, %v132, 0
    %v141 = vsel %vm136, %v135, 0
    %143 = vmatprep.subr.bf16.mxu0 0
    %144 = vmatpush1.bf16.xpose.msra.mxu0 0
    %145 = vmatprep.subr.bf16.mxu0 0
    %146 = vmatpush1.bf16.xpose.msra.mxu0 0
    %147 = vmatprep.subr.bf16.mxu0 0
    %148 = vmatpush1.bf16.xpose.msra.mxu0 0
    %149 = vmatprep.subr.bf16.mxu0 0
    %150 = vmatpush1.bf16.xpose.msra.mxu0 0
    %151 = vmatprep.subr.bf16.mxu0 0
    %152 = vmatpush1.bf16.xpose.msra.mxu0 0
    %153 = vmatprep.subr.bf16.mxu0 0
    %154 = vmatpush1.bf16.xpose.msra.mxu0 0
    %155 = vmatprep.subr.bf16.mxu0 0
    %156 = vmatpush1.bf16.xpose.msra.mxu0 0
    %157 = vmatprep.subr.bf16.mxu0 0
    %158 = vmatpush1.bf16.xpose.msra.mxu0 %v141
    %159 = vmatprep.subr.bf16.mxu0 0
    %160 = vmatpush2.bf16.xpose.msra.mxu0 0
    %161 = vmatprep.subr.bf16.mxu0 0
    %162 = vmatpush2.bf16.xpose.msra.mxu0 0
    %163 = vmatprep.subr.bf16.mxu0 0
    %164 = vmatpush2.bf16.xpose.msra.mxu0 0
    %165 = vmatprep.subr.bf16.mxu0 0
    %166 = vmatpush2.bf16.xpose.msra.mxu0 0
    %167 = vmatprep.subr.bf16.mxu0 0
    %168 = vmatpush2.bf16.xpose.msra.mxu0 0
    %169 = vmatprep.subr.bf16.mxu0 0
    %170 = vmatpush2.bf16.xpose.msra.mxu0 0
    %171 = vmatprep.subr.bf16.mxu0 0
    %172 = vmatpush2.bf16.xpose.msra.mxu0 0
    %173 = vmatprep.subr.bf16.mxu0 0
    %174 = vmatpush2.bf16.xpose.msra.mxu0 0
    %175 = vmatprep.mubr.bf16.mxu0 0
    %176 = vmatmul.mubr.bf16.gmra.mxu0 %v138
    %v177 = vpop.f32.mrf.mxu0
    %v178 = vadd.f32 0.0, %v177
    %v179 = vpop.f32.mrf.mxu0
    %v180 = vpop.f32.mrf.mxu0
    %v181 = vpop.f32.mrf.mxu0
    %182 = vdwg.mxu0
    %vm183 = vcmask 64512
    %v184 = vsel %vm183, %v178, -inf
    %185 = vmax.xlane.f32.xlu0 %v184
    %v186 = vpop.xlane.xlu0 %185
    %v187 = vsub.f32 %v178, %v186
    %v188 = vmul.f32 %v187, 1.442695
    %v189 = vpow.pop %v188
    %v190 = vsel %vm183, %v189, 0.0
    %191 = vadd.xlane.f32.xlu0 %v190
    %v192 = vpop.xlane.xlu0 %191
    %v193 = vrcp.pop %v192
    %v194 = vmul.f32 %v192, %v193
    %v195 = vsub.f32 2.0, %v194
    %v196 = vmul.f32 %v193, %v195
    %v197 = vpack.c.bf16 %v189, %v189
    %198 = vrot.lane.b32.xlu0 %v132, 64
    %v199 = vpop.permute.xlu0 %198
    %v201 = vsel %vm183, %v197, 0
    %vm203 = vcmask 1043456
    %v205 = vsel %vm203, %v199, 0
    %207 = vmatprep.subr.bf16.mxu0 0
    %208 = vmatpush1.bf16.msra.mxu0 0
    %209 = vmatprep.subr.bf16.mxu0 0
    %210 = vmatpush1.bf16.msra.mxu0 0
    %211 = vmatprep.subr.bf16.mxu0 0
    %212 = vmatpush1.bf16.msra.mxu0 0
    %213 = vmatprep.subr.bf16.mxu0 0
    %214 = vmatpush1.bf16.msra.mxu0 0
    %215 = vmatprep.subr.bf16.mxu0 0
    %216 = vmatpush1.bf16.msra.mxu0 0
    %217 = vmatprep.subr.bf16.mxu0 0
    %218 = vmatpush1.bf16.msra.mxu0 0
    %219 = vmatprep.subr.bf16.mxu0 0
    %220 = vmatpush1.bf16.msra.mxu0 0
    %221 = vmatprep.subr.bf16.mxu0 0
    %222 = vmatpush1.bf16.msra.mxu0 %v205
    %223 = vmatprep.subr.bf16.mxu0 0
    %224 = vmatpush2.bf16.msra.mxu0 0
    %225 = vmatprep.subr.bf16.mxu0 0
    %226 = vmatpush2.bf16.msra.mxu0 0
    %227 = vmatprep.subr.bf16.mxu0 0
    %228 = vmatpush2.bf16.msra.mxu0 0
    %229 = vmatprep.subr.bf16.mxu0 0
    %230 = vmatpush2.bf16.msra.mxu0 0
    %231 = vmatprep.subr.bf16.mxu0 0
    %232 = vmatpush2.bf16.msra.mxu0 0
    %233 = vmatprep.subr.bf16.mxu0 0
    %234 = vmatpush2.bf16.msra.mxu0 0
    %235 = vmatprep.subr.bf16.mxu0 0
    %236 = vmatpush2.bf16.msra.mxu0 0
    %237 = vmatprep.subr.bf16.mxu0 0
    %238 = vmatpush2.bf16.msra.mxu0 0
    %239 = vmatprep.mubr.bf16.mxu0 0
    %240 = vmatmul.mubr.bf16.gmra.mxu0 %v201
    %v241 = vpop.f32.mrf.mxu0
    %v242 = vadd.f32 0.0, %v241
    %v243 = vpop.f32.mrf.mxu0
    %v244 = vpop.f32.mrf.mxu0
    %v245 = vpop.f32.mrf.mxu0
    %246 = vdwg.mxu0
    %v247 = vmul.f32 %v242, %v196
    %248 = vst.msk [vmem:[#allocation3] sm:$0xff] %vm136, %v247
    %v249 = vld [vmem:[#allocation2] sm:$0xff]
    %v250 = vpack.c.bf16 %v249, %v249
    %252 = vrot.lane.b32.xlu0 %v250, 124
    %v253 = vpop.permute.xlu0 %252
    %254 = vrot.lane.b32.xlu0 %v250, 92
    %v255 = vpop.permute.xlu0 %254
    %v257 = vsel %vm136, %v253, 0
    %v260 = vsel %vm136, %v255, 0
    %262 = vmatprep.subr.bf16.mxu0 0
    %263 = vmatpush1.bf16.xpose.msra.mxu0 0
    %264 = vmatprep.subr.bf16.mxu0 0
    %265 = vmatpush1.bf16.xpose.msra.mxu0 0
    %266 = vmatprep.subr.bf16.mxu0 0
    %267 = vmatpush1.bf16.xpose.msra.mxu0 0
    %268 = vmatprep.subr.bf16.mxu0 0
    %269 = vmatpush1.bf16.xpose.msra.mxu0 0
    %270 = vmatprep.subr.bf16.mxu0 0
    %271 = vmatpush1.bf16.xpose.msra.mxu0 0
    %272 = vmatprep.subr.bf16.mxu0 0
    %273 = vmatpush1.bf16.xpose.msra.mxu0 0
    %274 = vmatprep.subr.bf16.mxu0 0
    %275 = vmatpush1.bf16.xpose.msra.mxu0 0
    %276 = vmatprep.subr.bf16.mxu0 0
    %277 = vmatpush1.bf16.xpose.msra.mxu0 %v260
    %278 = vmatprep.subr.bf16.mxu0 0
    %279 = vmatpush2.bf16.xpose.msra.mxu0 0
    %280 = vmatprep.subr.bf16.mxu0 0
    %281 = vmatpush2.bf16.xpose.msra.mxu0 0
    %282 = vmatprep.subr.bf16.mxu0 0
    %283 = vmatpush2.bf16.xpose.msra.mxu0 0
    %284 = vmatprep.subr.bf16.mxu0 0
    %285 = vmatpush2.bf16.xpose.msra.mxu0 0
    %286 = vmatprep.subr.bf16.mxu0 0
    %287 = vmatpush2.bf16.xpose.msra.mxu0 0
    %288 = vmatprep.subr.bf16.mxu0 0
    %289 = vmatpush2.bf16.xpose.msra.mxu0 0
    %290 = vmatprep.subr.bf16.mxu0 0
    %291 = vmatpush2.bf16.xpose.msra.mxu0 0
    %292 = vmatprep.subr.bf16.mxu0 0
    %293 = vmatpush2.bf16.xpose.msra.mxu0 0
    %294 = vmatprep.mubr.bf16.mxu0 0
    %295 = vmatmul.mubr.bf16.gmra.mxu0 %v257
    %v296 = vpop.f32.mrf.mxu0
    %v297 = vadd.f32 0.0, %v296
    %v298 = vpop.f32.mrf.mxu0
    %v299 = vpop.f32.mrf.mxu0
    %v300 = vpop.f32.mrf.mxu0
    %301 = vdwg.mxu0
    %v302 = vsel %vm183, %v297, -inf
    %303 = vmax.xlane.f32.xlu0 %v302
    %v304 = vpop.xlane.xlu0 %303
    %v305 = vsub.f32 %v297, %v304
    %v306 = vmul.f32 %v305, 1.442695
    %v307 = vpow.pop %v306
    %v308 = vsel %vm183, %v307, 0.0
    %309 = vadd.xlane.f32.xlu0 %v308
    %v310 = vpop.xlane.xlu0 %309
    %v311 = vrcp.pop %v310
    %v312 = vmul.f32 %v310, %v311
    %v313 = vsub.f32 2.0, %v312
    %v314 = vmul.f32 %v311, %v313
    %v315 = vpack.c.bf16 %v307, %v307
    %316 = vrot.lane.b32.xlu0 %v250, 60
    %v317 = vpop.permute.xlu0 %316
    %v319 = vsel %vm183, %v315, 0
    %v322 = vsel %vm203, %v317, 0
    %324 = vmatprep.subr.bf16.mxu0 0
    %325 = vmatpush1.bf16.msra.mxu0 0
    %326 = vmatprep.subr.bf16.mxu0 0
    %327 = vmatpush1.bf16.msra.mxu0 0
    %328 = vmatprep.subr.bf16.mxu0 0
    %329 = vmatpush1.bf16.msra.mxu0 0
    %330 = vmatprep.subr.bf16.mxu0 0
    %331 = vmatpush1.bf16.msra.mxu0 0
    %332 = vmatprep.subr.bf16.mxu0 0
    %333 = vmatpush1.bf16.msra.mxu0 0
    %334 = vmatprep.subr.bf16.mxu0 0
    %335 = vmatpush1.bf16.msra.mxu0 0
    %336 = vmatprep.subr.bf16.mxu0 0
    %337 = vmatpush1.bf16.msra.mxu0 0
    %338 = vmatprep.subr.bf16.mxu0 0
    %339 = vmatpush1.bf16.msra.mxu0 %v322
    %340 = vmatprep.subr.bf16.mxu0 0
    %341 = vmatpush2.bf16.msra.mxu0 0
    %342 = vmatprep.subr.bf16.mxu0 0
    %343 = vmatpush2.bf16.msra.mxu0 0
    %344 = vmatprep.subr.bf16.mxu0 0
    %345 = vmatpush2.bf16.msra.mxu0 0
    %346 = vmatprep.subr.bf16.mxu0 0
    %347 = vmatpush2.bf16.msra.mxu0 0
    %348 = vmatprep.subr.bf16.mxu0 0
    %349 = vmatpush2.bf16.msra.mxu0 0
    %350 = vmatprep.subr.bf16.mxu0 0
    %351 = vmatpush2.bf16.msra.mxu0 0
    %352 = vmatprep.subr.bf16.mxu0 0
    %353 = vmatpush2.bf16.msra.mxu0 0
    %354 = vmatprep.subr.bf16.mxu0 0
    %355 = vmatpush2.bf16.msra.mxu0 0
    %356 = vmatprep.mubr.bf16.mxu0 0
    %357 = vmatmul.mubr.bf16.gmra.mxu0 %v319
    %v358 = vpop.f32.mrf.mxu0
    %v359 = vadd.f32 0.0, %v358
    %v360 = vpop.f32.mrf.mxu0
    %v361 = vpop.f32.mrf.mxu0
    %v362 = vpop.f32.mrf.mxu0
    %363 = vdwg.mxu0
    %v364 = vmul.f32 %v359, %v314
    %366 = vrot.lane.b32.xlu0 %v364, 4
    %v367 = vpop.permute.xlu0 %366
    %vm369 = vcmask 64544
    %370 = vst.msk [vmem:[#allocation3] sm:$0xff] %vm369, %v367
    %v371 = vld [vmem:[#allocation2] sm:$0xff]
    %v372 = vpack.c.bf16 %v371, %v371
    %374 = vrot.lane.b32.xlu0 %v372, 120
    %v375 = vpop.permute.xlu0 %374
    %376 = vrot.lane.b32.xlu0 %v372, 88
    %v377 = vpop.permute.xlu0 %376
    %v379 = vsel %vm136, %v375, 0
    %v382 = vsel %vm136, %v377, 0
    %384 = vmatprep.subr.bf16.mxu0 0
    %385 = vmatpush1.bf16.xpose.msra.mxu0 0
    %386 = vmatprep.subr.bf16.mxu0 0
    %387 = vmatpush1.bf16.xpose.msra.mxu0 0
    %388 = vmatprep.subr.bf16.mxu0 0
    %389 = vmatpush1.bf16.xpose.msra.mxu0 0
    %390 = vmatprep.subr.bf16.mxu0 0
    %391 = vmatpush1.bf16.xpose.msra.mxu0 0
    %392 = vmatprep.subr.bf16.mxu0 0
    %393 = vmatpush1.bf16.xpose.msra.mxu0 0
    %394 = vmatprep.subr.bf16.mxu0 0
    %395 = vmatpush1.bf16.xpose.msra.mxu0 0
    %396 = vmatprep.subr.bf16.mxu0 0
    %397 = vmatpush1.bf16.xpose.msra.mxu0 0
    %398 = vmatprep.subr.bf16.mxu0 0
    %399 = vmatpush1.bf16.xpose.msra.mxu0 %v382
    %400 = vmatprep.subr.bf16.mxu0 0
    %401 = vmatpush2.bf16.xpose.msra.mxu0 0
    %402 = vmatprep.subr.bf16.mxu0 0
    %403 = vmatpush2.bf16.xpose.msra.mxu0 0
    %404 = vmatprep.subr.bf16.mxu0 0
    %405 = vmatpush2.bf16.xpose.msra.mxu0 0
    %406 = vmatprep.subr.bf16.mxu0 0
    %407 = vmatpush2.bf16.xpose.msra.mxu0 0
    %408 = vmatprep.subr.bf16.mxu0 0
    %409 = vmatpush2.bf16.xpose.msra.mxu0 0
    %410 = vmatprep.subr.bf16.mxu0 0
    %411 = vmatpush2.bf16.xpose.msra.mxu0 0
    %412 = vmatprep.subr.bf16.mxu0 0
    %413 = vmatpush2.bf16.xpose.msra.mxu0 0
    %414 = vmatprep.subr.bf16.mxu0 0
    %415 = vmatpush2.bf16.xpose.msra.mxu0 0
    %416 = vmatprep.mubr.bf16.mxu0 0
    %417 = vmatmul.mubr.bf16.gmra.mxu0 %v379
    %v418 = vpop.f32.mrf.mxu0
    %v419 = vadd.f32 0.0, %v418
    %v420 = vpop.f32.mrf.mxu0
    %v421 = vpop.f32.mrf.mxu0
    %v422 = vpop.f32.mrf.mxu0
    %423 = vdwg.mxu0
    %v424 = vsel %vm183, %v419, -inf
    %425 = vmax.xlane.f32.xlu0 %v424
    %v426 = vpop.xlane.xlu0 %425
    %v427 = vsub.f32 %v419, %v426
    %v428 = vmul.f32 %v427, 1.442695
    %v429 = vpow.pop %v428
    %v430 = vsel %vm183, %v429, 0.0
    %431 = vadd.xlane.f32.xlu0 %v430
    %v432 = vpop.xlane.xlu0 %431
    %v433 = vrcp.pop %v432
    %v434 = vmul.f32 %v432, %v433
    %v435 = vsub.f32 2.0, %v434
    %v436 = vmul.f32 %v433, %v435
    %v437 = vpack.c.bf16 %v429, %v429
    %438 = vrot.lane.b32.xlu0 %v372, 56
    %v439 = vpop.permute.xlu0 %438
    %v441 = vsel %vm183, %v437, 0
    %v444 = vsel %vm203, %v439, 0
    %446 = vmatprep.subr.bf16.mxu0 0
    %447 = vmatpush1.bf16.msra.mxu0 0
    %448 = vmatprep.subr.bf16.mxu0 0
    %449 = vmatpush1.bf16.msra.mxu0 0
    %450 = vmatprep.subr.bf16.mxu0 0
    %451 = vmatpush1.bf16.msra.mxu0 0
    %452 = vmatprep.subr.bf16.mxu0 0
    %453 = vmatpush1.bf16.msra.mxu0 0
    %454 = vmatprep.subr.bf16.mxu0 0
    %455 = vmatpush1.bf16.msra.mxu0 0
    %456 = vmatprep.subr.bf16.mxu0 0
    %457 = vmatpush1.bf16.msra.mxu0 0
    %458 = vmatprep.subr.bf16.mxu0 0
    %459 = vmatpush1.bf16.msra.mxu0 0
    %460 = vmatprep.subr.bf16.mxu0 0
    %461 = vmatpush1.bf16.msra.mxu0 %v444
    %462 = vmatprep.subr.bf16.mxu0 0
    %463 = vmatpush2.bf16.msra.mxu0 0
    %464 = vmatprep.subr.bf16.mxu0 0
    %465 = vmatpush2.bf16.msra.mxu0 0
    %466 = vmatprep.subr.bf16.mxu0 0
    %467 = vmatpush2.bf16.msra.mxu0 0
    %468 = vmatprep.subr.bf16.mxu0 0
    %469 = vmatpush2.bf16.msra.mxu0 0
    %470 = vmatprep.subr.bf16.mxu0 0
    %471 = vmatpush2.bf16.msra.mxu0 0
    %472 = vmatprep.subr.bf16.mxu0 0
    %473 = vmatpush2.bf16.msra.mxu0 0
    %474 = vmatprep.subr.bf16.mxu0 0
    %475 = vmatpush2.bf16.msra.mxu0 0
    %476 = vmatprep.subr.bf16.mxu0 0
    %477 = vmatpush2.bf16.msra.mxu0 0
    %478 = vmatprep.mubr.bf16.mxu0 0
    %479 = vmatmul.mubr.bf16.gmra.mxu0 %v441
    %v480 = vpop.f32.mrf.mxu0
    %v481 = vadd.f32 0.0, %v480
    %v482 = vpop.f32.mrf.mxu0
    %v483 = vpop.f32.mrf.mxu0
    %v484 = vpop.f32.mrf.mxu0
    %485 = vdwg.mxu0
    %v486 = vmul.f32 %v481, %v436
    %488 = vrot.lane.b32.xlu0 %v486, 8
    %v489 = vpop.permute.xlu0 %488
    %vm491 = vcmask 97344
    %492 = vst.msk [vmem:[#allocation3] sm:$0xff] %vm491, %v489
    %v493 = vld [vmem:[#allocation2] sm:$0xff]
    %v494 = vpack.c.bf16 %v493, %v493
    %496 = vrot.lane.b32.xlu0 %v494, 116
    %v497 = vpop.permute.xlu0 %496
    %498 = vrot.lane.b32.xlu0 %v494, 84
    %v499 = vpop.permute.xlu0 %498
    %v501 = vsel %vm136, %v497, 0
    %v504 = vsel %vm136, %v499, 0
    %506 = vmatprep.subr.bf16.mxu0 0
    %507 = vmatpush1.bf16.xpose.msra.mxu0 0
    %508 = vmatprep.subr.bf16.mxu0 0
    %509 = vmatpush1.bf16.xpose.msra.mxu0 0
    %510 = vmatprep.subr.bf16.mxu0 0
    %511 = vmatpush1.bf16.xpose.msra.mxu0 0
    %512 = vmatprep.subr.bf16.mxu0 0
    %513 = vmatpush1.bf16.xpose.msra.mxu0 0
    %514 = vmatprep.subr.bf16.mxu0 0
    %515 = vmatpush1.bf16.xpose.msra.mxu0 0
    %516 = vmatprep.subr.bf16.mxu0 0
    %517 = vmatpush1.bf16.xpose.msra.mxu0 0
    %518 = vmatprep.subr.bf16.mxu0 0
    %519 = vmatpush1.bf16.xpose.msra.mxu0 0
    %520 = vmatprep.subr.bf16.mxu0 0
    %521 = vmatpush1.bf16.xpose.msra.mxu0 %v504
    %522 = vmatprep.subr.bf16.mxu0 0
    %523 = vmatpush2.bf16.xpose.msra.mxu0 0
    %524 = vmatprep.subr.bf16.mxu0 0
    %525 = vmatpush2.bf16.xpose.msra.mxu0 0
    %526 = vmatprep.subr.bf16.mxu0 0
    %527 = vmatpush2.bf16.xpose.msra.mxu0 0
    %528 = vmatprep.subr.bf16.mxu0 0
    %529 = vmatpush2.bf16.xpose.msra.mxu0 0
    %530 = vmatprep.subr.bf16.mxu0 0
    %531 = vmatpush2.bf16.xpose.msra.mxu0 0
    %532 = vmatprep.subr.bf16.mxu0 0
    %533 = vmatpush2.bf16.xpose.msra.mxu0 0
    %534 = vmatprep.subr.bf16.mxu0 0
    %535 = vmatpush2.bf16.xpose.msra.mxu0 0
    %536 = vmatprep.subr.bf16.mxu0 0
    %537 = vmatpush2.bf16.xpose.msra.mxu0 0
    %538 = vmatprep.mubr.bf16.mxu0 0
    %539 = vmatmul.mubr.bf16.gmra.mxu0 %v501
    %v540 = vpop.f32.mrf.mxu0
    %v541 = vadd.f32 0.0, %v540
    %v542 = vpop.f32.mrf.mxu0
    %v543 = vpop.f32.mrf.mxu0
    %v544 = vpop.f32.mrf.mxu0
    %545 = vdwg.mxu0
    %v546 = vsel %vm183, %v541, -inf
    %547 = vmax.xlane.f32.xlu0 %v546
    %v548 = vpop.xlane.xlu0 %547
    %v549 = vsub.f32 %v541, %v548
    %v550 = vmul.f32 %v549, 1.442695
    %v551 = vpow.pop %v550
    %v552 = vsel %vm183, %v551, 0.0
    %553 = vadd.xlane.f32.xlu0 %v552
    %v554 = vpop.xlane.xlu0 %553
    %v555 = vrcp.pop %v554
    %v556 = vmul.f32 %v554, %v555
    %v557 = vsub.f32 2.0, %v556
    %v558 = vmul.f32 %v555, %v557
    %v559 = vpack.c.bf16 %v551, %v551
    %560 = vrot.lane.b32.xlu0 %v494, 52
    %v561 = vpop.permute.xlu0 %560
    %v563 = vsel %vm183, %v559, 0
    %v566 = vsel %vm203, %v561, 0
    %568 = vmatprep.subr.bf16.mxu0 0
    %569 = vmatpush1.bf16.msra.mxu0 0
    %570 = vmatprep.subr.bf16.mxu0 0
    %571 = vmatpush1.bf16.msra.mxu0 0
    %572 = vmatprep.subr.bf16.mxu0 0
    %573 = vmatpush1.bf16.msra.mxu0 0
    %574 = vmatprep.subr.bf16.mxu0 0
    %575 = vmatpush1.bf16.msra.mxu0 0
    %576 = vmatprep.subr.bf16.mxu0 0
    %577 = vmatpush1.bf16.msra.mxu0 0
    %578 = vmatprep.subr.bf16.mxu0 0
    %579 = vmatpush1.bf16.msra.mxu0 0
    %580 = vmatprep.subr.bf16.mxu0 0
    %581 = vmatpush1.bf16.msra.mxu0 0
    %582 = vmatprep.subr.bf16.mxu0 0
    %583 = vmatpush1.bf16.msra.mxu0 %v566
    %584 = vmatprep.subr.bf16.mxu0 0
    %585 = vmatpush2.bf16.msra.mxu0 0
    %586 = vmatprep.subr.bf16.mxu0 0
    %587 = vmatpush2.bf16.msra.mxu0 0
    %588 = vmatprep.subr.bf16.mxu0 0
    %589 = vmatpush2.bf16.msra.mxu0 0
    %590 = vmatprep.subr.bf16.mxu0 0
    %591 = vmatpush2.bf16.msra.mxu0 0
    %592 = vmatprep.subr.bf16.mxu0 0
    %593 = vmatpush2.bf16.msra.mxu0 0
    %594 = vmatprep.subr.bf16.mxu0 0
    %595 = vmatpush2.bf16.msra.mxu0 0
    %596 = vmatprep.subr.bf16.mxu0 0
    %597 = vmatpush2.bf16.msra.mxu0 0
    %598 = vmatprep.subr.bf16.mxu0 0
    %599 = vmatpush2.bf16.msra.mxu0 0
    %600 = vmatprep.mubr.bf16.mxu0 0
    %601 = vmatmul.mubr.bf16.gmra.mxu0 %v563
    %v602 = vpop.f32.mrf.mxu0
    %v603 = vadd.f32 0.0, %v602
    %v604 = vpop.f32.mrf.mxu0
    %v605 = vpop.f32.mrf.mxu0
    %v606 = vpop.f32.mrf.mxu0
    %607 = vdwg.mxu0
    %v608 = vmul.f32 %v603, %v558
    %610 = vrot.lane.b32.xlu0 %v608, 12
    %v611 = vpop.permute.xlu0 %610
    %vm613 = vcmask 130144
    %614 = vst.msk [vmem:[#allocation3] sm:$0xff] %vm613, %v611
    %v615 = vld [vmem:[#allocation2] sm:$0xff]
    %v616 = vpack.c.bf16 %v615, %v615
    %618 = vrot.lane.b32.xlu0 %v616, 112
    %v619 = vpop.permute.xlu0 %618
    %620 = vrot.lane.b32.xlu0 %v616, 80
    %v621 = vpop.permute.xlu0 %620
    %v623 = vsel %vm136, %v619, 0
    %v626 = vsel %vm136, %v621, 0
    %628 = vmatprep.subr.bf16.mxu0 0
    %629 = vmatpush1.bf16.xpose.msra.mxu0 0
    %630 = vmatprep.subr.bf16.mxu0 0
    %631 = vmatpush1.bf16.xpose.msra.mxu0 0
    %632 = vmatprep.subr.bf16.mxu0 0
    %633 = vmatpush1.bf16.xpose.msra.mxu0 0
    %634 = vmatprep.subr.bf16.mxu0 0
    %635 = vmatpush1.bf16.xpose.msra.mxu0 0
    %636 = vmatprep.subr.bf16.mxu0 0
    %637 = vmatpush1.bf16.xpose.msra.mxu0 0
    %638 = vmatprep.subr.bf16.mxu0 0
    %639 = vmatpush1.bf16.xpose.msra.mxu0 0
    %640 = vmatprep.subr.bf16.mxu0 0
    %641 = vmatpush1.bf16.xpose.msra.mxu0 0
    %642 = vmatprep.subr.bf16.mxu0 0
    %643 = vmatpush1.bf16.xpose.msra.mxu0 %v626
    %644 = vmatprep.subr.bf16.mxu0 0
    %645 = vmatpush2.bf16.xpose.msra.mxu0 0
    %646 = vmatprep.subr.bf16.mxu0 0
    %647 = vmatpush2.bf16.xpose.msra.mxu0 0
    %648 = vmatprep.subr.bf16.mxu0 0
    %649 = vmatpush2.bf16.xpose.msra.mxu0 0
    %650 = vmatprep.subr.bf16.mxu0 0
    %651 = vmatpush2.bf16.xpose.msra.mxu0 0
    %652 = vmatprep.subr.bf16.mxu0 0
    %653 = vmatpush2.bf16.xpose.msra.mxu0 0
    %654 = vmatprep.subr.bf16.mxu0 0
    %655 = vmatpush2.bf16.xpose.msra.mxu0 0
    %656 = vmatprep.subr.bf16.mxu0 0
    %657 = vmatpush2.bf16.xpose.msra.mxu0 0
    %658 = vmatprep.subr.bf16.mxu0 0
    %659 = vmatpush2.bf16.xpose.msra.mxu0 0
    %660 = vmatprep.mubr.bf16.mxu0 0
    %661 = vmatmul.mubr.bf16.gmra.mxu0 %v623
    %v662 = vpop.f32.mrf.mxu0
    %v663 = vadd.f32 0.0, %v662
    %v664 = vpop.f32.mrf.mxu0
    %v665 = vpop.f32.mrf.mxu0
    %v666 = vpop.f32.mrf.mxu0
    %667 = vdwg.mxu0
    %v668 = vsel %vm183, %v663, -inf
    %669 = vmax.xlane.f32.xlu0 %v668
    %v670 = vpop.xlane.xlu0 %669
    %v671 = vsub.f32 %v663, %v670
    %v672 = vmul.f32 %v671, 1.442695
    %v673 = vpow.pop %v672
    %v674 = vsel %vm183, %v673, 0.0
    %675 = vadd.xlane.f32.xlu0 %v674
    %v676 = vpop.xlane.xlu0 %675
    %v677 = vrcp.pop %v676
    %v678 = vmul.f32 %v676, %v677
    %v679 = vsub.f32 2.0, %v678
    %v680 = vmul.f32 %v677, %v679
    %v681 = vpack.c.bf16 %v673, %v673
    %682 = vrot.lane.b32.xlu0 %v616, 48
    %v683 = vpop.permute.xlu0 %682
    %v685 = vsel %vm183, %v681, 0
    %v688 = vsel %vm203, %v683, 0
    %690 = vmatprep.subr.bf16.mxu0 0
    %691 = vmatpush1.bf16.msra.mxu0 0
    %692 = vmatprep.subr.bf16.mxu0 0
    %693 = vmatpush1.bf16.msra.mxu0 0
    %694 = vmatprep.subr.bf16.mxu0 0
    %695 = vmatpush1.bf16.msra.mxu0 0
    %696 = vmatprep.subr.bf16.mxu0 0
    %697 = vmatpush1.bf16.msra.mxu0 0
    %698 = vmatprep.subr.bf16.mxu0 0
    %699 = vmatpush1.bf16.msra.mxu0 0
    %700 = vmatprep.subr.bf16.mxu0 0
    %701 = vmatpush1.bf16.msra.mxu0 0
    %702 = vmatprep.subr.bf16.mxu0 0
    %703 = vmatpush1.bf16.msra.mxu0 0
    %704 = vmatprep.subr.bf16.mxu0 0
    %705 = vmatpush1.bf16.msra.mxu0 %v688
    %706 = vmatprep.subr.bf16.mxu0 0
    %707 = vmatpush2.bf16.msra.mxu0 0
    %708 = vmatprep.subr.bf16.mxu0 0
    %709 = vmatpush2.bf16.msra.mxu0 0
    %710 = vmatprep.subr.bf16.mxu0 0
    %711 = vmatpush2.bf16.msra.mxu0 0
    %712 = vmatprep.subr.bf16.mxu0 0
    %713 = vmatpush2.bf16.msra.mxu0 0
    %714 = vmatprep.subr.bf16.mxu0 0
    %715 = vmatpush2.bf16.msra.mxu0 0
    %716 = vmatprep.subr.bf16.mxu0 0
    %717 = vmatpush2.bf16.msra.mxu0 0
    %718 = vmatprep.subr.bf16.mxu0 0
    %719 = vmatpush2.bf16.msra.mxu0 0
    %720 = vmatprep.subr.bf16.mxu0 0
    %721 = vmatpush2.bf16.msra.mxu0 0
    %722 = vmatprep.mubr.bf16.mxu0 0
    %723 = vmatmul.mubr.bf16.gmra.mxu0 %v685
    %v724 = vpop.f32.mrf.mxu0
    %v725 = vadd.f32 0.0, %v724
    %v726 = vpop.f32.mrf.mxu0
    %v727 = vpop.f32.mrf.mxu0
    %v728 = vpop.f32.mrf.mxu0
    %729 = vdwg.mxu0
    %v730 = vmul.f32 %v725, %v680
    %732 = vrot.lane.b32.xlu0 %v730, 16
    %v733 = vpop.permute.xlu0 %732
    %vm735 = vcmask 162944
    %736 = vst.msk [vmem:[#allocation3] sm:$0xff] %vm735, %v733
    %v737 = vld [vmem:[#allocation2] sm:$0xff]
    %v738 = vpack.c.bf16 %v737, %v737
    %740 = vrot.lane.b32.xlu0 %v738, 108
    %v741 = vpop.permute.xlu0 %740
    %742 = vrot.lane.b32.xlu0 %v738, 76
    %v743 = vpop.permute.xlu0 %742
    %v745 = vsel %vm136, %v741, 0
    %v748 = vsel %vm136, %v743, 0
    %750 = vmatprep.subr.bf16.mxu0 0
    %751 = vmatpush1.bf16.xpose.msra.mxu0 0
    %752 = vmatprep.subr.bf16.mxu0 0
    %753 = vmatpush1.bf16.xpose.msra.mxu0 0
    %754 = vmatprep.subr.bf16.mxu0 0
    %755 = vmatpush1.bf16.xpose.msra.mxu0 0
    %756 = vmatprep.subr.bf16.mxu0 0
    %757 = vmatpush1.bf16.xpose.msra.mxu0 0
    %758 = vmatprep.subr.bf16.mxu0 0
    %759 = vmatpush1.bf16.xpose.msra.mxu0 0
    %760 = vmatprep.subr.bf16.mxu0 0
    %761 = vmatpush1.bf16.xpose.msra.mxu0 0
    %762 = vmatprep.subr.bf16.mxu0 0
    %763 = vmatpush1.bf16.xpose.msra.mxu0 0
    %764 = vmatprep.subr.bf16.mxu0 0
    %765 = vmatpush1.bf16.xpose.msra.mxu0 %v748
    %766 = vmatprep.subr.bf16.mxu0 0
    %767 = vmatpush2.bf16.xpose.msra.mxu0 0
    %768 = vmatprep.subr.bf16.mxu0 0
    %769 = vmatpush2.bf16.xpose.msra.mxu0 0
    %770 = vmatprep.subr.bf16.mxu0 0
    %771 = vmatpush2.bf16.xpose.msra.mxu0 0
    %772 = vmatprep.subr.bf16.mxu0 0
    %773 = vmatpush2.bf16.xpose.msra.mxu0 0
    %774 = vmatprep.subr.bf16.mxu0 0
    %775 = vmatpush2.bf16.xpose.msra.mxu0 0
    %776 = vmatprep.subr.bf16.mxu0 0
    %777 = vmatpush2.bf16.xpose.msra.mxu0 0
    %778 = vmatprep.subr.bf16.mxu0 0
    %779 = vmatpush2.bf16.xpose.msra.mxu0 0
    %780 = vmatprep.subr.bf16.mxu0 0
    %781 = vmatpush2.bf16.xpose.msra.mxu0 0
    %782 = vmatprep.mubr.bf16.mxu0 0
    %783 = vmatmul.mubr.bf16.gmra.mxu0 %v745
    %v784 = vpop.f32.mrf.mxu0
    %v785 = vadd.f32 0.0, %v784
    %v786 = vpop.f32.mrf.mxu0
    %v787 = vpop.f32.mrf.mxu0
    %v788 = vpop.f32.mrf.mxu0
    %789 = vdwg.mxu0
    %v790 = vsel %vm183, %v785, -inf
    %791 = vmax.xlane.f32.xlu0 %v790
    %v792 = vpop.xlane.xlu0 %791
    %v793 = vsub.f32 %v785, %v792
    %v794 = vmul.f32 %v793, 1.442695
    %v795 = vpow.pop %v794
    %v796 = vsel %vm183, %v795, 0.0
    %797 = vadd.xlane.f32.xlu0 %v796
    %v798 = vpop.xlane.xlu0 %797
    %v799 = vrcp.pop %v798
    %v800 = vmul.f32 %v798, %v799
    %v801 = vsub.f32 2.0, %v800
    %v802 = vmul.f32 %v799, %v801
    %v803 = vpack.c.bf16 %v795, %v795
    %804 = vrot.lane.b32.xlu0 %v738, 44
    %v805 = vpop.permute.xlu0 %804
    %v807 = vsel %vm183, %v803, 0
    %v810 = vsel %vm203, %v805, 0
    %812 = vmatprep.subr.bf16.mxu0 0
    %813 = vmatpush1.bf16.msra.mxu0 0
    %814 = vmatprep.subr.bf16.mxu0 0
    %815 = vmatpush1.bf16.msra.mxu0 0
    %816 = vmatprep.subr.bf16.mxu0 0
    %817 = vmatpush1.bf16.msra.mxu0 0
    %818 = vmatprep.subr.bf16.mxu0 0
    %819 = vmatpush1.bf16.msra.mxu0 0
    %820 = vmatprep.subr.bf16.mxu0 0
    %821 = vmatpush1.bf16.msra.mxu0 0
    %822 = vmatprep.subr.bf16.mxu0 0
    %823 = vmatpush1.bf16.msra.mxu0 0
    %824 = vmatprep.subr.bf16.mxu0 0
    %825 = vmatpush1.bf16.msra.mxu0 0
    %826 = vmatprep.subr.bf16.mxu0 0
    %827 = vmatpush1.bf16.msra.mxu0 %v810
    %828 = vmatprep.subr.bf16.mxu0 0
    %829 = vmatpush2.bf16.msra.mxu0 0
    %830 = vmatprep.subr.bf16.mxu0 0
    %831 = vmatpush2.bf16.msra.mxu0 0
    %832 = vmatprep.subr.bf16.mxu0 0
    %833 = vmatpush2.bf16.msra.mxu0 0
    %834 = vmatprep.subr.bf16.mxu0 0
    %835 = vmatpush2.bf16.msra.mxu0 0
    %836 = vmatprep.subr.bf16.mxu0 0
    %837 = vmatpush2.bf16.msra.mxu0 0
    %838 = vmatprep.subr.bf16.mxu0 0
    %839 = vmatpush2.bf16.msra.mxu0 0
    %840 = vmatprep.subr.bf16.mxu0 0
    %841 = vmatpush2.bf16.msra.mxu0 0
    %842 = vmatprep.subr.bf16.mxu0 0
    %843 = vmatpush2.bf16.msra.mxu0 0
    %844 = vmatprep.mubr.bf16.mxu0 0
    %845 = vmatmul.mubr.bf16.gmra.mxu0 %v807
    %v846 = vpop.f32.mrf.mxu0
    %v847 = vadd.f32 0.0, %v846
    %v848 = vpop.f32.mrf.mxu0
    %v849 = vpop.f32.mrf.mxu0
    %v850 = vpop.f32.mrf.mxu0
    %851 = vdwg.mxu0
    %v852 = vmul.f32 %v847, %v802
    %854 = vrot.lane.b32.xlu0 %v852, 20
    %v855 = vpop.permute.xlu0 %854
    %vm857 = vcmask 195744
    %858 = vst.msk [vmem:[#allocation3] sm:$0xff] %vm857, %v855
    %v859 = vld [vmem:[#allocation2] sm:$0xff]
    %v860 = vpack.c.bf16 %v859, %v859
    %862 = vrot.lane.b32.xlu0 %v860, 104
    %v863 = vpop.permute.xlu0 %862
    %864 = vrot.lane.b32.xlu0 %v860, 72
    %v865 = vpop.permute.xlu0 %864
    %v867 = vsel %vm136, %v863, 0
    %v870 = vsel %vm136, %v865, 0
    %872 = vmatprep.subr.bf16.mxu0 0
    %873 = vmatpush1.bf16.xpose.msra.mxu0 0
    %874 = vmatprep.subr.bf16.mxu0 0
    %875 = vmatpush1.bf16.xpose.msra.mxu0 0
    %876 = vmatprep.subr.bf16.mxu0 0
    %877 = vmatpush1.bf16.xpose.msra.mxu0 0
    %878 = vmatprep.subr.bf16.mxu0 0
    %879 = vmatpush1.bf16.xpose.msra.mxu0 0
    %880 = vmatprep.subr.bf16.mxu0 0
    %881 = vmatpush1.bf16.xpose.msra.mxu0 0
    %882 = vmatprep.subr.bf16.mxu0 0
    %883 = vmatpush1.bf16.xpose.msra.mxu0 0
    %884 = vmatprep.subr.bf16.mxu0 0
    %885 = vmatpush1.bf16.xpose.msra.mxu0 0
    %886 = vmatprep.subr.bf16.mxu0 0
    %887 = vmatpush1.bf16.xpose.msra.mxu0 %v870
    %888 = vmatprep.subr.bf16.mxu0 0
    %889 = vmatpush2.bf16.xpose.msra.mxu0 0
    %890 = vmatprep.subr.bf16.mxu0 0
    %891 = vmatpush2.bf16.xpose.msra.mxu0 0
    %892 = vmatprep.subr.bf16.mxu0 0
    %893 = vmatpush2.bf16.xpose.msra.mxu0 0
    %894 = vmatprep.subr.bf16.mxu0 0
    %895 = vmatpush2.bf16.xpose.msra.mxu0 0
    %896 = vmatprep.subr.bf16.mxu0 0
    %897 = vmatpush2.bf16.xpose.msra.mxu0 0
    %898 = vmatprep.subr.bf16.mxu0 0
    %899 = vmatpush2.bf16.xpose.msra.mxu0 0
    %900 = vmatprep.subr.bf16.mxu0 0
    %901 = vmatpush2.bf16.xpose.msra.mxu0 0
    %902 = vmatprep.subr.bf16.mxu0 0
    %903 = vmatpush2.bf16.xpose.msra.mxu0 0
    %904 = vmatprep.mubr.bf16.mxu0 0
    %905 = vmatmul.mubr.bf16.gmra.mxu0 %v867
    %v906 = vpop.f32.mrf.mxu0
    %v907 = vadd.f32 0.0, %v906
    %v908 = vpop.f32.mrf.mxu0
    %v909 = vpop.f32.mrf.mxu0
    %v910 = vpop.f32.mrf.mxu0
    %911 = vdwg.mxu0
    %v912 = vsel %vm183, %v907, -inf
    %913 = vmax.xlane.f32.xlu0 %v912
    %v914 = vpop.xlane.xlu0 %913
    %v915 = vsub.f32 %v907, %v914
    %v916 = vmul.f32 %v915, 1.442695
    %v917 = vpow.pop %v916
    %v918 = vsel %vm183, %v917, 0.0
    %919 = vadd.xlane.f32.xlu0 %v918
    %v920 = vpop.xlane.xlu0 %919
    %v921 = vrcp.pop %v920
    %v922 = vmul.f32 %v920, %v921
    %v923 = vsub.f32 2.0, %v922
    %v924 = vmul.f32 %v921, %v923
    %v925 = vpack.c.bf16 %v917, %v917
    %926 = vrot.lane.b32.xlu0 %v860, 40
    %v927 = vpop.permute.xlu0 %926
    %v929 = vsel %vm183, %v925, 0
    %v932 = vsel %vm203, %v927, 0
    %934 = vmatprep.subr.bf16.mxu0 0
    %935 = vmatpush1.bf16.msra.mxu0 0
    %936 = vmatprep.subr.bf16.mxu0 0
    %937 = vmatpush1.bf16.msra.mxu0 0
    %938 = vmatprep.subr.bf16.mxu0 0
    %939 = vmatpush1.bf16.msra.mxu0 0
    %940 = vmatprep.subr.bf16.mxu0 0
    %941 = vmatpush1.bf16.msra.mxu0 0
    %942 = vmatprep.subr.bf16.mxu0 0
    %943 = vmatpush1.bf16.msra.mxu0 0
    %944 = vmatprep.subr.bf16.mxu0 0
    %945 = vmatpush1.bf16.msra.mxu0 0
    %946 = vmatprep.subr.bf16.mxu0 0
    %947 = vmatpush1.bf16.msra.mxu0 0
    %948 = vmatprep.subr.bf16.mxu0 0
    %949 = vmatpush1.bf16.msra.mxu0 %v932
    %950 = vmatprep.subr.bf16.mxu0 0
    %951 = vmatpush2.bf16.msra.mxu0 0
    %952 = vmatprep.subr.bf16.mxu0 0
    %953 = vmatpush2.bf16.msra.mxu0 0
    %954 = vmatprep.subr.bf16.mxu0 0
    %955 = vmatpush2.bf16.msra.mxu0 0
    %956 = vmatprep.subr.bf16.mxu0 0
    %957 = vmatpush2.bf16.msra.mxu0 0
    %958 = vmatprep.subr.bf16.mxu0 0
    %959 = vmatpush2.bf16.msra.mxu0 0
    %960 = vmatprep.subr.bf16.mxu0 0
    %961 = vmatpush2.bf16.msra.mxu0 0
    %962 = vmatprep.subr.bf16.mxu0 0
    %963 = vmatpush2.bf16.msra.mxu0 0
    %964 = vmatprep.subr.bf16.mxu0 0
    %965 = vmatpush2.bf16.msra.mxu0 0
    %966 = vmatprep.mubr.bf16.mxu0 0
    %967 = vmatmul.mubr.bf16.gmra.mxu0 %v929
    %v968 = vpop.f32.mrf.mxu0
    %v969 = vadd.f32 0.0, %v968
    %v970 = vpop.f32.mrf.mxu0
    %v971 = vpop.f32.mrf.mxu0
    %v972 = vpop.f32.mrf.mxu0
    %973 = vdwg.mxu0
    %v974 = vmul.f32 %v969, %v924
    %976 = vrot.lane.b32.xlu0 %v974, 24
    %v977 = vpop.permute.xlu0 %976
    %vm979 = vcmask 228544
    %980 = vst.msk [vmem:[#allocation3] sm:$0xff] %vm979, %v977
    %v981 = vld [vmem:[#allocation2] sm:$0xff]
    %v982 = vpack.c.bf16 %v981, %v981
    %984 = vrot.lane.b32.xlu0 %v982, 100
    %v985 = vpop.permute.xlu0 %984
    %986 = vrot.lane.b32.xlu0 %v982, 68
    %v987 = vpop.permute.xlu0 %986
    %v989 = vsel %vm136, %v985, 0
    %v992 = vsel %vm136, %v987, 0
    %994 = vmatprep.subr.bf16.mxu0 0
    %995 = vmatpush1.bf16.xpose.msra.mxu0 0
    %996 = vmatprep.subr.bf16.mxu0 0
    %997 = vmatpush1.bf16.xpose.msra.mxu0 0
    %998 = vmatprep.subr.bf16.mxu0 0
    %999 = vmatpush1.bf16.xpose.msra.mxu0 0
    %1000 = vmatprep.subr.bf16.mxu0 0
    %1001 = vmatpush1.bf16.xpose.msra.mxu0 0
    %1002 = vmatprep.subr.bf16.mxu0 0
    %1003 = vmatpush1.bf16.xpose.msra.mxu0 0
    %1004 = vmatprep.subr.bf16.mxu0 0
    %1005 = vmatpush1.bf16.xpose.msra.mxu0 0
    %1006 = vmatprep.subr.bf16.mxu0 0
    %1007 = vmatpush1.bf16.xpose.msra.mxu0 0
    %1008 = vmatprep.subr.bf16.mxu0 0
    %1009 = vmatpush1.bf16.xpose.msra.mxu0 %v992
    %1010 = vmatprep.subr.bf16.mxu0 0
    %1011 = vmatpush2.bf16.xpose.msra.mxu0 0
    %1012 = vmatprep.subr.bf16.mxu0 0
    %1013 = vmatpush2.bf16.xpose.msra.mxu0 0
    %1014 = vmatprep.subr.bf16.mxu0 0
    %1015 = vmatpush2.bf16.xpose.msra.mxu0 0
    %1016 = vmatprep.subr.bf16.mxu0 0
    %1017 = vmatpush2.bf16.xpose.msra.mxu0 0
    %1018 = vmatprep.subr.bf16.mxu0 0
    %1019 = vmatpush2.bf16.xpose.msra.mxu0 0
    %1020 = vmatprep.subr.bf16.mxu0 0
    %1021 = vmatpush2.bf16.xpose.msra.mxu0 0
    %1022 = vmatprep.subr.bf16.mxu0 0
    %1023 = vmatpush2.bf16.xpose.msra.mxu0 0
    %1024 = vmatprep.subr.bf16.mxu0 0
    %1025 = vmatpush2.bf16.xpose.msra.mxu0 0
    %1026 = vmatprep.mubr.bf16.mxu0 0
    %1027 = vmatmul.mubr.bf16.gmra.mxu0 %v989
    %v1028 = vpop.f32.mrf.mxu0
    %v1029 = vadd.f32 0.0, %v1028
    %v1030 = vpop.f32.mrf.mxu0
    %v1031 = vpop.f32.mrf.mxu0
    %v1032 = vpop.f32.mrf.mxu0
    %1033 = vdwg.mxu0
    %v1034 = vsel %vm183, %v1029, -inf
    %1035 = vmax.xlane.f32.xlu0 %v1034
    %v1036 = vpop.xlane.xlu0 %1035
    %v1037 = vsub.f32 %v1029, %v1036
    %v1038 = vmul.f32 %v1037, 1.442695
    %v1039 = vpow.pop %v1038
    %v1040 = vsel %vm183, %v1039, 0.0
    %1041 = vadd.xlane.f32.xlu0 %v1040
    %v1042 = vpop.xlane.xlu0 %1041
    %v1043 = vrcp.pop %v1042
    %v1044 = vmul.f32 %v1042, %v1043
    %v1045 = vsub.f32 2.0, %v1044
    %v1046 = vmul.f32 %v1043, %v1045
    %v1047 = vpack.c.bf16 %v1039, %v1039
    %1048 = vrot.lane.b32.xlu0 %v982, 36
    %v1049 = vpop.permute.xlu0 %1048
    %v1051 = vsel %vm183, %v1047, 0
    %v1054 = vsel %vm203, %v1049, 0
    %1056 = vmatprep.subr.bf16.mxu0 0
    %1057 = vmatpush1.bf16.msra.mxu0 0
    %1058 = vmatprep.subr.bf16.mxu0 0
    %1059 = vmatpush1.bf16.msra.mxu0 0
    %1060 = vmatprep.subr.bf16.mxu0 0
    %1061 = vmatpush1.bf16.msra.mxu0 0
    %1062 = vmatprep.subr.bf16.mxu0 0
    %1063 = vmatpush1.bf16.msra.mxu0 0
    %1064 = vmatprep.subr.bf16.mxu0 0
    %1065 = vmatpush1.bf16.msra.mxu0 0
    %1066 = vmatprep.subr.bf16.mxu0 0
    %1067 = vmatpush1.bf16.msra.mxu0 0
    %1068 = vmatprep.subr.bf16.mxu0 0
    %1069 = vmatpush1.bf16.msra.mxu0 0
    %1070 = vmatprep.subr.bf16.mxu0 0
    %1071 = vmatpush1.bf16.msra.mxu0 %v1054
    %1072 = vmatprep.subr.bf16.mxu0 0
    %1073 = vmatpush2.bf16.msra.mxu0 0
    %1074 = vmatprep.subr.bf16.mxu0 0
    %1075 = vmatpush2.bf16.msra.mxu0 0
    %1076 = vmatprep.subr.bf16.mxu0 0
    %1077 = vmatpush2.bf16.msra.mxu0 0
    %1078 = vmatprep.subr.bf16.mxu0 0
    %1079 = vmatpush2.bf16.msra.mxu0 0
    %1080 = vmatprep.subr.bf16.mxu0 0
    %1081 = vmatpush2.bf16.msra.mxu0 0
    %1082 = vmatprep.subr.bf16.mxu0 0
    %1083 = vmatpush2.bf16.msra.mxu0 0
    %1084 = vmatprep.subr.bf16.mxu0 0
    %1085 = vmatpush2.bf16.msra.mxu0 0
    %1086 = vmatprep.subr.bf16.mxu0 0
    %1087 = vmatpush2.bf16.msra.mxu0 0
    %1088 = vmatprep.mubr.bf16.mxu0 0
    %1089 = vmatmul.mubr.bf16.gmra.mxu0 %v1051
    %v1090 = vpop.f32.mrf.mxu0
    %v1091 = vadd.f32 0.0, %v1090
    %v1092 = vpop.f32.mrf.mxu0
    %v1093 = vpop.f32.mrf.mxu0
    %v1094 = vpop.f32.mrf.mxu0
    %1095 = vdwg.mxu0
    %v1096 = vmul.f32 %v1091, %v1046
    %1098 = vrot.lane.b32.xlu0 %v1096, 28
    %v1099 = vpop.permute.xlu0 %1098
    %vm1101 = vcmask 261344
    %1102 = vst.msk [vmem:[#allocation3] sm:$0xff] %vm1101, %v1099
    %v1103 = vld [vmem:[#allocation2 + $0x8] sm:$0xff]
    %v1104 = vpack.c.bf16 %v1103, %v1103
    %1106 = vrot.lane.b32.xlu0 %v1104, 96
    %v1107 = vpop.permute.xlu0 %1106
    %v1109 = vsel %vm136, %v1104, 0
    %v1112 = vsel %vm136, %v1107, 0
    %1114 = vmatprep.subr.bf16.mxu0 0
    %1115 = vmatpush1.bf16.xpose.msra.mxu0 0
    %1116 = vmatprep.subr.bf16.mxu0 0
    %1117 = vmatpush1.bf16.xpose.msra.mxu0 0
    %1118 = vmatprep.subr.bf16.mxu0 0
    %1119 = vmatpush1.bf16.xpose.msra.mxu0 0
    %1120 = vmatprep.subr.bf16.mxu0 0
    %1121 = vmatpush1.bf16.xpose.msra.mxu0 0
    %1122 = vmatprep.subr.bf16.mxu0 0
    %1123 = vmatpush1.bf16.xpose.msra.mxu0 0
    %1124 = vmatprep.subr.bf16.mxu0 0
    %1125 = vmatpush1.bf16.xpose.msra.mxu0 0
    %1126 = vmatprep.subr.bf16.mxu0 0
    %1127 = vmatpush1.bf16.xpose.msra.mxu0 0
    %1128 = vmatprep.subr.bf16.mxu0 0
    %1129 = vmatpush1.bf16.xpose.msra.mxu0 %v1112
    %1130 = vmatprep.subr.bf16.mxu0 0
    %1131 = vmatpush2.bf16.xpose.msra.mxu0 0
    %1132 = vmatprep.subr.bf16.mxu0 0
    %1133 = vmatpush2.bf16.xpose.msra.mxu0 0
    %1134 = vmatprep.subr.bf16.mxu0 0
    %1135 = vmatpush2.bf16.xpose.msra.mxu0 0
    %1136 = vmatprep.subr.bf16.mxu0 0
    %1137 = vmatpush2.bf16.xpose.msra.mxu0 0
    %1138 = vmatprep.subr.bf16.mxu0 0
    %1139 = vmatpush2.bf16.xpose.msra.mxu0 0
    %1140 = vmatprep.subr.bf16.mxu0 0
    %1141 = vmatpush2.bf16.xpose.msra.mxu0 0
    %1142 = vmatprep.subr.bf16.mxu0 0
    %1143 = vmatpush2.bf16.xpose.msra.mxu0 0
    %1144 = vmatprep.subr.bf16.mxu0 0
    %1145 = vmatpush2.bf16.xpose.msra.mxu0 0
    %1146 = vmatprep.mubr.bf16.mxu0 0
    %1147 = vmatmul.mubr.bf16.gmra.mxu0 %v1109
    %v1148 = vpop.f32.mrf.mxu0
    %v1149 = vadd.f32 0.0, %v1148
    %v1150 = vpop.f32.mrf.mxu0
    %v1151 = vpop.f32.mrf.mxu0
    %v1152 = vpop.f32.mrf.mxu0
    %1153 = vdwg.mxu0
    %v1154 = vsel %vm183, %v1149, -inf
    %1155 = vmax.xlane.f32.xlu0 %v1154
    %v1156 = vpop.xlane.xlu0 %1155
    %v1157 = vsub.f32 %v1149, %v1156
    %v1158 = vmul.f32 %v1157, 1.442695
    %v1159 = vpow.pop %v1158
    %v1160 = vsel %vm183, %v1159, 0.0
    %1161 = vadd.xlane.f32.xlu0 %v1160
    %v1162 = vpop.xlane.xlu0 %1161
    %v1163 = vrcp.pop %v1162
    %v1164 = vmul.f32 %v1162, %v1163
    %v1165 = vsub.f32 2.0, %v1164
    %v1166 = vmul.f32 %v1163, %v1165
    %v1167 = vpack.c.bf16 %v1159, %v1159
    %1168 = vrot.lane.b32.xlu0 %v1104, 64
    %v1169 = vpop.permute.xlu0 %1168
    %v1171 = vsel %vm183, %v1167, 0
    %v1174 = vsel %vm203, %v1169, 0
    %1176 = vmatprep.subr.bf16.mxu0 0
    %1177 = vmatpush1.bf16.msra.mxu0 0
    %1178 = vmatprep.subr.bf16.mxu0 0
    %1179 = vmatpush1.bf16.msra.mxu0 0
    %1180 = vmatprep.subr.bf16.mxu0 0
    %1181 = vmatpush1.bf16.msra.mxu0 0
    %1182 = vmatprep.subr.bf16.mxu0 0
    %1183 = vmatpush1.bf16.msra.mxu0 0
    %1184 = vmatprep.subr.bf16.mxu0 0
    %1185 = vmatpush1.bf16.msra.mxu0 0
    %1186 = vmatprep.subr.bf16.mxu0 0
    %1187 = vmatpush1.bf16.msra.mxu0 0
    %1188 = vmatprep.subr.bf16.mxu0 0
    %1189 = vmatpush1.bf16.msra.mxu0 0
    %1190 = vmatprep.subr.bf16.mxu0 0
    %1191 = vmatpush1.bf16.msra.mxu0 %v1174
    %1192 = vmatprep.subr.bf16.mxu0 0
    %1193 = vmatpush2.bf16.msra.mxu0 0
    %1194 = vmatprep.subr.bf16.mxu0 0
    %1195 = vmatpush2.bf16.msra.mxu0 0
    %1196 = vmatprep.subr.bf16.mxu0 0
    %1197 = vmatpush2.bf16.msra.mxu0 0
    %1198 = vmatprep.subr.bf16.mxu0 0
    %1199 = vmatpush2.bf16.msra.mxu0 0
    %1200 = vmatprep.subr.bf16.mxu0 0
    %1201 = vmatpush2.bf16.msra.mxu0 0
    %1202 = vmatprep.subr.bf16.mxu0 0
    %1203 = vmatpush2.bf16.msra.mxu0 0
    %1204 = vmatprep.subr.bf16.mxu0 0
    %1205 = vmatpush2.bf16.msra.mxu0 0
    %1206 = vmatprep.subr.bf16.mxu0 0
    %1207 = vmatpush2.bf16.msra.mxu0 0
    %1208 = vmatprep.mubr.bf16.mxu0 0
    %1209 = vmatmul.mubr.bf16.gmra.mxu0 %v1171
    %v1210 = vpop.f32.mrf.mxu0
    %v1211 = vadd.f32 0.0, %v1210
    %v1212 = vpop.f32.mrf.mxu0
    %v1213 = vpop.f32.mrf.mxu0
    %v1214 = vpop.f32.mrf.mxu0
    %1215 = vdwg.mxu0
    %v1216 = vmul.f32 %v1211, %v1166
    %1217 = vst.msk [vmem:[#allocation3 + $0x8] sm:$0xff] %vm136, %v1216
    %v1218 = vld [vmem:[#allocation2 + $0x8] sm:$0xff]
    %v1219 = vpack.c.bf16 %v1218, %v1218
    %1221 = vrot.lane.b32.xlu0 %v1219, 124
    %v1222 = vpop.permute.xlu0 %1221
    %1223 = vrot.lane.b32.xlu0 %v1219, 92
    %v1224 = vpop.permute.xlu0 %1223
    %v1226 = vsel %vm136, %v1222, 0
    %v1229 = vsel %vm136, %v1224, 0
    %1231 = vmatprep.subr.bf16.mxu0 0
    %1232 = vmatpush1.bf16.xpose.msra.mxu0 0
    %1233 = vmatprep.subr.bf16.mxu0 0
    %1234 = vmatpush1.bf16.xpose.msra.mxu0 0
    %1235 = vmatprep.subr.bf16.mxu0 0
    %1236 = vmatpush1.bf16.xpose.msra.mxu0 0
    %1237 = vmatprep.subr.bf16.mxu0 0
    %1238 = vmatpush1.bf16.xpose.msra.mxu0 0
    %1239 = vmatprep.subr.bf16.mxu0 0
    %1240 = vmatpush1.bf16.xpose.msra.mxu0 0
    %1241 = vmatprep.subr.bf16.mxu0 0
    %1242 = vmatpush1.bf16.xpose.msra.mxu0 0
    %1243 = vmatprep.subr.bf16.mxu0 0
    %1244 = vmatpush1.bf16.xpose.msra.mxu0 0
    %1245 = vmatprep.subr.bf16.mxu0 0
    %1246 = vmatpush1.bf16.xpose.msra.mxu0 %v1229
    %1247 = vmatprep.subr.bf16.mxu0 0
    %1248 = vmatpush2.bf16.xpose.msra.mxu0 0
    %1249 = vmatprep.subr.bf16.mxu0 0
    %1250 = vmatpush2.bf16.xpose.msra.mxu0 0
    %1251 = vmatprep.subr.bf16.mxu0 0
    %1252 = vmatpush2.bf16.xpose.msra.mxu0 0
    %1253 = vmatprep.subr.bf16.mxu0 0
    %1254 = vmatpush2.bf16.xpose.msra.mxu0 0
    %1255 = vmatprep.subr.bf16.mxu0 0
    %1256 = vmatpush2.bf16.xpose.msra.mxu0 0
    %1257 = vmatprep.subr.bf16.mxu0 0
    %1258 = vmatpush2.bf16.xpose.msra.mxu0 0
    %1259 = vmatprep.subr.bf16.mxu0 0
    %1260 = vmatpush2.bf16.xpose.msra.mxu0 0
    %1261 = vmatprep.subr.bf16.mxu0 0
    %1262 = vmatpush2.bf16.xpose.msra.mxu0 0
    %1263 = vmatprep.mubr.bf16.mxu0 0
    %1264 = vmatmul.mubr.bf16.gmra.mxu0 %v1226
    %v1265 = vpop.f32.mrf.mxu0
    %v1266 = vadd.f32 0.0, %v1265
    %v1267 = vpop.f32.mrf.mxu0
    %v1268 = vpop.f32.mrf.mxu0
    %v1269 = vpop.f32.mrf.mxu0
    %1270 = vdwg.mxu0
    %v1271 = vsel %vm183, %v1266, -inf
    %1272 = vmax.xlane.f32.xlu0 %v1271
    %v1273 = vpop.xlane.xlu0 %1272
    %v1274 = vsub.f32 %v1266, %v1273
    %v1275 = vmul.f32 %v1274, 1.442695
    %v1276 = vpow.pop %v1275
    %v1277 = vsel %vm183, %v1276, 0.0
    %1278 = vadd.xlane.f32.xlu0 %v1277
    %v1279 = vpop.xlane.xlu0 %1278
    %v1280 = vrcp.pop %v1279
    %v1281 = vmul.f32 %v1279, %v1280
    %v1282 = vsub.f32 2.0, %v1281
    %v1283 = vmul.f32 %v1280, %v1282
    %v1284 = vpack.c.bf16 %v1276, %v1276
    %1285 = vrot.lane.b32.xlu0 %v1219, 60
    %v1286 = vpop.permute.xlu0 %1285
    %v1288 = vsel %vm183, %v1284, 0
    %v1291 = vsel %vm203, %v1286, 0
    %1293 = vmatprep.subr.bf16.mxu0 0
    %1294 = vmatpush1.bf16.msra.mxu0 0
    %1295 = vmatprep.subr.bf16.mxu0 0
    %1296 = vmatpush1.bf16.msra.mxu0 0
    %1297 = vmatprep.subr.bf16.mxu0 0
    %1298 = vmatpush1.bf16.msra.mxu0 0
    %1299 = vmatprep.subr.bf16.mxu0 0
    %1300 = vmatpush1.bf16.msra.mxu0 0
    %1301 = vmatprep.subr.bf16.mxu0 0
    %1302 = vmatpush1.bf16.msra.mxu0 0
    %1303 = vmatprep.subr.bf16.mxu0 0
    %1304 = vmatpush1.bf16.msra.mxu0 0
    %1305 = vmatprep.subr.bf16.mxu0 0
    %1306 = vmatpush1.bf16.msra.mxu0 0
    %1307 = vmatprep.subr.bf16.mxu0 0
    %1308 = vmatpush1.bf16.msra.mxu0 %v1291
    %1309 = vmatprep.subr.bf16.mxu0 0
    %1310 = vmatpush2.bf16.msra.mxu0 0
    %1311 = vmatprep.subr.bf16.mxu0 0
    %1312 = vmatpush2.bf16.msra.mxu0 0
    %1313 = vmatprep.subr.bf16.mxu0 0
    %1314 = vmatpush2.bf16.msra.mxu0 0
    %1315 = vmatprep.subr.bf16.mxu0 0
    %1316 = vmatpush2.bf16.msra.mxu0 0
    %1317 = vmatprep.subr.bf16.mxu0 0
    %1318 = vmatpush2.bf16.msra.mxu0 0
    %1319 = vmatprep.subr.bf16.mxu0 0
    %1320 = vmatpush2.bf16.msra.mxu0 0
    %1321 = vmatprep.subr.bf16.mxu0 0
    %1322 = vmatpush2.bf16.msra.mxu0 0
    %1323 = vmatprep.subr.bf16.mxu0 0
    %1324 = vmatpush2.bf16.msra.mxu0 0
    %1325 = vmatprep.mubr.bf16.mxu0 0
    %1326 = vmatmul.mubr.bf16.gmra.mxu0 %v1288
    %v1327 = vpop.f32.mrf.mxu0
    %v1328 = vadd.f32 0.0, %v1327
    %v1329 = vpop.f32.mrf.mxu0
    %v1330 = vpop.f32.mrf.mxu0
    %v1331 = vpop.f32.mrf.mxu0
    %1332 = vdwg.mxu0
    %v1333 = vmul.f32 %v1328, %v1283
    %1335 = vrot.lane.b32.xlu0 %v1333, 4
    %v1336 = vpop.permute.xlu0 %1335
    %1338 = vst.msk [vmem:[#allocation3 + $0x8] sm:$0xff] %vm369, %v1336
    %v1339 = vld [vmem:[#allocation2 + $0x8] sm:$0xff]
    %v1340 = vpack.c.bf16 %v1339, %v1339
    %1342 = vrot.lane.b32.xlu0 %v1340, 120
    %v1343 = vpop.permute.xlu0 %1342
    %1344 = vrot.lane.b32.xlu0 %v1340, 88
    %v1345 = vpop.permute.xlu0 %1344
    %v1347 = vsel %vm136, %v1343, 0
    %v1350 = vsel %vm136, %v1345, 0
    %1352 = vmatprep.subr.bf16.mxu0 0
    %1353 = vmatpush1.bf16.xpose.msra.mxu0 0
    %1354 = vmatprep.subr.bf16.mxu0 0
    %1355 = vmatpush1.bf16.xpose.msra.mxu0 0
    %1356 = vmatprep.subr.bf16.mxu0 0
    %1357 = vmatpush1.bf16.xpose.msra.mxu0 0
    %1358 = vmatprep.subr.bf16.mxu0 0
    %1359 = vmatpush1.bf16.xpose.msra.mxu0 0
    %1360 = vmatprep.subr.bf16.mxu0 0
    %1361 = vmatpush1.bf16.xpose.msra.mxu0 0
    %1362 = vmatprep.subr.bf16.mxu0 0
    %1363 = vmatpush1.bf16.xpose.msra.mxu0 0
    %1364 = vmatprep.subr.bf16.mxu0 0
    %1365 = vmatpush1.bf16.xpose.msra.mxu0 0
    %1366 = vmatprep.subr.bf16.mxu0 0
    %1367 = vmatpush1.bf16.xpose.msra.mxu0 %v1350
    %1368 = vmatprep.subr.bf16.mxu0 0
    %1369 = vmatpush2.bf16.xpose.msra.mxu0 0
    %1370 = vmatprep.subr.bf16.mxu0 0
    %1371 = vmatpush2.bf16.xpose.msra.mxu0 0
    %1372 = vmatprep.subr.bf16.mxu0 0
    %1373 = vmatpush2.bf16.xpose.msra.mxu0 0
    %1374 = vmatprep.subr.bf16.mxu0 0
    %1375 = vmatpush2.bf16.xpose.msra.mxu0 0
    %1376 = vmatprep.subr.bf16.mxu0 0
    %1377 = vmatpush2.bf16.xpose.msra.mxu0 0
    %1378 = vmatprep.subr.bf16.mxu0 0
    %1379 = vmatpush2.bf16.xpose.msra.mxu0 0
    %1380 = vmatprep.subr.bf16.mxu0 0
    %1381 = vmatpush2.bf16.xpose.msra.mxu0 0
    %1382 = vmatprep.subr.bf16.mxu0 0
    %1383 = vmatpush2.bf16.xpose.msra.mxu0 0
    %1384 = vmatprep.mubr.bf16.mxu0 0
    %1385 = vmatmul.mubr.bf16.gmra.mxu0 %v1347
    %v1386 = vpop.f32.mrf.mxu0
    %v1387 = vadd.f32 0.0, %v1386
    %v1388 = vpop.f32.mrf.mxu0
    %v1389 = vpop.f32.mrf.mxu0
    %v1390 = vpop.f32.mrf.mxu0
    %1391 = vdwg.mxu0
    %v1392 = vsel %vm183, %v1387, -inf
    %1393 = vmax.xlane.f32.xlu0 %v1392
    %v1394 = vpop.xlane.xlu0 %1393
    %v1395 = vsub.f32 %v1387, %v1394
    %v1396 = vmul.f32 %v1395, 1.442695
    %v1397 = vpow.pop %v1396
    %v1398 = vsel %vm183, %v1397, 0.0
    %1399 = vadd.xlane.f32.xlu0 %v1398
    %v1400 = vpop.xlane.xlu0 %1399
    %v1401 = vrcp.pop %v1400
    %v1402 = vmul.f32 %v1400, %v1401
    %v1403 = vsub.f32 2.0, %v1402
    %v1404 = vmul.f32 %v1401, %v1403
    %v1405 = vpack.c.bf16 %v1397, %v1397
    %1406 = vrot.lane.b32.xlu0 %v1340, 56
    %v1407 = vpop.permute.xlu0 %1406
    %v1409 = vsel %vm183, %v1405, 0
    %v1412 = vsel %vm203, %v1407, 0
    %1414 = vmatprep.subr.bf16.mxu0 0
    %1415 = vmatpush1.bf16.msra.mxu0 0
    %1416 = vmatprep.subr.bf16.mxu0 0
    %1417 = vmatpush1.bf16.msra.mxu0 0
    %1418 = vmatprep.subr.bf16.mxu0 0
    %1419 = vmatpush1.bf16.msra.mxu0 0
    %1420 = vmatprep.subr.bf16.mxu0 0
    %1421 = vmatpush1.bf16.msra.mxu0 0
    %1422 = vmatprep.subr.bf16.mxu0 0
    %1423 = vmatpush1.bf16.msra.mxu0 0
    %1424 = vmatprep.subr.bf16.mxu0 0
    %1425 = vmatpush1.bf16.msra.mxu0 0
    %1426 = vmatprep.subr.bf16.mxu0 0
    %1427 = vmatpush1.bf16.msra.mxu0 0
    %1428 = vmatprep.subr.bf16.mxu0 0
    %1429 = vmatpush1.bf16.msra.mxu0 %v1412
    %1430 = vmatprep.subr.bf16.mxu0 0
    %1431 = vmatpush2.bf16.msra.mxu0 0
    %1432 = vmatprep.subr.bf16.mxu0 0
    %1433 = vmatpush2.bf16.msra.mxu0 0
    %1434 = vmatprep.subr.bf16.mxu0 0
    %1435 = vmatpush2.bf16.msra.mxu0 0
    %1436 = vmatprep.subr.bf16.mxu0 0
    %1437 = vmatpush2.bf16.msra.mxu0 0
    %1438 = vmatprep.subr.bf16.mxu0 0
    %1439 = vmatpush2.bf16.msra.mxu0 0
    %1440 = vmatprep.subr.bf16.mxu0 0
    %1441 = vmatpush2.bf16.msra.mxu0 0
    %1442 = vmatprep.subr.bf16.mxu0 0
    %1443 = vmatpush2.bf16.msra.mxu0 0
    %1444 = vmatprep.subr.bf16.mxu0 0
    %1445 = vmatpush2.bf16.msra.mxu0 0
    %1446 = vmatprep.mubr.bf16.mxu0 0
    %1447 = vmatmul.mubr.bf16.gmra.mxu0 %v1409
    %v1448 = vpop.f32.mrf.mxu0
    %v1449 = vadd.f32 0.0, %v1448
    %v1450 = vpop.f32.mrf.mxu0
    %v1451 = vpop.f32.mrf.mxu0
    %v1452 = vpop.f32.mrf.mxu0
    %1453 = vdwg.mxu0
    %v1454 = vmul.f32 %v1449, %v1404
    %1456 = vrot.lane.b32.xlu0 %v1454, 8
    %v1457 = vpop.permute.xlu0 %1456
    %1459 = vst.msk [vmem:[#allocation3 + $0x8] sm:$0xff] %vm491, %v1457
    %v1460 = vld [vmem:[#allocation2 + $0x8] sm:$0xff]
    %v1461 = vpack.c.bf16 %v1460, %v1460
    %1463 = vrot.lane.b32.xlu0 %v1461, 116
    %v1464 = vpop.permute.xlu0 %1463
    %1465 = vrot.lane.b32.xlu0 %v1461, 84
    %v1466 = vpop.permute.xlu0 %1465
    %v1468 = vsel %vm136, %v1464, 0
    %v1471 = vsel %vm136, %v1466, 0
    %1473 = vmatprep.subr.bf16.mxu0 0
    %1474 = vmatpush1.bf16.xpose.msra.mxu0 0
    %1475 = vmatprep.subr.bf16.mxu0 0
    %1476 = vmatpush1.bf16.xpose.msra.mxu0 0
    %1477 = vmatprep.subr.bf16.mxu0 0
    %1478 = vmatpush1.bf16.xpose.msra.mxu0 0
    %1479 = vmatprep.subr.bf16.mxu0 0
    %1480 = vmatpush1.bf16.xpose.msra.mxu0 0
    %1481 = vmatprep.subr.bf16.mxu0 0
    %1482 = vmatpush1.bf16.xpose.msra.mxu0 0
    %1483 = vmatprep.subr.bf16.mxu0 0
    %1484 = vmatpush1.bf16.xpose.msra.mxu0 0
    %1485 = vmatprep.subr.bf16.mxu0 0
    %1486 = vmatpush1.bf16.xpose.msra.mxu0 0
    %1487 = vmatprep.subr.bf16.mxu0 0
    %1488 = vmatpush1.bf16.xpose.msra.mxu0 %v1471
    %1489 = vmatprep.subr.bf16.mxu0 0
    %1490 = vmatpush2.bf16.xpose.msra.mxu0 0
    %1491 = vmatprep.subr.bf16.mxu0 0
    %1492 = vmatpush2.bf16.xpose.msra.mxu0 0
    %1493 = vmatprep.subr.bf16.mxu0 0
    %1494 = vmatpush2.bf16.xpose.msra.mxu0 0
    %1495 = vmatprep.subr.bf16.mxu0 0
    %1496 = vmatpush2.bf16.xpose.msra.mxu0 0
    %1497 = vmatprep.subr.bf16.mxu0 0
    %1498 = vmatpush2.bf16.xpose.msra.mxu0 0
    %1499 = vmatprep.subr.bf16.mxu0 0
    %1500 = vmatpush2.bf16.xpose.msra.mxu0 0
    %1501 = vmatprep.subr.bf16.mxu0 0
    %1502 = vmatpush2.bf16.xpose.msra.mxu0 0
    %1503 = vmatprep.subr.bf16.mxu0 0
    %1504 = vmatpush2.bf16.xpose.msra.mxu0 0
    %1505 = vmatprep.mubr.bf16.mxu0 0
    %1506 = vmatmul.mubr.bf16.gmra.mxu0 %v1468
    %v1507 = vpop.f32.mrf.mxu0
    %v1508 = vadd.f32 0.0, %v1507
    %v1509 = vpop.f32.mrf.mxu0
    %v1510 = vpop.f32.mrf.mxu0
    %v1511 = vpop.f32.mrf.mxu0
    %1512 = vdwg.mxu0
    %v1513 = vsel %vm183, %v1508, -inf
    %1514 = vmax.xlane.f32.xlu0 %v1513
    %v1515 = vpop.xlane.xlu0 %1514
    %v1516 = vsub.f32 %v1508, %v1515
    %v1517 = vmul.f32 %v1516, 1.442695
    %v1518 = vpow.pop %v1517
    %v1519 = vsel %vm183, %v1518, 0.0
    %1520 = vadd.xlane.f32.xlu0 %v1519
    %v1521 = vpop.xlane.xlu0 %1520
    %v1522 = vrcp.pop %v1521
    %v1523 = vmul.f32 %v1521, %v1522
    %v1524 = vsub.f32 2.0, %v1523
    %v1525 = vmul.f32 %v1522, %v1524
    %v1526 = vpack.c.bf16 %v1518, %v1518
    %1527 = vrot.lane.b32.xlu0 %v1461, 52
    %v1528 = vpop.permute.xlu0 %1527
    %v1530 = vsel %vm183, %v1526, 0
    %v1533 = vsel %vm203, %v1528, 0
    %1535 = vmatprep.subr.bf16.mxu0 0
    %1536 = vmatpush1.bf16.msra.mxu0 0
    %1537 = vmatprep.subr.bf16.mxu0 0
    %1538 = vmatpush1.bf16.msra.mxu0 0
    %1539 = vmatprep.subr.bf16.mxu0 0
    %1540 = vmatpush1.bf16.msra.mxu0 0
    %1541 = vmatprep.subr.bf16.mxu0 0
    %1542 = vmatpush1.bf16.msra.mxu0 0
    %1543 = vmatprep.subr.bf16.mxu0 0
    %1544 = vmatpush1.bf16.msra.mxu0 0
    %1545 = vmatprep.subr.bf16.mxu0 0
    %1546 = vmatpush1.bf16.msra.mxu0 0
    %1547 = vmatprep.subr.bf16.mxu0 0
    %1548 = vmatpush1.bf16.msra.mxu0 0
    %1549 = vmatprep.subr.bf16.mxu0 0
    %1550 = vmatpush1.bf16.msra.mxu0 %v1533
    %1551 = vmatprep.subr.bf16.mxu0 0
    %1552 = vmatpush2.bf16.msra.mxu0 0
    %1553 = vmatprep.subr.bf16.mxu0 0
    %1554 = vmatpush2.bf16.msra.mxu0 0
    %1555 = vmatprep.subr.bf16.mxu0 0
    %1556 = vmatpush2.bf16.msra.mxu0 0
    %1557 = vmatprep.subr.bf16.mxu0 0
    %1558 = vmatpush2.bf16.msra.mxu0 0
    %1559 = vmatprep.subr.bf16.mxu0 0
    %1560 = vmatpush2.bf16.msra.mxu0 0
    %1561 = vmatprep.subr.bf16.mxu0 0
    %1562 = vmatpush2.bf16.msra.mxu0 0
    %1563 = vmatprep.subr.bf16.mxu0 0
    %1564 = vmatpush2.bf16.msra.mxu0 0
    %1565 = vmatprep.subr.bf16.mxu0 0
    %1566 = vmatpush2.bf16.msra.mxu0 0
    %1567 = vmatprep.mubr.bf16.mxu0 0
    %1568 = vmatmul.mubr.bf16.gmra.mxu0 %v1530
    %v1569 = vpop.f32.mrf.mxu0
    %v1570 = vadd.f32 0.0, %v1569
    %v1571 = vpop.f32.mrf.mxu0
    %v1572 = vpop.f32.mrf.mxu0
    %v1573 = vpop.f32.mrf.mxu0
    %1574 = vdwg.mxu0
    %v1575 = vmul.f32 %v1570, %v1525
    %1577 = vrot.lane.b32.xlu0 %v1575, 12
    %v1578 = vpop.permute.xlu0 %1577
    %1580 = vst.msk [vmem:[#allocation3 + $0x8] sm:$0xff] %vm613, %v1578
    %v1581 = vld [vmem:[#allocation2 + $0x8] sm:$0xff]
    %v1582 = vpack.c.bf16 %v1581, %v1581
    %1584 = vrot.lane.b32.xlu0 %v1582, 112
    %v1585 = vpop.permute.xlu0 %1584
    %1586 = vrot.lane.b32.xlu0 %v1582, 80
    %v1587 = vpop.permute.xlu0 %1586
    %v1589 = vsel %vm136, %v1585, 0
    %v1592 = vsel %vm136, %v1587, 0
    %1594 = vmatprep.subr.bf16.mxu0 0
    %1595 = vmatpush1.bf16.xpose.msra.mxu0 0
    %1596 = vmatprep.subr.bf16.mxu0 0
    %1597 = vmatpush1.bf16.xpose.msra.mxu0 0
    %1598 = vmatprep.subr.bf16.mxu0 0
    %1599 = vmatpush1.bf16.xpose.msra.mxu0 0
    %1600 = vmatprep.subr.bf16.mxu0 0
    %1601 = vmatpush1.bf16.xpose.msra.mxu0 0
    %1602 = vmatprep.subr.bf16.mxu0 0
    %1603 = vmatpush1.bf16.xpose.msra.mxu0 0
    %1604 = vmatprep.subr.bf16.mxu0 0
    %1605 = vmatpush1.bf16.xpose.msra.mxu0 0
    %1606 = vmatprep.subr.bf16.mxu0 0
    %1607 = vmatpush1.bf16.xpose.msra.mxu0 0
    %1608 = vmatprep.subr.bf16.mxu0 0
    %1609 = vmatpush1.bf16.xpose.msra.mxu0 %v1592
    %1610 = vmatprep.subr.bf16.mxu0 0
    %1611 = vmatpush2.bf16.xpose.msra.mxu0 0
    %1612 = vmatprep.subr.bf16.mxu0 0
    %1613 = vmatpush2.bf16.xpose.msra.mxu0 0
    %1614 = vmatprep.subr.bf16.mxu0 0
    %1615 = vmatpush2.bf16.xpose.msra.mxu0 0
    %1616 = vmatprep.subr.bf16.mxu0 0
    %1617 = vmatpush2.bf16.xpose.msra.mxu0 0
    %1618 = vmatprep.subr.bf16.mxu0 0
    %1619 = vmatpush2.bf16.xpose.msra.mxu0 0
    %1620 = vmatprep.subr.bf16.mxu0 0
    %1621 = vmatpush2.bf16.xpose.msra.mxu0 0
    %1622 = vmatprep.subr.bf16.mxu0 0
    %1623 = vmatpush2.bf16.xpose.msra.mxu0 0
    %1624 = vmatprep.subr.bf16.mxu0 0
    %1625 = vmatpush2.bf16.xpose.msra.mxu0 0
    %1626 = vmatprep.mubr.bf16.mxu0 0
    %1627 = vmatmul.mubr.bf16.gmra.mxu0 %v1589
    %v1628 = vpop.f32.mrf.mxu0
    %v1629 = vadd.f32 0.0, %v1628
    %v1630 = vpop.f32.mrf.mxu0
    %v1631 = vpop.f32.mrf.mxu0
    %v1632 = vpop.f32.mrf.mxu0
    %1633 = vdwg.mxu0
    %v1634 = vsel %vm183, %v1629, -inf
    %1635 = vmax.xlane.f32.xlu0 %v1634
    %v1636 = vpop.xlane.xlu0 %1635
    %v1637 = vsub.f32 %v1629, %v1636
    %v1638 = vmul.f32 %v1637, 1.442695
    %v1639 = vpow.pop %v1638
    %v1640 = vsel %vm183, %v1639, 0.0
    %1641 = vadd.xlane.f32.xlu0 %v1640
    %v1642 = vpop.xlane.xlu0 %1641
    %v1643 = vrcp.pop %v1642
    %v1644 = vmul.f32 %v1642, %v1643
    %v1645 = vsub.f32 2.0, %v1644
    %v1646 = vmul.f32 %v1643, %v1645
    %v1647 = vpack.c.bf16 %v1639, %v1639
    %1648 = vrot.lane.b32.xlu0 %v1582, 48
    %v1649 = vpop.permute.xlu0 %1648
    %v1651 = vsel %vm183, %v1647, 0
    %v1654 = vsel %vm203, %v1649, 0
    %1656 = vmatprep.subr.bf16.mxu0 0
    %1657 = vmatpush1.bf16.msra.mxu0 0
    %1658 = vmatprep.subr.bf16.mxu0 0
    %1659 = vmatpush1.bf16.msra.mxu0 0
    %1660 = vmatprep.subr.bf16.mxu0 0
    %1661 = vmatpush1.bf16.msra.mxu0 0
    %1662 = vmatprep.subr.bf16.mxu0 0
    %1663 = vmatpush1.bf16.msra.mxu0 0
    %1664 = vmatprep.subr.bf16.mxu0 0
    %1665 = vmatpush1.bf16.msra.mxu0 0
    %1666 = vmatprep.subr.bf16.mxu0 0
    %1667 = vmatpush1.bf16.msra.mxu0 0
    %1668 = vmatprep.subr.bf16.mxu0 0
    %1669 = vmatpush1.bf16.msra.mxu0 0
    %1670 = vmatprep.subr.bf16.mxu0 0
    %1671 = vmatpush1.bf16.msra.mxu0 %v1654
    %1672 = vmatprep.subr.bf16.mxu0 0
    %1673 = vmatpush2.bf16.msra.mxu0 0
    %1674 = vmatprep.subr.bf16.mxu0 0
    %1675 = vmatpush2.bf16.msra.mxu0 0
    %1676 = vmatprep.subr.bf16.mxu0 0
    %1677 = vmatpush2.bf16.msra.mxu0 0
    %1678 = vmatprep.subr.bf16.mxu0 0
    %1679 = vmatpush2.bf16.msra.mxu0 0
    %1680 = vmatprep.subr.bf16.mxu0 0
    %1681 = vmatpush2.bf16.msra.mxu0 0
    %1682 = vmatprep.subr.bf16.mxu0 0
    %1683 = vmatpush2.bf16.msra.mxu0 0
    %1684 = vmatprep.subr.bf16.mxu0 0
    %1685 = vmatpush2.bf16.msra.mxu0 0
    %1686 = vmatprep.subr.bf16.mxu0 0
    %1687 = vmatpush2.bf16.msra.mxu0 0
    %1688 = vmatprep.mubr.bf16.mxu0 0
    %1689 = vmatmul.mubr.bf16.gmra.mxu0 %v1651
    %v1690 = vpop.f32.mrf.mxu0
    %v1691 = vadd.f32 0.0, %v1690
    %v1692 = vpop.f32.mrf.mxu0
    %v1693 = vpop.f32.mrf.mxu0
    %v1694 = vpop.f32.mrf.mxu0
    %1695 = vdwg.mxu0
    %v1696 = vmul.f32 %v1691, %v1646
    %1698 = vrot.lane.b32.xlu0 %v1696, 16
    %v1699 = vpop.permute.xlu0 %1698
    %1701 = vst.msk [vmem:[#allocation3 + $0x8] sm:$0xff] %vm735, %v1699
    %v1702 = vld [vmem:[#allocation2 + $0x8] sm:$0xff]
    %v1703 = vpack.c.bf16 %v1702, %v1702
    %1705 = vrot.lane.b32.xlu0 %v1703, 108
    %v1706 = vpop.permute.xlu0 %1705
    %1707 = vrot.lane.b32.xlu0 %v1703, 76
    %v1708 = vpop.permute.xlu0 %1707
    %v1710 = vsel %vm136, %v1706, 0
    %v1713 = vsel %vm136, %v1708, 0
    %1715 = vmatprep.subr.bf16.mxu0 0
    %1716 = vmatpush1.bf16.xpose.msra.mxu0 0
    %1717 = vmatprep.subr.bf16.mxu0 0
    %1718 = vmatpush1.bf16.xpose.msra.mxu0 0
    %1719 = vmatprep.subr.bf16.mxu0 0
    %1720 = vmatpush1.bf16.xpose.msra.mxu0 0
    %1721 = vmatprep.subr.bf16.mxu0 0
    %1722 = vmatpush1.bf16.xpose.msra.mxu0 0
    %1723 = vmatprep.subr.bf16.mxu0 0
    %1724 = vmatpush1.bf16.xpose.msra.mxu0 0
    %1725 = vmatprep.subr.bf16.mxu0 0
    %1726 = vmatpush1.bf16.xpose.msra.mxu0 0
    %1727 = vmatprep.subr.bf16.mxu0 0
    %1728 = vmatpush1.bf16.xpose.msra.mxu0 0
    %1729 = vmatprep.subr.bf16.mxu0 0
    %1730 = vmatpush1.bf16.xpose.msra.mxu0 %v1713
    %1731 = vmatprep.subr.bf16.mxu0 0
    %1732 = vmatpush2.bf16.xpose.msra.mxu0 0
    %1733 = vmatprep.subr.bf16.mxu0 0
    %1734 = vmatpush2.bf16.xpose.msra.mxu0 0
    %1735 = vmatprep.subr.bf16.mxu0 0
    %1736 = vmatpush2.bf16.xpose.msra.mxu0 0
    %1737 = vmatprep.subr.bf16.mxu0 0
    %1738 = vmatpush2.bf16.xpose.msra.mxu0 0
    %1739 = vmatprep.subr.bf16.mxu0 0
    %1740 = vmatpush2.bf16.xpose.msra.mxu0 0
    %1741 = vmatprep.subr.bf16.mxu0 0
    %1742 = vmatpush2.bf16.xpose.msra.mxu0 0
    %1743 = vmatprep.subr.bf16.mxu0 0
    %1744 = vmatpush2.bf16.xpose.msra.mxu0 0
    %1745 = vmatprep.subr.bf16.mxu0 0
    %1746 = vmatpush2.bf16.xpose.msra.mxu0 0
    %1747 = vmatprep.mubr.bf16.mxu0 0
    %1748 = vmatmul.mubr.bf16.gmra.mxu0 %v1710
    %v1749 = vpop.f32.mrf.mxu0
    %v1750 = vadd.f32 0.0, %v1749
    %v1751 = vpop.f32.mrf.mxu0
    %v1752 = vpop.f32.mrf.mxu0
    %v1753 = vpop.f32.mrf.mxu0
    %1754 = vdwg.mxu0
    %v1755 = vsel %vm183, %v1750, -inf
    %1756 = vmax.xlane.f32.xlu0 %v1755
    %v1757 = vpop.xlane.xlu0 %1756
    %v1758 = vsub.f32 %v1750, %v1757
    %v1759 = vmul.f32 %v1758, 1.442695
    %v1760 = vpow.pop %v1759
    %v1761 = vsel %vm183, %v1760, 0.0
    %1762 = vadd.xlane.f32.xlu0 %v1761
    %v1763 = vpop.xlane.xlu0 %1762
    %v1764 = vrcp.pop %v1763
    %v1765 = vmul.f32 %v1763, %v1764
    %v1766 = vsub.f32 2.0, %v1765
    %v1767 = vmul.f32 %v1764, %v1766
    %v1768 = vpack.c.bf16 %v1760, %v1760
    %1769 = vrot.lane.b32.xlu0 %v1703, 44
    %v1770 = vpop.permute.xlu0 %1769
    %v1772 = vsel %vm183, %v1768, 0
    %v1775 = vsel %vm203, %v1770, 0
    %1777 = vmatprep.subr.bf16.mxu0 0
    %1778 = vmatpush1.bf16.msra.mxu0 0
    %1779 = vmatprep.subr.bf16.mxu0 0
    %1780 = vmatpush1.bf16.msra.mxu0 0
    %1781 = vmatprep.subr.bf16.mxu0 0
    %1782 = vmatpush1.bf16.msra.mxu0 0
    %1783 = vmatprep.subr.bf16.mxu0 0
    %1784 = vmatpush1.bf16.msra.mxu0 0
    %1785 = vmatprep.subr.bf16.mxu0 0
    %1786 = vmatpush1.bf16.msra.mxu0 0
    %1787 = vmatprep.subr.bf16.mxu0 0
    %1788 = vmatpush1.bf16.msra.mxu0 0
    %1789 = vmatprep.subr.bf16.mxu0 0
    %1790 = vmatpush1.bf16.msra.mxu0 0
    %1791 = vmatprep.subr.bf16.mxu0 0
    %1792 = vmatpush1.bf16.msra.mxu0 %v1775
    %1793 = vmatprep.subr.bf16.mxu0 0
    %1794 = vmatpush2.bf16.msra.mxu0 0
    %1795 = vmatprep.subr.bf16.mxu0 0
    %1796 = vmatpush2.bf16.msra.mxu0 0
    %1797 = vmatprep.subr.bf16.mxu0 0
    %1798 = vmatpush2.bf16.msra.mxu0 0
    %1799 = vmatprep.subr.bf16.mxu0 0
    %1800 = vmatpush2.bf16.msra.mxu0 0
    %1801 = vmatprep.subr.bf16.mxu0 0
    %1802 = vmatpush2.bf16.msra.mxu0 0
    %1803 = vmatprep.subr.bf16.mxu0 0
    %1804 = vmatpush2.bf16.msra.mxu0 0
    %1805 = vmatprep.subr.bf16.mxu0 0
    %1806 = vmatpush2.bf16.msra.mxu0 0
    %1807 = vmatprep.subr.bf16.mxu0 0
    %1808 = vmatpush2.bf16.msra.mxu0 0
    %1809 = vmatprep.mubr.bf16.mxu0 0
    %1810 = vmatmul.mubr.bf16.gmra.mxu0 %v1772
    %v1811 = vpop.f32.mrf.mxu0
    %v1812 = vadd.f32 0.0, %v1811
    %v1813 = vpop.f32.mrf.mxu0
    %v1814 = vpop.f32.mrf.mxu0
    %v1815 = vpop.f32.mrf.mxu0
    %1816 = vdwg.mxu0
    %v1817 = vmul.f32 %v1812, %v1767
    %1819 = vrot.lane.b32.xlu0 %v1817, 20
    %v1820 = vpop.permute.xlu0 %1819
    %1822 = vst.msk [vmem:[#allocation3 + $0x8] sm:$0xff] %vm857, %v1820
    %v1823 = vld [vmem:[#allocation2 + $0x8] sm:$0xff]
    %v1824 = vpack.c.bf16 %v1823, %v1823
    %1826 = vrot.lane.b32.xlu0 %v1824, 104
    %v1827 = vpop.permute.xlu0 %1826
    %1828 = vrot.lane.b32.xlu0 %v1824, 72
    %v1829 = vpop.permute.xlu0 %1828
    %v1831 = vsel %vm136, %v1827, 0
    %v1834 = vsel %vm136, %v1829, 0
    %1836 = vmatprep.subr.bf16.mxu0 0
    %1837 = vmatpush1.bf16.xpose.msra.mxu0 0
    %1838 = vmatprep.subr.bf16.mxu0 0
    %1839 = vmatpush1.bf16.xpose.msra.mxu0 0
    %1840 = vmatprep.subr.bf16.mxu0 0
    %1841 = vmatpush1.bf16.xpose.msra.mxu0 0
    %1842 = vmatprep.subr.bf16.mxu0 0
    %1843 = vmatpush1.bf16.xpose.msra.mxu0 0
    %1844 = vmatprep.subr.bf16.mxu0 0
    %1845 = vmatpush1.bf16.xpose.msra.mxu0 0
    %1846 = vmatprep.subr.bf16.mxu0 0
    %1847 = vmatpush1.bf16.xpose.msra.mxu0 0
    %1848 = vmatprep.subr.bf16.mxu0 0
    %1849 = vmatpush1.bf16.xpose.msra.mxu0 0
    %1850 = vmatprep.subr.bf16.mxu0 0
    %1851 = vmatpush1.bf16.xpose.msra.mxu0 %v1834
    %1852 = vmatprep.subr.bf16.mxu0 0
    %1853 = vmatpush2.bf16.xpose.msra.mxu0 0
    %1854 = vmatprep.subr.bf16.mxu0 0
    %1855 = vmatpush2.bf16.xpose.msra.mxu0 0
    %1856 = vmatprep.subr.bf16.mxu0 0
    %1857 = vmatpush2.bf16.xpose.msra.mxu0 0
    %1858 = vmatprep.subr.bf16.mxu0 0
    %1859 = vmatpush2.bf16.xpose.msra.mxu0 0
    %1860 = vmatprep.subr.bf16.mxu0 0
    %1861 = vmatpush2.bf16.xpose.msra.mxu0 0
    %1862 = vmatprep.subr.bf16.mxu0 0
    %1863 = vmatpush2.bf16.xpose.msra.mxu0 0
    %1864 = vmatprep.subr.bf16.mxu0 0
    %1865 = vmatpush2.bf16.xpose.msra.mxu0 0
    %1866 = vmatprep.subr.bf16.mxu0 0
    %1867 = vmatpush2.bf16.xpose.msra.mxu0 0
    %1868 = vmatprep.mubr.bf16.mxu0 0
    %1869 = vmatmul.mubr.bf16.gmra.mxu0 %v1831
    %v1870 = vpop.f32.mrf.mxu0
    %v1871 = vadd.f32 0.0, %v1870
    %v1872 = vpop.f32.mrf.mxu0
    %v1873 = vpop.f32.mrf.mxu0
    %v1874 = vpop.f32.mrf.mxu0
    %1875 = vdwg.mxu0
    %v1876 = vsel %vm183, %v1871, -inf
    %1877 = vmax.xlane.f32.xlu0 %v1876
    %v1878 = vpop.xlane.xlu0 %1877
    %v1879 = vsub.f32 %v1871, %v1878
    %v1880 = vmul.f32 %v1879, 1.442695
    %v1881 = vpow.pop %v1880
    %v1882 = vsel %vm183, %v1881, 0.0
    %1883 = vadd.xlane.f32.xlu0 %v1882
    %v1884 = vpop.xlane.xlu0 %1883
    %v1885 = vrcp.pop %v1884
    %v1886 = vmul.f32 %v1884, %v1885
    %v1887 = vsub.f32 2.0, %v1886
    %v1888 = vmul.f32 %v1885, %v1887
    %v1889 = vpack.c.bf16 %v1881, %v1881
    %1890 = vrot.lane.b32.xlu0 %v1824, 40
    %v1891 = vpop.permute.xlu0 %1890
    %v1893 = vsel %vm183, %v1889, 0
    %v1896 = vsel %vm203, %v1891, 0
    %1898 = vmatprep.subr.bf16.mxu0 0
    %1899 = vmatpush1.bf16.msra.mxu0 0
    %1900 = vmatprep.subr.bf16.mxu0 0
    %1901 = vmatpush1.bf16.msra.mxu0 0
    %1902 = vmatprep.subr.bf16.mxu0 0
    %1903 = vmatpush1.bf16.msra.mxu0 0
    %1904 = vmatprep.subr.bf16.mxu0 0
    %1905 = vmatpush1.bf16.msra.mxu0 0
    %1906 = vmatprep.subr.bf16.mxu0 0
    %1907 = vmatpush1.bf16.msra.mxu0 0
    %1908 = vmatprep.subr.bf16.mxu0 0
    %1909 = vmatpush1.bf16.msra.mxu0 0
    %1910 = vmatprep.subr.bf16.mxu0 0
    %1911 = vmatpush1.bf16.msra.mxu0 0
    %1912 = vmatprep.subr.bf16.mxu0 0
    %1913 = vmatpush1.bf16.msra.mxu0 %v1896
    %1914 = vmatprep.subr.bf16.mxu0 0
    %1915 = vmatpush2.bf16.msra.mxu0 0
    %1916 = vmatprep.subr.bf16.mxu0 0
    %1917 = vmatpush2.bf16.msra.mxu0 0
    %1918 = vmatprep.subr.bf16.mxu0 0
    %1919 = vmatpush2.bf16.msra.mxu0 0
    %1920 = vmatprep.subr.bf16.mxu0 0
    %1921 = vmatpush2.bf16.msra.mxu0 0
    %1922 = vmatprep.subr.bf16.mxu0 0
    %1923 = vmatpush2.bf16.msra.mxu0 0
    %1924 = vmatprep.subr.bf16.mxu0 0
    %1925 = vmatpush2.bf16.msra.mxu0 0
    %1926 = vmatprep.subr.bf16.mxu0 0
    %1927 = vmatpush2.bf16.msra.mxu0 0
    %1928 = vmatprep.subr.bf16.mxu0 0
    %1929 = vmatpush2.bf16.msra.mxu0 0
    %1930 = vmatprep.mubr.bf16.mxu0 0
    %1931 = vmatmul.mubr.bf16.gmra.mxu0 %v1893
    %v1932 = vpop.f32.mrf.mxu0
    %v1933 = vadd.f32 0.0, %v1932
    %v1934 = vpop.f32.mrf.mxu0
    %v1935 = vpop.f32.mrf.mxu0
    %v1936 = vpop.f32.mrf.mxu0
    %1937 = vdwg.mxu0
    %v1938 = vmul.f32 %v1933, %v1888
    %1940 = vrot.lane.b32.xlu0 %v1938, 24
    %v1941 = vpop.permute.xlu0 %1940
    %1943 = vst.msk [vmem:[#allocation3 + $0x8] sm:$0xff] %vm979, %v1941
    %v1944 = vld [vmem:[#allocation2 + $0x8] sm:$0xff]
    %v1945 = vpack.c.bf16 %v1944, %v1944
    %1947 = vrot.lane.b32.xlu0 %v1945, 100
    %v1948 = vpop.permute.xlu0 %1947
    %1949 = vrot.lane.b32.xlu0 %v1945, 68
    %v1950 = vpop.permute.xlu0 %1949
    %v1952 = vsel %vm136, %v1948, 0
    %v1955 = vsel %vm136, %v1950, 0
    %1957 = vmatprep.subr.bf16.mxu0 0
    %1958 = vmatpush1.bf16.xpose.msra.mxu0 0
    %1959 = vmatprep.subr.bf16.mxu0 0
    %1960 = vmatpush1.bf16.xpose.msra.mxu0 0
    %1961 = vmatprep.subr.bf16.mxu0 0
    %1962 = vmatpush1.bf16.xpose.msra.mxu0 0
    %1963 = vmatprep.subr.bf16.mxu0 0
    %1964 = vmatpush1.bf16.xpose.msra.mxu0 0
    %1965 = vmatprep.subr.bf16.mxu0 0
    %1966 = vmatpush1.bf16.xpose.msra.mxu0 0
    %1967 = vmatprep.subr.bf16.mxu0 0
    %1968 = vmatpush1.bf16.xpose.msra.mxu0 0
    %1969 = vmatprep.subr.bf16.mxu0 0
    %1970 = vmatpush1.bf16.xpose.msra.mxu0 0
    %1971 = vmatprep.subr.bf16.mxu0 0
    %1972 = vmatpush1.bf16.xpose.msra.mxu0 %v1955
    %1973 = vmatprep.subr.bf16.mxu0 0
    %1974 = vmatpush2.bf16.xpose.msra.mxu0 0
    %1975 = vmatprep.subr.bf16.mxu0 0
    %1976 = vmatpush2.bf16.xpose.msra.mxu0 0
    %1977 = vmatprep.subr.bf16.mxu0 0
    %1978 = vmatpush2.bf16.xpose.msra.mxu0 0
    %1979 = vmatprep.subr.bf16.mxu0 0
    %1980 = vmatpush2.bf16.xpose.msra.mxu0 0
    %1981 = vmatprep.subr.bf16.mxu0 0
    %1982 = vmatpush2.bf16.xpose.msra.mxu0 0
    %1983 = vmatprep.subr.bf16.mxu0 0
    %1984 = vmatpush2.bf16.xpose.msra.mxu0 0
    %1985 = vmatprep.subr.bf16.mxu0 0
    %1986 = vmatpush2.bf16.xpose.msra.mxu0 0
    %1987 = vmatprep.subr.bf16.mxu0 0
    %1988 = vmatpush2.bf16.xpose.msra.mxu0 0
    %1989 = vmatprep.mubr.bf16.mxu0 0
    %1990 = vmatmul.mubr.bf16.gmra.mxu0 %v1952
    %v1991 = vpop.f32.mrf.mxu0
    %v1992 = vadd.f32 0.0, %v1991
    %v1993 = vpop.f32.mrf.mxu0
    %v1994 = vpop.f32.mrf.mxu0
    %v1995 = vpop.f32.mrf.mxu0
    %1996 = vdwg.mxu0
    %v1997 = vsel %vm183, %v1992, -inf
    %1998 = vmax.xlane.f32.xlu0 %v1997
    %v1999 = vpop.xlane.xlu0 %1998
    %v2000 = vsub.f32 %v1992, %v1999
    %v2001 = vmul.f32 %v2000, 1.442695
    %v2002 = vpow.pop %v2001
    %v2003 = vsel %vm183, %v2002, 0.0
    %2004 = vadd.xlane.f32.xlu0 %v2003
    %v2005 = vpop.xlane.xlu0 %2004
    %v2006 = vrcp.pop %v2005
    %v2007 = vmul.f32 %v2005, %v2006
    %v2008 = vsub.f32 2.0, %v2007
    %v2009 = vmul.f32 %v2006, %v2008
    %v2010 = vpack.c.bf16 %v2002, %v2002
    %2011 = vrot.lane.b32.xlu0 %v1945, 36
    %v2012 = vpop.permute.xlu0 %2011
    %v2014 = vsel %vm183, %v2010, 0
    %v2017 = vsel %vm203, %v2012, 0
    %2019 = vmatprep.subr.bf16.mxu0 0
    %2020 = vmatpush1.bf16.msra.mxu0 0
    %2021 = vmatprep.subr.bf16.mxu0 0
    %2022 = vmatpush1.bf16.msra.mxu0 0
    %2023 = vmatprep.subr.bf16.mxu0 0
    %2024 = vmatpush1.bf16.msra.mxu0 0
    %2025 = vmatprep.subr.bf16.mxu0 0
    %2026 = vmatpush1.bf16.msra.mxu0 0
    %2027 = vmatprep.subr.bf16.mxu0 0
    %2028 = vmatpush1.bf16.msra.mxu0 0
    %2029 = vmatprep.subr.bf16.mxu0 0
    %2030 = vmatpush1.bf16.msra.mxu0 0
    %2031 = vmatprep.subr.bf16.mxu0 0
    %2032 = vmatpush1.bf16.msra.mxu0 0
    %2033 = vmatprep.subr.bf16.mxu0 0
    %2034 = vmatpush1.bf16.msra.mxu0 %v2017
    %2035 = vmatprep.subr.bf16.mxu0 0
    %2036 = vmatpush2.bf16.msra.mxu0 0
    %2037 = vmatprep.subr.bf16.mxu0 0
    %2038 = vmatpush2.bf16.msra.mxu0 0
    %2039 = vmatprep.subr.bf16.mxu0 0
    %2040 = vmatpush2.bf16.msra.mxu0 0
    %2041 = vmatprep.subr.bf16.mxu0 0
    %2042 = vmatpush2.bf16.msra.mxu0 0
    %2043 = vmatprep.subr.bf16.mxu0 0
    %2044 = vmatpush2.bf16.msra.mxu0 0
    %2045 = vmatprep.subr.bf16.mxu0 0
    %2046 = vmatpush2.bf16.msra.mxu0 0
    %2047 = vmatprep.subr.bf16.mxu0 0
    %2048 = vmatpush2.bf16.msra.mxu0 0
    %2049 = vmatprep.subr.bf16.mxu0 0
    %2050 = vmatpush2.bf16.msra.mxu0 0
    %2051 = vmatprep.mubr.bf16.mxu0 0
    %2052 = vmatmul.mubr.bf16.gmra.mxu0 %v2014
    %v2053 = vpop.f32.mrf.mxu0
    %v2054 = vadd.f32 0.0, %v2053
    %v2055 = vpop.f32.mrf.mxu0
    %v2056 = vpop.f32.mrf.mxu0
    %v2057 = vpop.f32.mrf.mxu0
    %2058 = vdwg.mxu0
    %v2059 = vmul.f32 %v2054, %v2009
    %2061 = vrot.lane.b32.xlu0 %v2059, 28
    %v2062 = vpop.permute.xlu0 %2061
    %2064 = vst.msk [vmem:[#allocation3 + $0x8] sm:$0xff] %vm1101, %v2062
    %v2065 = vld [vmem:[#allocation3] sm:$0xff]
    %v2066 = vld [vmem:[#allocation3 + $0x8] sm:$0xff]
    %v2067 = vpack.c.bf16 %v2066, %v2065
    %v2068 = vld [vmem:[#allocation9] sm:$0xf]
    %v2069 = vld [vmem:[#allocation9 + $0x4] sm:$0xf]
    %v2070 = vld [vmem:[#allocation9 + $0x8] sm:$0xf]
    %v2071 = vld [vmem:[#allocation9 + $0xc] sm:$0xf]
    %v2072 = vld [vmem:[%s3] sm:$0x1]
    %v2074 = vlaneseq
    %v2075 = vshrl.u32 %v2074, 7
    %v2076 = vsub.s32 0, %v2075
    %v2077 = vrot.slane %v2072, %v2076
    %v2083 = vunpack.c.l.b16 %v2068
    %v2084 = vunpack.c.l.b16 %v2069
    %v2085 = vunpack.c.l.b16 %v2070
    %v2086 = vunpack.c.l.b16 %v2071
    %v2087 = vpack.c.b16 %v2084, %v2083
    %v2088 = vpack.c.b16 %v2086, %v2085
    %v2092 = vsel %vm83, %v2067, 0
    %2094 = vmatprep.subr.bf16.mxu0 0
    %2095 = vmatpush1.bf16.msra.mxu0 0
    %2096 = vmatprep.subr.bf16.mxu0 0
    %2097 = vmatpush1.bf16.msra.mxu0 0
    %2098 = vmatprep.subr.bf16.mxu0 0
    %2099 = vmatpush1.bf16.msra.mxu0 0
    %2100 = vmatprep.subr.bf16.mxu0 0
    %2101 = vmatpush1.bf16.msra.mxu0 0
    %2102 = vmatprep.subr.bf16.mxu0 0
    %2103 = vmatpush1.bf16.msra.mxu0 0
    %2104 = vmatprep.subr.bf16.mxu0 0
    %2105 = vmatpush1.bf16.msra.mxu0 0
    %2106 = vmatprep.subr.bf16.mxu0 0
    %2107 = vmatpush1.bf16.msra.mxu0 %v2088
    %2108 = vmatprep.subr.bf16.mxu0 0
    %2109 = vmatpush1.bf16.msra.mxu0 %v2087
    %2110 = vmatprep.subr.bf16.mxu0 0
    %2111 = vmatpush2.bf16.msra.mxu0 0
    %2112 = vmatprep.subr.bf16.mxu0 0
    %2113 = vmatpush2.bf16.msra.mxu0 0
    %2114 = vmatprep.subr.bf16.mxu0 0
    %2115 = vmatpush2.bf16.msra.mxu0 0
    %2116 = vmatprep.subr.bf16.mxu0 0
    %2117 = vmatpush2.bf16.msra.mxu0 0
    %2118 = vmatprep.subr.bf16.mxu0 0
    %2119 = vmatpush2.bf16.msra.mxu0 0
    %2120 = vmatprep.subr.bf16.mxu0 0
    %2121 = vmatpush2.bf16.msra.mxu0 0
    %2122 = vmatprep.subr.bf16.mxu0 0
    %2123 = vmatpush2.bf16.msra.mxu0 0
    %2124 = vmatprep.subr.bf16.mxu0 0
    %2125 = vmatpush2.bf16.msra.mxu0 0
    %2126 = vmatprep.mubr.bf16.mxu0 0
    %2127 = vmatmul.mubr.bf16.gmra.mxu0 %v2092
    %v2128 = vpop.f32.mrf.mxu0
    %v2129 = vadd.f32 %v2077, %v2128
    %v2130 = vpop.f32.mrf.mxu0
    %v2131 = vpop.f32.mrf.mxu0
    %v2132 = vadd.f32 %v2077, %v2131
    %v2133 = vpop.f32.mrf.mxu0
    %2134 = vdwg.mxu0
    %2135 = vst.msk [vmem:[#allocation10] sm:$0xff] %vm83, %v2129
    %2136 = vst.msk [vmem:[#allocation10 + $0x8] sm:$0xff] %vm83, %v2132
    // Predicated region
    $region30: #{tpu_custom_call.1} parent=1 // pred_check
      _
    $region31: #{tpu_custom_call.1} parent=1 // pred_check_branch
      %2138 = sbr.rel (0) target = $region33
    $region32: #{tpu_custom_call.1} parent=1 // pred_region
      %s2140 = ssub.s32 256, 256
      %2141 = vsyncadd [#allocation6], %s2140
      %s2142 = sshll.u32 [#allocation10], 4
      %s2143 = int_to_ptr.vmem [resolvable:$true] %s2142
      %2148 = dma.vmem_to_hbm [thread:$0]  %s2143, 256, %s4, [#allocation6], 128, 128, 8
    $region33: #{tpu_custom_call.1} parent=1 // pred_fallthru
      _
    // Predicated region
    $region34: #{tpu_custom_call.1} parent=1 // pred_check
      _
    $region35: #{tpu_custom_call.1} parent=1 // pred_check_branch
      %2150 = sbr.rel (0) target = $region37
    $region36: #{tpu_custom_call.1} parent=1 // pred_region
      %2151 = dma.done [#allocation6], 256
    $region37: #{tpu_custom_call.1} parent=1 // pred_fallthru
      _
    %2152 = vsyncpa [#allocation5], 1
    %2153 = vsyncpa [#allocation8], 1
    %2154 = vsyncpa [#allocation6], 1

// kernel: tpu_custom_call.1
$region0: #{tpu_custom_call.1}
  #allocation0 [shape = 'u32[]', space=smem, size = 0x4, offset = 0x4, fixed_abs, tag = 'smem constant byte address 0x4 - core index']
  #allocation1 [shape = 'u32[144,128]{1,0:T(1,128)}', space=vmem, size = 0x12000, scoped, tag = 'internal scratch']
  #allocation2 [shape = 'f32[16,96]{1,0:T(8,128)}', space=vmem, size = 0x2000, scoped, tag = 'scratch operand']
  #allocation3 [shape = 'f32[16,32]{1,0:T(8,128)}', space=vmem, size = 0x2000, scoped, tag = 'scratch operand']
  %s0 = inlined_call_operand.hbm [shape: bf16[2,8,32], index: 0, kind: input, shape index: {}]
  %s1 = inlined_call_operand.hbm [shape: bf16[32,96], index: 1, kind: input, shape index: {}]
  %s2 = inlined_call_operand.hbm [shape: bf16[32,32], index: 2, kind: input, shape index: {}]
  %s3 = inlined_call_operand.vmem [shape: f32[1,32], index: 3, kind: input, shape index: {}]
  %s4 = inlined_call_operand.hbm [shape: f32[2,8,32], index: 4, kind: output, shape index: {}]
  %s5 = sld [smem:[#allocation0]]
  $region38: #{tpu_custom_call.1} parent=0
    _
  %s7 = ssub.s32 1, %s5
  %s8 = scalar_select 0, %s7, %s5
  $region1: #{tpu_custom_call.1} parent=0
    #allocation4 [shape = 'u8[4096]{0}', space=vmem, size = 0x1000, scoped, tag = 'input window, operand 0, single buffered']
    #allocation5 [shape = 's32[1]{0}', space=sflag, size = 0x4, scoped, tag = 'scoped memory for tpu_custom_call.1']
    #allocation6 [shape = 's32[1]{0}', space=sflag, size = 0x4, scoped, tag = 'scoped memory for tpu_custom_call.1']
    #allocation7 [shape = 'u8[8192]{0}', space=vmem, size = 0x2000, scoped, tag = 'input window, operand 1, single buffered']
    #allocation8 [shape = 's32[1]{0}', space=sflag, size = 0x4, scoped, tag = 'scoped memory for tpu_custom_call.1']
    #allocation9 [shape = 'u8[8192]{0}', space=vmem, size = 0x2000, scoped, tag = 'input window, operand 2, single buffered']
    #allocation10 [shape = 'u8[8192]{0}', space=vmem, size = 0x2000, scoped, tag = 'output window, operand 0, single buffered']
    %9 = vsyncpa [#allocation5], 0
    %10 = vsyncpa [#allocation8], 0
    %11 = vsyncpa [#allocation6], 0
    // Predicated region
    $region2: #{tpu_custom_call.1} parent=1 // pred_check
      _
    $region3: #{tpu_custom_call.1} parent=1 // pred_check_branch
      %13 = sbr.rel (0) target = $region5
    $region4: #{tpu_custom_call.1} parent=1 // pred_region
      %s15 = ssub.s32 128, 128
      %16 = vsyncadd [#allocation5], %s15
      %s17 = sshll.u32 [#allocation4], 4
      %s18 = int_to_ptr.vmem [resolvable:$true] %s17
      %23 = dma.hbm_to_vmem [thread:$0]  %s0, 128, %s18, [#allocation5], 64, 64, 4
    $region5: #{tpu_custom_call.1} parent=1 // pred_fallthru
      _
    // Predicated region
    $region6: #{tpu_custom_call.1} parent=1 // pred_check
      _
    $region7: #{tpu_custom_call.1} parent=1 // pred_check_branch
      %25 = sbr.rel (0) target = $region9
    $region8: #{tpu_custom_call.1} parent=1 // pred_region
      %s27 = ssub.s32 256, 256
      %28 = vsyncadd [#allocation8], %s27
      %s29 = sshll.u32 [#allocation7], 4
      %s30 = int_to_ptr.vmem [resolvable:$true] %s29
      %35 = dma.hbm_to_vmem [thread:$0]  %s1, 256, %s30, [#allocation8], 64, 64, 4
    $region9: #{tpu_custom_call.1} parent=1 // pred_fallthru
      _
    // Predicated region
    $region10: #{tpu_custom_call.1} parent=1 // pred_check
      _
    $region11: #{tpu_custom_call.1} parent=1 // pred_check_branch
      %37 = sbr.rel (0) target = $region13
    $region12: #{tpu_custom_call.1} parent=1 // pred_region
      %s39 = ssub.s32 256, 256
      %40 = vsyncadd [#allocation8], %s39
      %s41 = sshll.u32 [#allocation9], 4
      %s42 = int_to_ptr.vmem [resolvable:$true] %s41
      %47 = dma.hbm_to_vmem [thread:$0]  %s2, 256, %s42, [#allocation8], 64, 64, 4
    $region13: #{tpu_custom_call.1} parent=1 // pred_fallthru
      _
    // Predicated region
    $region14: #{tpu_custom_call.1} parent=1 // pred_check
      _
    $region15: #{tpu_custom_call.1} parent=1 // pred_check_branch
      %49 = sbr.rel (0) target = $region17
    $region16: #{tpu_custom_call.1} parent=1 // pred_region
      _
    $region17: #{tpu_custom_call.1} parent=1 // pred_fallthru
      _
    // Predicated region
    $region18: #{tpu_custom_call.1} parent=1 // pred_check
      _
    $region19: #{tpu_custom_call.1} parent=1 // pred_check_branch
      %51 = sbr.rel (0) target = $region21
    $region20: #{tpu_custom_call.1} parent=1 // pred_region
      %52 = dma.done [#allocation5], 128
    $region21: #{tpu_custom_call.1} parent=1 // pred_fallthru
      _
    // Predicated region
    $region22: #{tpu_custom_call.1} parent=1 // pred_check
      _
    $region23: #{tpu_custom_call.1} parent=1 // pred_check_branch
      %54 = sbr.rel (0) target = $region25
    $region24: #{tpu_custom_call.1} parent=1 // pred_region
      %55 = dma.done [#allocation8], 256
    $region25: #{tpu_custom_call.1} parent=1 // pred_fallthru
      _
    // Predicated region
    $region26: #{tpu_custom_call.1} parent=1 // pred_check
      _
    $region27: #{tpu_custom_call.1} parent=1 // pred_check_branch
      %57 = sbr.rel (0) target = $region29
    $region28: #{tpu_custom_call.1} parent=1 // pred_region
      %58 = dma.done [#allocation8], 256
    $region29: #{tpu_custom_call.1} parent=1 // pred_fallthru
      _
    %v60 = vld [vmem:[#allocation4] sm:$0xf]
    %v61 = vld [vmem:[#allocation4 + $0x4] sm:$0xf]
    %v62 = vld [vmem:[#allocation7] sm:$0xf]
    %v63 = vld [vmem:[#allocation7 + $0x4] sm:$0xf]
    %v64 = vld [vmem:[#allocation7 + $0x8] sm:$0xf]
    %v65 = vld [vmem:[#allocation7 + $0xc] sm:$0xf]
    %v68 = vunpack.c.l.b16 %v60
    %v69 = vunpack.c.l.b16 %v61
    %v70 = vpack.c.b16 %v69, %v68
    %v75 = vunpack.c.l.b16 %v62
    %v76 = vunpack.c.l.b16 %v63
    %v77 = vunpack.c.l.b16 %v64
    %v78 = vunpack.c.l.b16 %v65
    %v79 = vpack.c.b16 %v76, %v75
    %v80 = vpack.c.b16 %v78, %v77
    %vm83 = vcmask 261120
    %v85 = vsel %vm83, %v70, 0
    %87 = vmatprep.subr.bf16.mxu0 0
    %88 = vmatpush1.bf16.msra.mxu0 0
    %89 = vmatprep.subr.bf16.mxu0 0
    %90 = vmatpush1.bf16.msra.mxu0 0
    %91 = vmatprep.subr.bf16.mxu0 0
    %92 = vmatpush1.bf16.msra.mxu0 0
    %93 = vmatprep.subr.bf16.mxu0 0
    %94 = vmatpush1.bf16.msra.mxu0 0
    %95 = vmatprep.subr.bf16.mxu0 0
    %96 = vmatpush1.bf16.msra.mxu0 0
    %97 = vmatprep.subr.bf16.mxu0 0
    %98 = vmatpush1.bf16.msra.mxu0 0
    %99 = vmatprep.subr.bf16.mxu0 0
    %100 = vmatpush1.bf16.msra.mxu0 %v80
    %101 = vmatprep.subr.bf16.mxu0 0
    %102 = vmatpush1.bf16.msra.mxu0 %v79
    %103 = vmatprep.subr.bf16.mxu0 0
    %104 = vmatpush2.bf16.msra.mxu0 0
    %105 = vmatprep.subr.bf16.mxu0 0
    %106 = vmatpush2.bf16.msra.mxu0 0
    %107 = vmatprep.subr.bf16.mxu0 0
    %108 = vmatpush2.bf16.msra.mxu0 0
    %109 = vmatprep.subr.bf16.mxu0 0
    %110 = vmatpush2.bf16.msra.mxu0 0
    %111 = vmatprep.subr.bf16.mxu0 0
    %112 = vmatpush2.bf16.msra.mxu0 0
    %113 = vmatprep.subr.bf16.mxu0 0
    %114 = vmatpush2.bf16.msra.mxu0 0
    %115 = vmatprep.subr.bf16.mxu0 0
    %116 = vmatpush2.bf16.msra.mxu0 0
    %117 = vmatprep.subr.bf16.mxu0 0
    %118 = vmatpush2.bf16.msra.mxu0 0
    %119 = vmatprep.mubr.bf16.mxu0 0
    %120 = vmatmul.mubr.bf16.gmra.mxu0 %v85
    %v121 = vpop.f32.mrf.mxu0
    %v122 = vadd.f32 0.0, %v121
    %v123 = vpop.f32.mrf.mxu0
    %v124 = vpop.f32.mrf.mxu0
    %v125 = vadd.f32 0.0, %v124
    %v126 = vpop.f32.mrf.mxu0
    %127 = vdwg.mxu0
    %vm128 = vcmask 785408
    %129 = vst.msk [vmem:[#allocation2] sm:$0xff] %vm128, %v122
    %130 = vst.msk [vmem:[#allocation2 + $0x8] sm:$0xff] %vm128, %v125
    %v131 = vld [vmem:[#allocation2] sm:$0xff]
    %v132 = vpack.c.bf16 %v131, %v131
    %134 = vrot.lane.b32.xlu0 %v132, 96
    %v135 = vpop.permute.xlu0 %134
    %vm136 = vcmask 31744
    %v138 = vsel %vm136, %v132, 0
    %v141 = vsel %vm136, %v135, 0
    %143 = vmatprep.subr.bf16.mxu0 0
    %144 = vmatpush1.bf16.xpose.msra.mxu0 0
    %145 = vmatprep.subr.bf16.mxu0 0
    %146 = vmatpush1.bf16.xpose.msra.mxu0 0
    %147 = vmatprep.subr.bf16.mxu0 0
    %148 = vmatpush1.bf16.xpose.msra.mxu0 0
    %149 = vmatprep.subr.bf16.mxu0 0
    %150 = vmatpush1.bf16.xpose.msra.mxu0 0
    %151 = vmatprep.subr.bf16.mxu0 0
    %152 = vmatpush1.bf16.xpose.msra.mxu0 0
    %153 = vmatprep.subr.bf16.mxu0 0
    %154 = vmatpush1.bf16.xpose.msra.mxu0 0
    %155 = vmatprep.subr.bf16.mxu0 0
    %156 = vmatpush1.bf16.xpose.msra.mxu0 0
    %157 = vmatprep.subr.bf16.mxu0 0
    %158 = vmatpush1.bf16.xpose.msra.mxu0 %v141
    %159 = vmatprep.subr.bf16.mxu0 0
    %160 = vmatpush2.bf16.xpose.msra.mxu0 0
    %161 = vmatprep.subr.bf16.mxu0 0
    %162 = vmatpush2.bf16.xpose.msra.mxu0 0
    %163 = vmatprep.subr.bf16.mxu0 0
    %164 = vmatpush2.bf16.xpose.msra.mxu0 0
    %165 = vmatprep.subr.bf16.mxu0 0
    %166 = vmatpush2.bf16.xpose.msra.mxu0 0
    %167 = vmatprep.subr.bf16.mxu0 0
    %168 = vmatpush2.bf16.xpose.msra.mxu0 0
    %169 = vmatprep.subr.bf16.mxu0 0
    %170 = vmatpush2.bf16.xpose.msra.mxu0 0
    %171 = vmatprep.subr.bf16.mxu0 0
    %172 = vmatpush2.bf16.xpose.msra.mxu0 0
    %173 = vmatprep.subr.bf16.mxu0 0
    %174 = vmatpush2.bf16.xpose.msra.mxu0 0
    %175 = vmatprep.mubr.bf16.mxu0 0
    %176 = vmatmul.mubr.bf16.gmra.mxu0 %v138
    %v177 = vpop.f32.mrf.mxu0
    %v178 = vadd.f32 0.0, %v177
    %v179 = vpop.f32.mrf.mxu0
    %v180 = vpop.f32.mrf.mxu0
    %v181 = vpop.f32.mrf.mxu0
    %182 = vdwg.mxu0
    %vm183 = vcmask 64512
    %v184 = vsel %vm183, %v178, -inf
    %185 = vmax.xlane.f32.xlu0 %v184
    %v186 = vpop.xlane.xlu0 %185
    %v187 = vsub.f32 %v178, %v186
    %v188 = vmul.f32 %v187, 1.442695
    %v189 = vpow.pop %v188
    %v190 = vsel %vm183, %v189, 0.0
    %191 = vadd.xlane.f32.xlu0 %v190
    %v192 = vpop.xlane.xlu0 %191
    %v193 = vrcp.pop %v192
    %v194 = vmul.f32 %v192, %v193
    %v195 = vsub.f32 2.0, %v194
    %v196 = vmul.f32 %v193, %v195
    %v197 = vpack.c.bf16 %v189, %v189
    %198 = vrot.lane.b32.xlu0 %v132, 64
    %v199 = vpop.permute.xlu0 %198
    %v201 = vsel %vm183, %v197, 0
    %vm203 = vcmask 1043456
    %v205 = vsel %vm203, %v199, 0
    %207 = vmatprep.subr.bf16.mxu0 0
    %208 = vmatpush1.bf16.msra.mxu0 0
    %209 = vmatprep.subr.bf16.mxu0 0
    %210 = vmatpush1.bf16.msra.mxu0 0
    %211 = vmatprep.subr.bf16.mxu0 0
    %212 = vmatpush1.bf16.msra.mxu0 0
    %213 = vmatprep.subr.bf16.mxu0 0
    %214 = vmatpush1.bf16.msra.mxu0 0
    %215 = vmatprep.subr.bf16.mxu0 0
    %216 = vmatpush1.bf16.msra.mxu0 0
    %217 = vmatprep.subr.bf16.mxu0 0
    %218 = vmatpush1.bf16.msra.mxu0 0
    %219 = vmatprep.subr.bf16.mxu0 0
    %220 = vmatpush1.bf16.msra.mxu0 0
    %221 = vmatprep.subr.bf16.mxu0 0
    %222 = vmatpush1.bf16.msra.mxu0 %v205
    %223 = vmatprep.subr.bf16.mxu0 0
    %224 = vmatpush2.bf16.msra.mxu0 0
    %225 = vmatprep.subr.bf16.mxu0 0
    %226 = vmatpush2.bf16.msra.mxu0 0
    %227 = vmatprep.subr.bf16.mxu0 0
    %228 = vmatpush2.bf16.msra.mxu0 0
    %229 = vmatprep.subr.bf16.mxu0 0
    %230 = vmatpush2.bf16.msra.mxu0 0
    %231 = vmatprep.subr.bf16.mxu0 0
    %232 = vmatpush2.bf16.msra.mxu0 0
    %233 = vmatprep.subr.bf16.mxu0 0
    %234 = vmatpush2.bf16.msra.mxu0 0
    %235 = vmatprep.subr.bf16.mxu0 0
    %236 = vmatpush2.bf16.msra.mxu0 0
    %237 = vmatprep.subr.bf16.mxu0 0
    %238 = vmatpush2.bf16.msra.mxu0 0
    %239 = vmatprep.mubr.bf16.mxu0 0
    %240 = vmatmul.mubr.bf16.gmra.mxu0 %v201
    %v241 = vpop.f32.mrf.mxu0
    %v242 = vadd.f32 0.0, %v241
    %v243 = vpop.f32.mrf.mxu0
    %v244 = vpop.f32.mrf.mxu0
    %v245 = vpop.f32.mrf.mxu0
    %246 = vdwg.mxu0
    %v247 = vmul.f32 %v242, %v196
    %248 = vst.msk [vmem:[#allocation3] sm:$0xff] %vm136, %v247
    %v249 = vld [vmem:[#allocation2] sm:$0xff]
    %v250 = vpack.c.bf16 %v249, %v249
    %252 = vrot.lane.b32.xlu0 %v250, 124
    %v253 = vpop.permute.xlu0 %252
    %254 = vrot.lane.b32.xlu0 %v250, 92
    %v255 = vpop.permute.xlu0 %254
    %v257 = vsel %vm136, %v253, 0
    %v260 = vsel %vm136, %v255, 0
    %262 = vmatprep.subr.bf16.mxu0 0
    %263 = vmatpush1.bf16.xpose.msra.mxu0 0
    %264 = vmatprep.subr.bf16.mxu0 0
    %265 = vmatpush1.bf16.xpose.msra.mxu0 0
    %266 = vmatprep.subr.bf16.mxu0 0
    %267 = vmatpush1.bf16.xpose.msra.mxu0 0
    %268 = vmatprep.subr.bf16.mxu0 0
    %269 = vmatpush1.bf16.xpose.msra.mxu0 0
    %270 = vmatprep.subr.bf16.mxu0 0
    %271 = vmatpush1.bf16.xpose.msra.mxu0 0
    %272 = vmatprep.subr.bf16.mxu0 0
    %273 = vmatpush1.bf16.xpose.msra.mxu0 0
    %274 = vmatprep.subr.bf16.mxu0 0
    %275 = vmatpush1.bf16.xpose.msra.mxu0 0
    %276 = vmatprep.subr.bf16.mxu0 0
    %277 = vmatpush1.bf16.xpose.msra.mxu0 %v260
    %278 = vmatprep.subr.bf16.mxu0 0
    %279 = vmatpush2.bf16.xpose.msra.mxu0 0
    %280 = vmatprep.subr.bf16.mxu0 0
    %281 = vmatpush2.bf16.xpose.msra.mxu0 0
    %282 = vmatprep.subr.bf16.mxu0 0
    %283 = vmatpush2.bf16.xpose.msra.mxu0 0
    %284 = vmatprep.subr.bf16.mxu0 0
    %285 = vmatpush2.bf16.xpose.msra.mxu0 0
    %286 = vmatprep.subr.bf16.mxu0 0
    %287 = vmatpush2.bf16.xpose.msra.mxu0 0
    %288 = vmatprep.subr.bf16.mxu0 0
    %289 = vmatpush2.bf16.xpose.msra.mxu0 0
    %290 = vmatprep.subr.bf16.mxu0 0
    %291 = vmatpush2.bf16.xpose.msra.mxu0 0
    %292 = vmatprep.subr.bf16.mxu0 0
    %293 = vmatpush2.bf16.xpose.msra.mxu0 0
    %294 = vmatprep.mubr.bf16.mxu0 0
    %295 = vmatmul.mubr.bf16.gmra.mxu0 %v257
    %v296 = vpop.f32.mrf.mxu0
    %v297 = vadd.f32 0.0, %v296
    %v298 = vpop.f32.mrf.mxu0
    %v299 = vpop.f32.mrf.mxu0
    %v300 = vpop.f32.mrf.mxu0
    %301 = vdwg.mxu0
    %v302 = vsel %vm183, %v297, -inf
    %303 = vmax.xlane.f32.xlu0 %v302
    %v304 = vpop.xlane.xlu0 %303
    %v305 = vsub.f32 %v297, %v304
    %v306 = vmul.f32 %v305, 1.442695
    %v307 = vpow.pop %v306
    %v308 = vsel %vm183, %v307, 0.0
    %309 = vadd.xlane.f32.xlu0 %v308
    %v310 = vpop.xlane.xlu0 %309
    %v311 = vrcp.pop %v310
    %v312 = vmul.f32 %v310, %v311
    %v313 = vsub.f32 2.0, %v312
    %v314 = vmul.f32 %v311, %v313
    %v315 = vpack.c.bf16 %v307, %v307
    %316 = vrot.lane.b32.xlu0 %v250, 60
    %v317 = vpop.permute.xlu0 %316
    %v319 = vsel %vm183, %v315, 0
    %v322 = vsel %vm203, %v317, 0
    %324 = vmatprep.subr.bf16.mxu0 0
    %325 = vmatpush1.bf16.msra.mxu0 0
    %326 = vmatprep.subr.bf16.mxu0 0
    %327 = vmatpush1.bf16.msra.mxu0 0
    %328 = vmatprep.subr.bf16.mxu0 0
    %329 = vmatpush1.bf16.msra.mxu0 0
    %330 = vmatprep.subr.bf16.mxu0 0
    %331 = vmatpush1.bf16.msra.mxu0 0
    %332 = vmatprep.subr.bf16.mxu0 0
    %333 = vmatpush1.bf16.msra.mxu0 0
    %334 = vmatprep.subr.bf16.mxu0 0
    %335 = vmatpush1.bf16.msra.mxu0 0
    %336 = vmatprep.subr.bf16.mxu0 0
    %337 = vmatpush1.bf16.msra.mxu0 0
    %338 = vmatprep.subr.bf16.mxu0 0
    %339 = vmatpush1.bf16.msra.mxu0 %v322
    %340 = vmatprep.subr.bf16.mxu0 0
    %341 = vmatpush2.bf16.msra.mxu0 0
    %342 = vmatprep.subr.bf16.mxu0 0
    %343 = vmatpush2.bf16.msra.mxu0 0
    %344 = vmatprep.subr.bf16.mxu0 0
    %345 = vmatpush2.bf16.msra.mxu0 0
    %346 = vmatprep.subr.bf16.mxu0 0
    %347 = vmatpush2.bf16.msra.mxu0 0
    %348 = vmatprep.subr.bf16.mxu0 0
    %349 = vmatpush2.bf16.msra.mxu0 0
    %350 = vmatprep.subr.bf16.mxu0 0
    %351 = vmatpush2.bf16.msra.mxu0 0
    %352 = vmatprep.subr.bf16.mxu0 0
    %353 = vmatpush2.bf16.msra.mxu0 0
    %354 = vmatprep.subr.bf16.mxu0 0
    %355 = vmatpush2.bf16.msra.mxu0 0
    %356 = vmatprep.mubr.bf16.mxu0 0
    %357 = vmatmul.mubr.bf16.gmra.mxu0 %v319
    %v358 = vpop.f32.mrf.mxu0
    %v359 = vadd.f32 0.0, %v358
    %v360 = vpop.f32.mrf.mxu0
    %v361 = vpop.f32.mrf.mxu0
    %v362 = vpop.f32.mrf.mxu0
    %363 = vdwg.mxu0
    %v364 = vmul.f32 %v359, %v314
    %366 = vrot.lane.b32.xlu0 %v364, 4
    %v367 = vpop.permute.xlu0 %366
    %vm369 = vcmask 64544
    %370 = vst.msk [vmem:[#allocation3] sm:$0xff] %vm369, %v367
    %v371 = vld [vmem:[#allocation2] sm:$0xff]
    %v372 = vpack.c.bf16 %v371, %v371
    %374 = vrot.lane.b32.xlu0 %v372, 120
    %v375 = vpop.permute.xlu0 %374
    %376 = vrot.lane.b32.xlu0 %v372, 88
    %v377 = vpop.permute.xlu0 %376
    %v379 = vsel %vm136, %v375, 0
    %v382 = vsel %vm136, %v377, 0
    %384 = vmatprep.subr.bf16.mxu0 0
    %385 = vmatpush1.bf16.xpose.msra.mxu0 0
    %386 = vmatprep.subr.bf16.mxu0 0
    %387 = vmatpush1.bf16.xpose.msra.mxu0 0
    %388 = vmatprep.subr.bf16.mxu0 0
    %389 = vmatpush1.bf16.xpose.msra.mxu0 0
    %390 = vmatprep.subr.bf16.mxu0 0
    %391 = vmatpush1.bf16.xpose.msra.mxu0 0
    %392 = vmatprep.subr.bf16.mxu0 0
    %393 = vmatpush1.bf16.xpose.msra.mxu0 0
    %394 = vmatprep.subr.bf16.mxu0 0
    %395 = vmatpush1.bf16.xpose.msra.mxu0 0
    %396 = vmatprep.subr.bf16.mxu0 0
    %397 = vmatpush1.bf16.xpose.msra.mxu0 0
    %398 = vmatprep.subr.bf16.mxu0 0
    %399 = vmatpush1.bf16.xpose.msra.mxu0 %v382
    %400 = vmatprep.subr.bf16.mxu0 0
    %401 = vmatpush2.bf16.xpose.msra.mxu0 0
    %402 = vmatprep.subr.bf16.mxu0 0
    %403 = vmatpush2.bf16.xpose.msra.mxu0 0
    %404 = vmatprep.subr.bf16.mxu0 0
    %405 = vmatpush2.bf16.xpose.msra.mxu0 0
    %406 = vmatprep.subr.bf16.mxu0 0
    %407 = vmatpush2.bf16.xpose.msra.mxu0 0
    %408 = vmatprep.subr.bf16.mxu0 0
    %409 = vmatpush2.bf16.xpose.msra.mxu0 0
    %410 = vmatprep.subr.bf16.mxu0 0
    %411 = vmatpush2.bf16.xpose.msra.mxu0 0
    %412 = vmatprep.subr.bf16.mxu0 0
    %413 = vmatpush2.bf16.xpose.msra.mxu0 0
    %414 = vmatprep.subr.bf16.mxu0 0
    %415 = vmatpush2.bf16.xpose.msra.mxu0 0
    %416 = vmatprep.mubr.bf16.mxu0 0
    %417 = vmatmul.mubr.bf16.gmra.mxu0 %v379
    %v418 = vpop.f32.mrf.mxu0
    %v419 = vadd.f32 0.0, %v418
    %v420 = vpop.f32.mrf.mxu0
    %v421 = vpop.f32.mrf.mxu0
    %v422 = vpop.f32.mrf.mxu0
    %423 = vdwg.mxu0
    %v424 = vsel %vm183, %v419, -inf
    %425 = vmax.xlane.f32.xlu0 %v424
    %v426 = vpop.xlane.xlu0 %425
    %v427 = vsub.f32 %v419, %v426
    %v428 = vmul.f32 %v427, 1.442695
    %v429 = vpow.pop %v428
    %v430 = vsel %vm183, %v429, 0.0
    %431 = vadd.xlane.f32.xlu0 %v430
    %v432 = vpop.xlane.xlu0 %431
    %v433 = vrcp.pop %v432
    %v434 = vmul.f32 %v432, %v433
    %v435 = vsub.f32 2.0, %v434
    %v436 = vmul.f32 %v433, %v435
    %v437 = vpack.c.bf16 %v429, %v429
    %438 = vrot.lane.b32.xlu0 %v372, 56
    %v439 = vpop.permute.xlu0 %438
    %v441 = vsel %vm183, %v437, 0
    %v444 = vsel %vm203, %v439, 0
    %446 = vmatprep.subr.bf16.mxu0 0
    %447 = vmatpush1.bf16.msra.mxu0 0
    %448 = vmatprep.subr.bf16.mxu0 0
    %449 = vmatpush1.bf16.msra.mxu0 0
    %450 = vmatprep.subr.bf16.mxu0 0
    %451 = vmatpush1.bf16.msra.mxu0 0
    %452 = vmatprep.subr.bf16.mxu0 0
    %453 = vmatpush1.bf16.msra.mxu0 0
    %454 = vmatprep.subr.bf16.mxu0 0
    %455 = vmatpush1.bf16.msra.mxu0 0
    %456 = vmatprep.subr.bf16.mxu0 0
    %457 = vmatpush1.bf16.msra.mxu0 0
    %458 = vmatprep.subr.bf16.mxu0 0
    %459 = vmatpush1.bf16.msra.mxu0 0
    %460 = vmatprep.subr.bf16.mxu0 0
    %461 = vmatpush1.bf16.msra.mxu0 %v444
    %462 = vmatprep.subr.bf16.mxu0 0
    %463 = vmatpush2.bf16.msra.mxu0 0
    %464 = vmatprep.subr.bf16.mxu0 0
    %465 = vmatpush2.bf16.msra.mxu0 0
    %466 = vmatprep.subr.bf16.mxu0 0
    %467 = vmatpush2.bf16.msra.mxu0 0
    %468 = vmatprep.subr.bf16.mxu0 0
    %469 = vmatpush2.bf16.msra.mxu0 0
    %470 = vmatprep.subr.bf16.mxu0 0
    %471 = vmatpush2.bf16.msra.mxu0 0
    %472 = vmatprep.subr.bf16.mxu0 0
    %473 = vmatpush2.bf16.msra.mxu0 0
    %474 = vmatprep.subr.bf16.mxu0 0
    %475 = vmatpush2.bf16.msra.mxu0 0
    %476 = vmatprep.subr.bf16.mxu0 0
    %477 = vmatpush2.bf16.msra.mxu0 0
    %478 = vmatprep.mubr.bf16.mxu0 0
    %479 = vmatmul.mubr.bf16.gmra.mxu0 %v441
    %v480 = vpop.f32.mrf.mxu0
    %v481 = vadd.f32 0.0, %v480
    %v482 = vpop.f32.mrf.mxu0
    %v483 = vpop.f32.mrf.mxu0
    %v484 = vpop.f32.mrf.mxu0
    %485 = vdwg.mxu0
    %v486 = vmul.f32 %v481, %v436
    %488 = vrot.lane.b32.xlu0 %v486, 8
    %v489 = vpop.permute.xlu0 %488
    %vm491 = vcmask 97344
    %492 = vst.msk [vmem:[#allocation3] sm:$0xff] %vm491, %v489
    %v493 = vld [vmem:[#allocation2] sm:$0xff]
    %v494 = vpack.c.bf16 %v493, %v493
    %496 = vrot.lane.b32.xlu0 %v494, 116
    %v497 = vpop.permute.xlu0 %496
    %498 = vrot.lane.b32.xlu0 %v494, 84
    %v499 = vpop.permute.xlu0 %498
    %v501 = vsel %vm136, %v497, 0
    %v504 = vsel %vm136, %v499, 0
    %506 = vmatprep.subr.bf16.mxu0 0
    %507 = vmatpush1.bf16.xpose.msra.mxu0 0
    %508 = vmatprep.subr.bf16.mxu0 0
    %509 = vmatpush1.bf16.xpose.msra.mxu0 0
    %510 = vmatprep.subr.bf16.mxu0 0
    %511 = vmatpush1.bf16.xpose.msra.mxu0 0
    %512 = vmatprep.subr.bf16.mxu0 0
    %513 = vmatpush1.bf16.xpose.msra.mxu0 0
    %514 = vmatprep.subr.bf16.mxu0 0
    %515 = vmatpush1.bf16.xpose.msra.mxu0 0
    %516 = vmatprep.subr.bf16.mxu0 0
    %517 = vmatpush1.bf16.xpose.msra.mxu0 0
    %518 = vmatprep.subr.bf16.mxu0 0
    %519 = vmatpush1.bf16.xpose.msra.mxu0 0
    %520 = vmatprep.subr.bf16.mxu0 0
    %521 = vmatpush1.bf16.xpose.msra.mxu0 %v504
    %522 = vmatprep.subr.bf16.mxu0 0
    %523 = vmatpush2.bf16.xpose.msra.mxu0 0
    %524 = vmatprep.subr.bf16.mxu0 0
    %525 = vmatpush2.bf16.xpose.msra.mxu0 0
    %526 = vmatprep.subr.bf16.mxu0 0
    %527 = vmatpush2.bf16.xpose.msra.mxu0 0
    %528 = vmatprep.subr.bf16.mxu0 0
    %529 = vmatpush2.bf16.xpose.msra.mxu0 0
    %530 = vmatprep.subr.bf16.mxu0 0
    %531 = vmatpush2.bf16.xpose.msra.mxu0 0
    %532 = vmatprep.subr.bf16.mxu0 0
    %533 = vmatpush2.bf16.xpose.msra.mxu0 0
    %534 = vmatprep.subr.bf16.mxu0 0
    %535 = vmatpush2.bf16.xpose.msra.mxu0 0
    %536 = vmatprep.subr.bf16.mxu0 0
    %537 = vmatpush2.bf16.xpose.msra.mxu0 0
    %538 = vmatprep.mubr.bf16.mxu0 0
    %539 = vmatmul.mubr.bf16.gmra.mxu0 %v501
    %v540 = vpop.f32.mrf.mxu0
    %v541 = vadd.f32 0.0, %v540
    %v542 = vpop.f32.mrf.mxu0
    %v543 = vpop.f32.mrf.mxu0
    %v544 = vpop.f32.mrf.mxu0
    %545 = vdwg.mxu0
    %v546 = vsel %vm183, %v541, -inf
    %547 = vmax.xlane.f32.xlu0 %v546
    %v548 = vpop.xlane.xlu0 %547
    %v549 = vsub.f32 %v541, %v548
    %v550 = vmul.f32 %v549, 1.442695
    %v551 = vpow.pop %v550
    %v552 = vsel %vm183, %v551, 0.0
    %553 = vadd.xlane.f32.xlu0 %v552
    %v554 = vpop.xlane.xlu0 %553
    %v555 = vrcp.pop %v554
    %v556 = vmul.f32 %v554, %v555
    %v557 = vsub.f32 2.0, %v556
    %v558 = vmul.f32 %v555, %v557
    %v559 = vpack.c.bf16 %v551, %v551
    %560 = vrot.lane.b32.xlu0 %v494, 52
    %v561 = vpop.permute.xlu0 %560
    %v563 = vsel %vm183, %v559, 0
    %v566 = vsel %vm203, %v561, 0
    %568 = vmatprep.subr.bf16.mxu0 0
    %569 = vmatpush1.bf16.msra.mxu0 0
    %570 = vmatprep.subr.bf16.mxu0 0
    %571 = vmatpush1.bf16.msra.mxu0 0
    %572 = vmatprep.subr.bf16.mxu0 0
    %573 = vmatpush1.bf16.msra.mxu0 0
    %574 = vmatprep.subr.bf16.mxu0 0
    %575 = vmatpush1.bf16.msra.mxu0 0
    %576 = vmatprep.subr.bf16.mxu0 0
    %577 = vmatpush1.bf16.msra.mxu0 0
    %578 = vmatprep.subr.bf16.mxu0 0
    %579 = vmatpush1.bf16.msra.mxu0 0
    %580 = vmatprep.subr.bf16.mxu0 0
    %581 = vmatpush1.bf16.msra.mxu0 0
    %582 = vmatprep.subr.bf16.mxu0 0
    %583 = vmatpush1.bf16.msra.mxu0 %v566
    %584 = vmatprep.subr.bf16.mxu0 0
    %585 = vmatpush2.bf16.msra.mxu0 0
    %586 = vmatprep.subr.bf16.mxu0 0
    %587 = vmatpush2.bf16.msra.mxu0 0
    %588 = vmatprep.subr.bf16.mxu0 0
    %589 = vmatpush2.bf16.msra.mxu0 0
    %590 = vmatprep.subr.bf16.mxu0 0
    %591 = vmatpush2.bf16.msra.mxu0 0
    %592 = vmatprep.subr.bf16.mxu0 0
    %593 = vmatpush2.bf16.msra.mxu0 0
    %594 = vmatprep.subr.bf16.mxu0 0
    %595 = vmatpush2.bf16.msra.mxu0 0
    %596 = vmatprep.subr.bf16.mxu0 0
    %597 = vmatpush2.bf16.msra.mxu0 0
    %598 = vmatprep.subr.bf16.mxu0 0
    %599 = vmatpush2.bf16.msra.mxu0 0
    %600 = vmatprep.mubr.bf16.mxu0 0
    %601 = vmatmul.mubr.bf16.gmra.mxu0 %v563
    %v602 = vpop.f32.mrf.mxu0
    %v603 = vadd.f32 0.0, %v602
    %v604 = vpop.f32.mrf.mxu0
    %v605 = vpop.f32.mrf.mxu0
    %v606 = vpop.f32.mrf.mxu0
    %607 = vdwg.mxu0
    %v608 = vmul.f32 %v603, %v558
    %610 = vrot.lane.b32.xlu0 %v608, 12
    %v611 = vpop.permute.xlu0 %610
    %vm613 = vcmask 130144
    %614 = vst.msk [vmem:[#allocation3] sm:$0xff] %vm613, %v611
    %v615 = vld [vmem:[#allocation2] sm:$0xff]
    %v616 = vpack.c.bf16 %v615, %v615
    %618 = vrot.lane.b32.xlu0 %v616, 112
    %v619 = vpop.permute.xlu0 %618
    %620 = vrot.lane.b32.xlu0 %v616, 80
    %v621 = vpop.permute.xlu0 %620
    %v623 = vsel %vm136, %v619, 0
    %v626 = vsel %vm136, %v621, 0
    %628 = vmatprep.subr.bf16.mxu0 0
    %629 = vmatpush1.bf16.xpose.msra.mxu0 0
    %630 = vmatprep.subr.bf16.mxu0 0
    %631 = vmatpush1.bf16.xpose.msra.mxu0 0
    %632 = vmatprep.subr.bf16.mxu0 0
    %633 = vmatpush1.bf16.xpose.msra.mxu0 0
    %634 = vmatprep.subr.bf16.mxu0 0
    %635 = vmatpush1.bf16.xpose.msra.mxu0 0
    %636 = vmatprep.subr.bf16.mxu0 0
    %637 = vmatpush1.bf16.xpose.msra.mxu0 0
    %638 = vmatprep.subr.bf16.mxu0 0
    %639 = vmatpush1.bf16.xpose.msra.mxu0 0
    %640 = vmatprep.subr.bf16.mxu0 0
    %641 = vmatpush1.bf16.xpose.msra.mxu0 0
    %642 = vmatprep.subr.bf16.mxu0 0
    %643 = vmatpush1.bf16.xpose.msra.mxu0 %v626
    %644 = vmatprep.subr.bf16.mxu0 0
    %645 = vmatpush2.bf16.xpose.msra.mxu0 0
    %646 = vmatprep.subr.bf16.mxu0 0
    %647 = vmatpush2.bf16.xpose.msra.mxu0 0
    %648 = vmatprep.subr.bf16.mxu0 0
    %649 = vmatpush2.bf16.xpose.msra.mxu0 0
    %650 = vmatprep.subr.bf16.mxu0 0
    %651 = vmatpush2.bf16.xpose.msra.mxu0 0
    %652 = vmatprep.subr.bf16.mxu0 0
    %653 = vmatpush2.bf16.xpose.msra.mxu0 0
    %654 = vmatprep.subr.bf16.mxu0 0
    %655 = vmatpush2.bf16.xpose.msra.mxu0 0
    %656 = vmatprep.subr.bf16.mxu0 0
    %657 = vmatpush2.bf16.xpose.msra.mxu0 0
    %658 = vmatprep.subr.bf16.mxu0 0
    %659 = vmatpush2.bf16.xpose.msra.mxu0 0
    %660 = vmatprep.mubr.bf16.mxu0 0
    %661 = vmatmul.mubr.bf16.gmra.mxu0 %v623
    %v662 = vpop.f32.mrf.mxu0
    %v663 = vadd.f32 0.0, %v662
    %v664 = vpop.f32.mrf.mxu0
    %v665 = vpop.f32.mrf.mxu0
    %v666 = vpop.f32.mrf.mxu0
    %667 = vdwg.mxu0
    %v668 = vsel %vm183, %v663, -inf
    %669 = vmax.xlane.f32.xlu0 %v668
    %v670 = vpop.xlane.xlu0 %669
    %v671 = vsub.f32 %v663, %v670
    %v672 = vmul.f32 %v671, 1.442695
    %v673 = vpow.pop %v672
    %v674 = vsel %vm183, %v673, 0.0
    %675 = vadd.xlane.f32.xlu0 %v674
    %v676 = vpop.xlane.xlu0 %675
    %v677 = vrcp.pop %v676
    %v678 = vmul.f32 %v676, %v677
    %v679 = vsub.f32 2.0, %v678
    %v680 = vmul.f32 %v677, %v679
    %v681 = vpack.c.bf16 %v673, %v673
    %682 = vrot.lane.b32.xlu0 %v616, 48
    %v683 = vpop.permute.xlu0 %682
    %v685 = vsel %vm183, %v681, 0
    %v688 = vsel %vm203, %v683, 0
    %690 = vmatprep.subr.bf16.mxu0 0
    %691 = vmatpush1.bf16.msra.mxu0 0
    %692 = vmatprep.subr.bf16.mxu0 0
    %693 = vmatpush1.bf16.msra.mxu0 0
    %694 = vmatprep.subr.bf16.mxu0 0
    %695 = vmatpush1.bf16.msra.mxu0 0
    %696 = vmatprep.subr.bf16.mxu0 0
    %697 = vmatpush1.bf16.msra.mxu0 0
    %698 = vmatprep.subr.bf16.mxu0 0
    %699 = vmatpush1.bf16.msra.mxu0 0
    %700 = vmatprep.subr.bf16.mxu0 0
    %701 = vmatpush1.bf16.msra.mxu0 0
    %702 = vmatprep.subr.bf16.mxu0 0
    %703 = vmatpush1.bf16.msra.mxu0 0
    %704 = vmatprep.subr.bf16.mxu0 0
    %705 = vmatpush1.bf16.msra.mxu0 %v688
    %706 = vmatprep.subr.bf16.mxu0 0
    %707 = vmatpush2.bf16.msra.mxu0 0
    %708 = vmatprep.subr.bf16.mxu0 0
    %709 = vmatpush2.bf16.msra.mxu0 0
    %710 = vmatprep.subr.bf16.mxu0 0
    %711 = vmatpush2.bf16.msra.mxu0 0
    %712 = vmatprep.subr.bf16.mxu0 0
    %713 = vmatpush2.bf16.msra.mxu0 0
    %714 = vmatprep.subr.bf16.mxu0 0
    %715 = vmatpush2.bf16.msra.mxu0 0
    %716 = vmatprep.subr.bf16.mxu0 0
    %717 = vmatpush2.bf16.msra.mxu0 0
    %718 = vmatprep.subr.bf16.mxu0 0
    %719 = vmatpush2.bf16.msra.mxu0 0
    %720 = vmatprep.subr.bf16.mxu0 0
    %721 = vmatpush2.bf16.msra.mxu0 0
    %722 = vmatprep.mubr.bf16.mxu0 0
    %723 = vmatmul.mubr.bf16.gmra.mxu0 %v685
    %v724 = vpop.f32.mrf.mxu0
    %v725 = vadd.f32 0.0, %v724
    %v726 = vpop.f32.mrf.mxu0
    %v727 = vpop.f32.mrf.mxu0
    %v728 = vpop.f32.mrf.mxu0
    %729 = vdwg.mxu0
    %v730 = vmul.f32 %v725, %v680
    %732 = vrot.lane.b32.xlu0 %v730, 16
    %v733 = vpop.permute.xlu0 %732
    %vm735 = vcmask 162944
    %736 = vst.msk [vmem:[#allocation3] sm:$0xff] %vm735, %v733
    %v737 = vld [vmem:[#allocation2] sm:$0xff]
    %v738 = vpack.c.bf16 %v737, %v737
    %740 = vrot.lane.b32.xlu0 %v738, 108
    %v741 = vpop.permute.xlu0 %740
    %742 = vrot.lane.b32.xlu0 %v738, 76
    %v743 = vpop.permute.xlu0 %742
    %v745 = vsel %vm136, %v741, 0
    %v748 = vsel %vm136, %v743, 0
    %750 = vmatprep.subr.bf16.mxu0 0
    %751 = vmatpush1.bf16.xpose.msra.mxu0 0
    %752 = vmatprep.subr.bf16.mxu0 0
    %753 = vmatpush1.bf16.xpose.msra.mxu0 0
    %754 = vmatprep.subr.bf16.mxu0 0
    %755 = vmatpush1.bf16.xpose.msra.mxu0 0
    %756 = vmatprep.subr.bf16.mxu0 0
    %757 = vmatpush1.bf16.xpose.msra.mxu0 0
    %758 = vmatprep.subr.bf16.mxu0 0
    %759 = vmatpush1.bf16.xpose.msra.mxu0 0
    %760 = vmatprep.subr.bf16.mxu0 0
    %761 = vmatpush1.bf16.xpose.msra.mxu0 0
    %762 = vmatprep.subr.bf16.mxu0 0
    %763 = vmatpush1.bf16.xpose.msra.mxu0 0
    %764 = vmatprep.subr.bf16.mxu0 0
    %765 = vmatpush1.bf16.xpose.msra.mxu0 %v748
    %766 = vmatprep.subr.bf16.mxu0 0
    %767 = vmatpush2.bf16.xpose.msra.mxu0 0
    %768 = vmatprep.subr.bf16.mxu0 0
    %769 = vmatpush2.bf16.xpose.msra.mxu0 0
    %770 = vmatprep.subr.bf16.mxu0 0
    %771 = vmatpush2.bf16.xpose.msra.mxu0 0
    %772 = vmatprep.subr.bf16.mxu0 0
    %773 = vmatpush2.bf16.xpose.msra.mxu0 0
    %774 = vmatprep.subr.bf16.mxu0 0
    %775 = vmatpush2.bf16.xpose.msra.mxu0 0
    %776 = vmatprep.subr.bf16.mxu0 0
    %777 = vmatpush2.bf16.xpose.msra.mxu0 0
    %778 = vmatprep.subr.bf16.mxu0 0
    %779 = vmatpush2.bf16.xpose.msra.mxu0 0
    %780 = vmatprep.subr.bf16.mxu0 0
    %781 = vmatpush2.bf16.xpose.msra.mxu0 0
    %782 = vmatprep.mubr.bf16.mxu0 0
    %783 = vmatmul.mubr.bf16.gmra.mxu0 %v745
    %v784 = vpop.f32.mrf.mxu0
    %v785 = vadd.f32 0.0, %v784
    %v786 = vpop.f32.mrf.mxu0
    %v787 = vpop.f32.mrf.mxu0
    %v788 = vpop.f32.mrf.mxu0
    %789 = vdwg.mxu0
    %v790 = vsel %vm183, %v785, -inf
    %791 = vmax.xlane.f32.xlu0 %v790
    %v792 = vpop.xlane.xlu0 %791
    %v793 = vsub.f32 %v785, %v792
    %v794 = vmul.f32 %v793, 1.442695
    %v795 = vpow.pop %v794
    %v796 = vsel %vm183, %v795, 0.0
    %797 = vadd.xlane.f32.xlu0 %v796
    %v798 = vpop.xlane.xlu0 %797
    %v799 = vrcp.pop %v798
    %v800 = vmul.f32 %v798, %v799
    %v801 = vsub.f32 2.0, %v800
    %v802 = vmul.f32 %v799, %v801
    %v803 = vpack.c.bf16 %v795, %v795
    %804 = vrot.lane.b32.xlu0 %v738, 44
    %v805 = vpop.permute.xlu0 %804
    %v807 = vsel %vm183, %v803, 0
    %v810 = vsel %vm203, %v805, 0
    %812 = vmatprep.subr.bf16.mxu0 0
    %813 = vmatpush1.bf16.msra.mxu0 0
    %814 = vmatprep.subr.bf16.mxu0 0
    %815 = vmatpush1.bf16.msra.mxu0 0
    %816 = vmatprep.subr.bf16.mxu0 0
    %817 = vmatpush1.bf16.msra.mxu0 0
    %818 = vmatprep.subr.bf16.mxu0 0
    %819 = vmatpush1.bf16.msra.mxu0 0
    %820 = vmatprep.subr.bf16.mxu0 0
    %821 = vmatpush1.bf16.msra.mxu0 0
    %822 = vmatprep.subr.bf16.mxu0 0
    %823 = vmatpush1.bf16.msra.mxu0 0
    %824 = vmatprep.subr.bf16.mxu0 0
    %825 = vmatpush1.bf16.msra.mxu0 0
    %826 = vmatprep.subr.bf16.mxu0 0
    %827 = vmatpush1.bf16.msra.mxu0 %v810
    %828 = vmatprep.subr.bf16.mxu0 0
    %829 = vmatpush2.bf16.msra.mxu0 0
    %830 = vmatprep.subr.bf16.mxu0 0
    %831 = vmatpush2.bf16.msra.mxu0 0
    %832 = vmatprep.subr.bf16.mxu0 0
    %833 = vmatpush2.bf16.msra.mxu0 0
    %834 = vmatprep.subr.bf16.mxu0 0
    %835 = vmatpush2.bf16.msra.mxu0 0
    %836 = vmatprep.subr.bf16.mxu0 0
    %837 = vmatpush2.bf16.msra.mxu0 0
    %838 = vmatprep.subr.bf16.mxu0 0
    %839 = vmatpush2.bf16.msra.mxu0 0
    %840 = vmatprep.subr.bf16.mxu0 0
    %841 = vmatpush2.bf16.msra.mxu0 0
    %842 = vmatprep.subr.bf16.mxu0 0
    %843 = vmatpush2.bf16.msra.mxu0 0
    %844 = vmatprep.mubr.bf16.mxu0 0
    %845 = vmatmul.mubr.bf16.gmra.mxu0 %v807
    %v846 = vpop.f32.mrf.mxu0
    %v847 = vadd.f32 0.0, %v846
    %v848 = vpop.f32.mrf.mxu0
    %v849 = vpop.f32.mrf.mxu0
    %v850 = vpop.f32.mrf.mxu0
    %851 = vdwg.mxu0
    %v852 = vmul.f32 %v847, %v802
    %854 = vrot.lane.b32.xlu0 %v852, 20
    %v855 = vpop.permute.xlu0 %854
    %vm857 = vcmask 195744
    %858 = vst.msk [vmem:[#allocation3] sm:$0xff] %vm857, %v855
    %v859 = vld [vmem:[#allocation2] sm:$0xff]
    %v860 = vpack.c.bf16 %v859, %v859
    %862 = vrot.lane.b32.xlu0 %v860, 104
    %v863 = vpop.permute.xlu0 %862
    %864 = vrot.lane.b32.xlu0 %v860, 72
    %v865 = vpop.permute.xlu0 %864
    %v867 = vsel %vm136, %v863, 0
    %v870 = vsel %vm136, %v865, 0
    %872 = vmatprep.subr.bf16.mxu0 0
    %873 = vmatpush1.bf16.xpose.msra.mxu0 0
    %874 = vmatprep.subr.bf16.mxu0 0
    %875 = vmatpush1.bf16.xpose.msra.mxu0 0
    %876 = vmatprep.subr.bf16.mxu0 0
    %877 = vmatpush1.bf16.xpose.msra.mxu0 0
    %878 = vmatprep.subr.bf16.mxu0 0
    %879 = vmatpush1.bf16.xpose.msra.mxu0 0
    %880 = vmatprep.subr.bf16.mxu0 0
    %881 = vmatpush1.bf16.xpose.msra.mxu0 0
    %882 = vmatprep.subr.bf16.mxu0 0
    %883 = vmatpush1.bf16.xpose.msra.mxu0 0
    %884 = vmatprep.subr.bf16.mxu0 0
    %885 = vmatpush1.bf16.xpose.msra.mxu0 0
    %886 = vmatprep.subr.bf16.mxu0 0
    %887 = vmatpush1.bf16.xpose.msra.mxu0 %v870
    %888 = vmatprep.subr.bf16.mxu0 0
    %889 = vmatpush2.bf16.xpose.msra.mxu0 0
    %890 = vmatprep.subr.bf16.mxu0 0
    %891 = vmatpush2.bf16.xpose.msra.mxu0 0
    %892 = vmatprep.subr.bf16.mxu0 0
    %893 = vmatpush2.bf16.xpose.msra.mxu0 0
    %894 = vmatprep.subr.bf16.mxu0 0
    %895 = vmatpush2.bf16.xpose.msra.mxu0 0
    %896 = vmatprep.subr.bf16.mxu0 0
    %897 = vmatpush2.bf16.xpose.msra.mxu0 0
    %898 = vmatprep.subr.bf16.mxu0 0
    %899 = vmatpush2.bf16.xpose.msra.mxu0 0
    %900 = vmatprep.subr.bf16.mxu0 0
    %901 = vmatpush2.bf16.xpose.msra.mxu0 0
    %902 = vmatprep.subr.bf16.mxu0 0
    %903 = vmatpush2.bf16.xpose.msra.mxu0 0
    %904 = vmatprep.mubr.bf16.mxu0 0
    %905 = vmatmul.mubr.bf16.gmra.mxu0 %v867
    %v906 = vpop.f32.mrf.mxu0
    %v907 = vadd.f32 0.0, %v906
    %v908 = vpop.f32.mrf.mxu0
    %v909 = vpop.f32.mrf.mxu0
    %v910 = vpop.f32.mrf.mxu0
    %911 = vdwg.mxu0
    %v912 = vsel %vm183, %v907, -inf
    %913 = vmax.xlane.f32.xlu0 %v912
    %v914 = vpop.xlane.xlu0 %913
    %v915 = vsub.f32 %v907, %v914
    %v916 = vmul.f32 %v915, 1.442695
    %v917 = vpow.pop %v916
    %v918 = vsel %vm183, %v917, 0.0
    %919 = vadd.xlane.f32.xlu0 %v918
    %v920 = vpop.xlane.xlu0 %919
    %v921 = vrcp.pop %v920
    %v922 = vmul.f32 %v920, %v921
    %v923 = vsub.f32 2.0, %v922
    %v924 = vmul.f32 %v921, %v923
    %v925 = vpack.c.bf16 %v917, %v917
    %926 = vrot.lane.b32.xlu0 %v860, 40
    %v927 = vpop.permute.xlu0 %926
    %v929 = vsel %vm183, %v925, 0
    %v932 = vsel %vm203, %v927, 0
    %934 = vmatprep.subr.bf16.mxu0 0
    %935 = vmatpush1.bf16.msra.mxu0 0
    %936 = vmatprep.subr.bf16.mxu0 0
    %937 = vmatpush1.bf16.msra.mxu0 0
    %938 = vmatprep.subr.bf16.mxu0 0
    %939 = vmatpush1.bf16.msra.mxu0 0
    %940 = vmatprep.subr.bf16.mxu0 0
    %941 = vmatpush1.bf16.msra.mxu0 0
    %942 = vmatprep.subr.bf16.mxu0 0
    %943 = vmatpush1.bf16.msra.mxu0 0
    %944 = vmatprep.subr.bf16.mxu0 0
    %945 = vmatpush1.bf16.msra.mxu0 0
    %946 = vmatprep.subr.bf16.mxu0 0
    %947 = vmatpush1.bf16.msra.mxu0 0
    %948 = vmatprep.subr.bf16.mxu0 0
    %949 = vmatpush1.bf16.msra.mxu0 %v932
    %950 = vmatprep.subr.bf16.mxu0 0
    %951 = vmatpush2.bf16.msra.mxu0 0
    %952 = vmatprep.subr.bf16.mxu0 0
    %953 = vmatpush2.bf16.msra.mxu0 0
    %954 = vmatprep.subr.bf16.mxu0 0
    %955 = vmatpush2.bf16.msra.mxu0 0
    %956 = vmatprep.subr.bf16.mxu0 0
    %957 = vmatpush2.bf16.msra.mxu0 0
    %958 = vmatprep.subr.bf16.mxu0 0
    %959 = vmatpush2.bf16.msra.mxu0 0
    %960 = vmatprep.subr.bf16.mxu0 0
    %961 = vmatpush2.bf16.msra.mxu0 0
    %962 = vmatprep.subr.bf16.mxu0 0
    %963 = vmatpush2.bf16.msra.mxu0 0
    %964 = vmatprep.subr.bf16.mxu0 0
    %965 = vmatpush2.bf16.msra.mxu0 0
    %966 = vmatprep.mubr.bf16.mxu0 0
    %967 = vmatmul.mubr.bf16.gmra.mxu0 %v929
    %v968 = vpop.f32.mrf.mxu0
    %v969 = vadd.f32 0.0, %v968
    %v970 = vpop.f32.mrf.mxu0
    %v971 = vpop.f32.mrf.mxu0
    %v972 = vpop.f32.mrf.mxu0
    %973 = vdwg.mxu0
    %v974 = vmul.f32 %v969, %v924
    %976 = vrot.lane.b32.xlu0 %v974, 24
    %v977 = vpop.permute.xlu0 %976
    %vm979 = vcmask 228544
    %980 = vst.msk [vmem:[#allocation3] sm:$0xff] %vm979, %v977
    %v981 = vld [vmem:[#allocation2] sm:$0xff]
    %v982 = vpack.c.bf16 %v981, %v981
    %984 = vrot.lane.b32.xlu0 %v982, 100
    %v985 = vpop.permute.xlu0 %984
    %986 = vrot.lane.b32.xlu0 %v982, 68
    %v987 = vpop.permute.xlu0 %986
    %v989 = vsel %vm136, %v985, 0
    %v992 = vsel %vm136, %v987, 0
    %994 = vmatprep.subr.bf16.mxu0 0
    %995 = vmatpush1.bf16.xpose.msra.mxu0 0
    %996 = vmatprep.subr.bf16.mxu0 0
    %997 = vmatpush1.bf16.xpose.msra.mxu0 0
    %998 = vmatprep.subr.bf16.mxu0 0
    %999 = vmatpush1.bf16.xpose.msra.mxu0 0
    %1000 = vmatprep.subr.bf16.mxu0 0
    %1001 = vmatpush1.bf16.xpose.msra.mxu0 0
    %1002 = vmatprep.subr.bf16.mxu0 0
    %1003 = vmatpush1.bf16.xpose.msra.mxu0 0
    %1004 = vmatprep.subr.bf16.mxu0 0
    %1005 = vmatpush1.bf16.xpose.msra.mxu0 0
    %1006 = vmatprep.subr.bf16.mxu0 0
    %1007 = vmatpush1.bf16.xpose.msra.mxu0 0
    %1008 = vmatprep.subr.bf16.mxu0 0
    %1009 = vmatpush1.bf16.xpose.msra.mxu0 %v992
    %1010 = vmatprep.subr.bf16.mxu0 0
    %1011 = vmatpush2.bf16.xpose.msra.mxu0 0
    %1012 = vmatprep.subr.bf16.mxu0 0
    %1013 = vmatpush2.bf16.xpose.msra.mxu0 0
    %1014 = vmatprep.subr.bf16.mxu0 0
    %1015 = vmatpush2.bf16.xpose.msra.mxu0 0
    %1016 = vmatprep.subr.bf16.mxu0 0
    %1017 = vmatpush2.bf16.xpose.msra.mxu0 0
    %1018 = vmatprep.subr.bf16.mxu0 0
    %1019 = vmatpush2.bf16.xpose.msra.mxu0 0
    %1020 = vmatprep.subr.bf16.mxu0 0
    %1021 = vmatpush2.bf16.xpose.msra.mxu0 0
    %1022 = vmatprep.subr.bf16.mxu0 0
    %1023 = vmatpush2.bf16.xpose.msra.mxu0 0
    %1024 = vmatprep.subr.bf16.mxu0 0
    %1025 = vmatpush2.bf16.xpose.msra.mxu0 0
    %1026 = vmatprep.mubr.bf16.mxu0 0
    %1027 = vmatmul.mubr.bf16.gmra.mxu0 %v989
    %v1028 = vpop.f32.mrf.mxu0
    %v1029 = vadd.f32 0.0, %v1028
    %v1030 = vpop.f32.mrf.mxu0
    %v1031 = vpop.f32.mrf.mxu0
    %v1032 = vpop.f32.mrf.mxu0
    %1033 = vdwg.mxu0
    %v1034 = vsel %vm183, %v1029, -inf
    %1035 = vmax.xlane.f32.xlu0 %v1034
    %v1036 = vpop.xlane.xlu0 %1035
    %v1037 = vsub.f32 %v1029, %v1036
    %v1038 = vmul.f32 %v1037, 1.442695
    %v1039 = vpow.pop %v1038
    %v1040 = vsel %vm183, %v1039, 0.0
    %1041 = vadd.xlane.f32.xlu0 %v1040
    %v1042 = vpop.xlane.xlu0 %1041
    %v1043 = vrcp.pop %v1042
    %v1044 = vmul.f32 %v1042, %v1043
    %v1045 = vsub.f32 2.0, %v1044
    %v1046 = vmul.f32 %v1043, %v1045
    %v1047 = vpack.c.bf16 %v1039, %v1039
    %1048 = vrot.lane.b32.xlu0 %v982, 36
    %v1049 = vpop.permute.xlu0 %1048
    %v1051 = vsel %vm183, %v1047, 0
    %v1054 = vsel %vm203, %v1049, 0
    %1056 = vmatprep.subr.bf16.mxu0 0
    %1057 = vmatpush1.bf16.msra.mxu0 0
    %1058 = vmatprep.subr.bf16.mxu0 0
    %1059 = vmatpush1.bf16.msra.mxu0 0
    %1060 = vmatprep.subr.bf16.mxu0 0
    %1061 = vmatpush1.bf16.msra.mxu0 0
    %1062 = vmatprep.subr.bf16.mxu0 0
    %1063 = vmatpush1.bf16.msra.mxu0 0
    %1064 = vmatprep.subr.bf16.mxu0 0
    %1065 = vmatpush1.bf16.msra.mxu0 0
    %1066 = vmatprep.subr.bf16.mxu0 0
    %1067 = vmatpush1.bf16.msra.mxu0 0
    %1068 = vmatprep.subr.bf16.mxu0 0
    %1069 = vmatpush1.bf16.msra.mxu0 0
    %1070 = vmatprep.subr.bf16.mxu0 0
    %1071 = vmatpush1.bf16.msra.mxu0 %v1054
    %1072 = vmatprep.subr.bf16.mxu0 0
    %1073 = vmatpush2.bf16.msra.mxu0 0
    %1074 = vmatprep.subr.bf16.mxu0 0
    %1075 = vmatpush2.bf16.msra.mxu0 0
    %1076 = vmatprep.subr.bf16.mxu0 0
    %1077 = vmatpush2.bf16.msra.mxu0 0
    %1078 = vmatprep.subr.bf16.mxu0 0
    %1079 = vmatpush2.bf16.msra.mxu0 0
    %1080 = vmatprep.subr.bf16.mxu0 0
    %1081 = vmatpush2.bf16.msra.mxu0 0
    %1082 = vmatprep.subr.bf16.mxu0 0
    %1083 = vmatpush2.bf16.msra.mxu0 0
    %1084 = vmatprep.subr.bf16.mxu0 0
    %1085 = vmatpush2.bf16.msra.mxu0 0
    %1086 = vmatprep.subr.bf16.mxu0 0
    %1087 = vmatpush2.bf16.msra.mxu0 0
    %1088 = vmatprep.mubr.bf16.mxu0 0
    %1089 = vmatmul.mubr.bf16.gmra.mxu0 %v1051
    %v1090 = vpop.f32.mrf.mxu0
    %v1091 = vadd.f32 0.0, %v1090
    %v1092 = vpop.f32.mrf.mxu0
    %v1093 = vpop.f32.mrf.mxu0
    %v1094 = vpop.f32.mrf.mxu0
    %1095 = vdwg.mxu0
    %v1096 = vmul.f32 %v1091, %v1046
    %1098 = vrot.lane.b32.xlu0 %v1096, 28
    %v1099 = vpop.permute.xlu0 %1098
    %vm1101 = vcmask 261344
    %1102 = vst.msk [vmem:[#allocation3] sm:$0xff] %vm1101, %v1099
    %v1103 = vld [vmem:[#allocation2 + $0x8] sm:$0xff]
    %v1104 = vpack.c.bf16 %v1103, %v1103
    %1106 = vrot.lane.b32.xlu0 %v1104, 96
    %v1107 = vpop.permute.xlu0 %1106
    %v1109 = vsel %vm136, %v1104, 0
    %v1112 = vsel %vm136, %v1107, 0
    %1114 = vmatprep.subr.bf16.mxu0 0
    %1115 = vmatpush1.bf16.xpose.msra.mxu0 0
    %1116 = vmatprep.subr.bf16.mxu0 0
    %1117 = vmatpush1.bf16.xpose.msra.mxu0 0
    %1118 = vmatprep.subr.bf16.mxu0 0
    %1119 = vmatpush1.bf16.xpose.msra.mxu0 0
    %1120 = vmatprep.subr.bf16.mxu0 0
    %1121 = vmatpush1.bf16.xpose.msra.mxu0 0
    %1122 = vmatprep.subr.bf16.mxu0 0
    %1123 = vmatpush1.bf16.xpose.msra.mxu0 0
    %1124 = vmatprep.subr.bf16.mxu0 0
    %1125 = vmatpush1.bf16.xpose.msra.mxu0 0
    %1126 = vmatprep.subr.bf16.mxu0 0
    %1127 = vmatpush1.bf16.xpose.msra.mxu0 0
    %1128 = vmatprep.subr.bf16.mxu0 0
    %1129 = vmatpush1.bf16.xpose.msra.mxu0 %v1112
    %1130 = vmatprep.subr.bf16.mxu0 0
    %1131 = vmatpush2.bf16.xpose.msra.mxu0 0
    %1132 = vmatprep.subr.bf16.mxu0 0
    %1133 = vmatpush2.bf16.xpose.msra.mxu0 0
    %1134 = vmatprep.subr.bf16.mxu0 0
    %1135 = vmatpush2.bf16.xpose.msra.mxu0 0
    %1136 = vmatprep.subr.bf16.mxu0 0
    %1137 = vmatpush2.bf16.xpose.msra.mxu0 0
    %1138 = vmatprep.subr.bf16.mxu0 0
    %1139 = vmatpush2.bf16.xpose.msra.mxu0 0
    %1140 = vmatprep.subr.bf16.mxu0 0
    %1141 = vmatpush2.bf16.xpose.msra.mxu0 0
    %1142 = vmatprep.subr.bf16.mxu0 0
    %1143 = vmatpush2.bf16.xpose.msra.mxu0 0
    %1144 = vmatprep.subr.bf16.mxu0 0
    %1145 = vmatpush2.bf16.xpose.msra.mxu0 0
    %1146 = vmatprep.mubr.bf16.mxu0 0
    %1147 = vmatmul.mubr.bf16.gmra.mxu0 %v1109
    %v1148 = vpop.f32.mrf.mxu0
    %v1149 = vadd.f32 0.0, %v1148
    %v1150 = vpop.f32.mrf.mxu0
    %v1151 = vpop.f32.mrf.mxu0
    %v1152 = vpop.f32.mrf.mxu0
    %1153 = vdwg.mxu0
    %v1154 = vsel %vm183, %v1149, -inf
    %1155 = vmax.xlane.f32.xlu0 %v1154
    %v1156 = vpop.xlane.xlu0 %1155
    %v1157 = vsub.f32 %v1149, %v1156
    %v1158 = vmul.f32 %v1157, 1.442695
    %v1159 = vpow.pop %v1158
    %v1160 = vsel %vm183, %v1159, 0.0
    %1161 = vadd.xlane.f32.xlu0 %v1160
    %v1162 = vpop.xlane.xlu0 %1161
    %v1163 = vrcp.pop %v1162
    %v1164 = vmul.f32 %v1162, %v1163
    %v1165 = vsub.f32 2.0, %v1164
    %v1166 = vmul.f32 %v1163, %v1165
    %v1167 = vpack.c.bf16 %v1159, %v1159
    %1168 = vrot.lane.b32.xlu0 %v1104, 64
    %v1169 = vpop.permute.xlu0 %1168
    %v1171 = vsel %vm183, %v1167, 0
    %v1174 = vsel %vm203, %v1169, 0
    %1176 = vmatprep.subr.bf16.mxu0 0
    %1177 = vmatpush1.bf16.msra.mxu0 0
    %1178 = vmatprep.subr.bf16.mxu0 0
    %1179 = vmatpush1.bf16.msra.mxu0 0
    %1180 = vmatprep.subr.bf16.mxu0 0
    %1181 = vmatpush1.bf16.msra.mxu0 0
    %1182 = vmatprep.subr.bf16.mxu0 0
    %1183 = vmatpush1.bf16.msra.mxu0 0
    %1184 = vmatprep.subr.bf16.mxu0 0
    %1185 = vmatpush1.bf16.msra.mxu0 0
    %1186 = vmatprep.subr.bf16.mxu0 0
    %1187 = vmatpush1.bf16.msra.mxu0 0
    %1188 = vmatprep.subr.bf16.mxu0 0
    %1189 = vmatpush1.bf16.msra.mxu0 0
    %1190 = vmatprep.subr.bf16.mxu0 0
    %1191 = vmatpush1.bf16.msra.mxu0 %v1174
    %1192 = vmatprep.subr.bf16.mxu0 0
    %1193 = vmatpush2.bf16.msra.mxu0 0
    %1194 = vmatprep.subr.bf16.mxu0 0
    %1195 = vmatpush2.bf16.msra.mxu0 0
    %1196 = vmatprep.subr.bf16.mxu0 0
    %1197 = vmatpush2.bf16.msra.mxu0 0
    %1198 = vmatprep.subr.bf16.mxu0 0
    %1199 = vmatpush2.bf16.msra.mxu0 0
    %1200 = vmatprep.subr.bf16.mxu0 0
    %1201 = vmatpush2.bf16.msra.mxu0 0
    %1202 = vmatprep.subr.bf16.mxu0 0
    %1203 = vmatpush2.bf16.msra.mxu0 0
    %1204 = vmatprep.subr.bf16.mxu0 0
    %1205 = vmatpush2.bf16.msra.mxu0 0
    %1206 = vmatprep.subr.bf16.mxu0 0
    %1207 = vmatpush2.bf16.msra.mxu0 0
    %1208 = vmatprep.mubr.bf16.mxu0 0
    %1209 = vmatmul.mubr.bf16.gmra.mxu0 %v1171
    %v1210 = vpop.f32.mrf.mxu0
    %v1211 = vadd.f32 0.0, %v1210
    %v1212 = vpop.f32.mrf.mxu0
    %v1213 = vpop.f32.mrf.mxu0
    %v1214 = vpop.f32.mrf.mxu0
    %1215 = vdwg.mxu0
    %v1216 = vmul.f32 %v1211, %v1166
    %1217 = vst.msk [vmem:[#allocation3 + $0x8] sm:$0xff] %vm136, %v1216
    %v1218 = vld [vmem:[#allocation2 + $0x8] sm:$0xff]
    %v1219 = vpack.c.bf16 %v1218, %v1218
    %1221 = vrot.lane.b32.xlu0 %v1219, 124
    %v1222 = vpop.permute.xlu0 %1221
    %1223 = vrot.lane.b32.xlu0 %v1219, 92
    %v1224 = vpop.permute.xlu0 %1223
    %v1226 = vsel %vm136, %v1222, 0
    %v1229 = vsel %vm136, %v1224, 0
    %1231 = vmatprep.subr.bf16.mxu0 0
    %1232 = vmatpush1.bf16.xpose.msra.mxu0 0
    %1233 = vmatprep.subr.bf16.mxu0 0
    %1234 = vmatpush1.bf16.xpose.msra.mxu0 0
    %1235 = vmatprep.subr.bf16.mxu0 0
    %1236 = vmatpush1.bf16.xpose.msra.mxu0 0
    %1237 = vmatprep.subr.bf16.mxu0 0
    %1238 = vmatpush1.bf16.xpose.msra.mxu0 0
    %1239 = vmatprep.subr.bf16.mxu0 0
    %1240 = vmatpush1.bf16.xpose.msra.mxu0 0
    %1241 = vmatprep.subr.bf16.mxu0 0
    %1242 = vmatpush1.bf16.xpose.msra.mxu0 0
    %1243 = vmatprep.subr.bf16.mxu0 0
    %1244 = vmatpush1.bf16.xpose.msra.mxu0 0
    %1245 = vmatprep.subr.bf16.mxu0 0
    %1246 = vmatpush1.bf16.xpose.msra.mxu0 %v1229
    %1247 = vmatprep.subr.bf16.mxu0 0
    %1248 = vmatpush2.bf16.xpose.msra.mxu0 0
    %1249 = vmatprep.subr.bf16.mxu0 0
    %1250 = vmatpush2.bf16.xpose.msra.mxu0 0
    %1251 = vmatprep.subr.bf16.mxu0 0
    %1252 = vmatpush2.bf16.xpose.msra.mxu0 0
    %1253 = vmatprep.subr.bf16.mxu0 0
    %1254 = vmatpush2.bf16.xpose.msra.mxu0 0
    %1255 = vmatprep.subr.bf16.mxu0 0
    %1256 = vmatpush2.bf16.xpose.msra.mxu0 0
    %1257 = vmatprep.subr.bf16.mxu0 0
    %1258 = vmatpush2.bf16.xpose.msra.mxu0 0
    %1259 = vmatprep.subr.bf16.mxu0 0
    %1260 = vmatpush2.bf16.xpose.msra.mxu0 0
    %1261 = vmatprep.subr.bf16.mxu0 0
    %1262 = vmatpush2.bf16.xpose.msra.mxu0 0
    %1263 = vmatprep.mubr.bf16.mxu0 0
    %1264 = vmatmul.mubr.bf16.gmra.mxu0 %v1226
    %v1265 = vpop.f32.mrf.mxu0
    %v1266 = vadd.f32 0.0, %v1265
    %v1267 = vpop.f32.mrf.mxu0
    %v1268 = vpop.f32.mrf.mxu0
    %v1269 = vpop.f32.mrf.mxu0
    %1270 = vdwg.mxu0
    %v1271 = vsel %vm183, %v1266, -inf
    %1272 = vmax.xlane.f32.xlu0 %v1271
    %v1273 = vpop.xlane.xlu0 %1272
    %v1274 = vsub.f32 %v1266, %v1273
    %v1275 = vmul.f32 %v1274, 1.442695
    %v1276 = vpow.pop %v1275
    %v1277 = vsel %vm183, %v1276, 0.0
    %1278 = vadd.xlane.f32.xlu0 %v1277
    %v1279 = vpop.xlane.xlu0 %1278
    %v1280 = vrcp.pop %v1279
    %v1281 = vmul.f32 %v1279, %v1280
    %v1282 = vsub.f32 2.0, %v1281
    %v1283 = vmul.f32 %v1280, %v1282
    %v1284 = vpack.c.bf16 %v1276, %v1276
    %1285 = vrot.lane.b32.xlu0 %v1219, 60
    %v1286 = vpop.permute.xlu0 %1285
    %v1288 = vsel %vm183, %v1284, 0
    %v1291 = vsel %vm203, %v1286, 0
    %1293 = vmatprep.subr.bf16.mxu0 0
    %1294 = vmatpush1.bf16.msra.mxu0 0
    %1295 = vmatprep.subr.bf16.mxu0 0
    %1296 = vmatpush1.bf16.msra.mxu0 0
    %1297 = vmatprep.subr.bf16.mxu0 0
    %1298 = vmatpush1.bf16.msra.mxu0 0
    %1299 = vmatprep.subr.bf16.mxu0 0
    %1300 = vmatpush1.bf16.msra.mxu0 0
    %1301 = vmatprep.subr.bf16.mxu0 0
    %1302 = vmatpush1.bf16.msra.mxu0 0
    %1303 = vmatprep.subr.bf16.mxu0 0
    %1304 = vmatpush1.bf16.msra.mxu0 0
    %1305 = vmatprep.subr.bf16.mxu0 0
    %1306 = vmatpush1.bf16.msra.mxu0 0
    %1307 = vmatprep.subr.bf16.mxu0 0
    %1308 = vmatpush1.bf16.msra.mxu0 %v1291
    %1309 = vmatprep.subr.bf16.mxu0 0
    %1310 = vmatpush2.bf16.msra.mxu0 0
    %1311 = vmatprep.subr.bf16.mxu0 0
    %1312 = vmatpush2.bf16.msra.mxu0 0
    %1313 = vmatprep.subr.bf16.mxu0 0
    %1314 = vmatpush2.bf16.msra.mxu0 0
    %1315 = vmatprep.subr.bf16.mxu0 0
    %1316 = vmatpush2.bf16.msra.mxu0 0
    %1317 = vmatprep.subr.bf16.mxu0 0
    %1318 = vmatpush2.bf16.msra.mxu0 0
    %1319 = vmatprep.subr.bf16.mxu0 0
    %1320 = vmatpush2.bf16.msra.mxu0 0
    %1321 = vmatprep.subr.bf16.mxu0 0
    %1322 = vmatpush2.bf16.msra.mxu0 0
    %1323 = vmatprep.subr.bf16.mxu0 0
    %1324 = vmatpush2.bf16.msra.mxu0 0
    %1325 = vmatprep.mubr.bf16.mxu0 0
    %1326 = vmatmul.mubr.bf16.gmra.mxu0 %v1288
    %v1327 = vpop.f32.mrf.mxu0
    %v1328 = vadd.f32 0.0, %v1327
    %v1329 = vpop.f32.mrf.mxu0
    %v1330 = vpop.f32.mrf.mxu0
    %v1331 = vpop.f32.mrf.mxu0
    %1332 = vdwg.mxu0
    %v1333 = vmul.f32 %v1328, %v1283
    %1335 = vrot.lane.b32.xlu0 %v1333, 4
    %v1336 = vpop.permute.xlu0 %1335
    %1338 = vst.msk [vmem:[#allocation3 + $0x8] sm:$0xff] %vm369, %v1336
    %v1339 = vld [vmem:[#allocation2 + $0x8] sm:$0xff]
    %v1340 = vpack.c.bf16 %v1339, %v1339
    %1342 = vrot.lane.b32.xlu0 %v1340, 120
    %v1343 = vpop.permute.xlu0 %1342
    %1344 = vrot.lane.b32.xlu0 %v1340, 88
    %v1345 = vpop.permute.xlu0 %1344
    %v1347 = vsel %vm136, %v1343, 0
    %v1350 = vsel %vm136, %v1345, 0
    %1352 = vmatprep.subr.bf16.mxu0 0
    %1353 = vmatpush1.bf16.xpose.msra.mxu0 0
    %1354 = vmatprep.subr.bf16.mxu0 0
    %1355 = vmatpush1.bf16.xpose.msra.mxu0 0
    %1356 = vmatprep.subr.bf16.mxu0 0
    %1357 = vmatpush1.bf16.xpose.msra.mxu0 0
    %1358 = vmatprep.subr.bf16.mxu0 0
    %1359 = vmatpush1.bf16.xpose.msra.mxu0 0
    %1360 = vmatprep.subr.bf16.mxu0 0
    %1361 = vmatpush1.bf16.xpose.msra.mxu0 0
    %1362 = vmatprep.subr.bf16.mxu0 0
    %1363 = vmatpush1.bf16.xpose.msra.mxu0 0
    %1364 = vmatprep.subr.bf16.mxu0 0
    %1365 = vmatpush1.bf16.xpose.msra.mxu0 0
    %1366 = vmatprep.subr.bf16.mxu0 0
    %1367 = vmatpush1.bf16.xpose.msra.mxu0 %v1350
    %1368 = vmatprep.subr.bf16.mxu0 0
    %1369 = vmatpush2.bf16.xpose.msra.mxu0 0
    %1370 = vmatprep.subr.bf16.mxu0 0
    %1371 = vmatpush2.bf16.xpose.msra.mxu0 0
    %1372 = vmatprep.subr.bf16.mxu0 0
    %1373 = vmatpush2.bf16.xpose.msra.mxu0 0
    %1374 = vmatprep.subr.bf16.mxu0 0
    %1375 = vmatpush2.bf16.xpose.msra.mxu0 0
    %1376 = vmatprep.subr.bf16.mxu0 0
    %1377 = vmatpush2.bf16.xpose.msra.mxu0 0
    %1378 = vmatprep.subr.bf16.mxu0 0
    %1379 = vmatpush2.bf16.xpose.msra.mxu0 0
    %1380 = vmatprep.subr.bf16.mxu0 0
    %1381 = vmatpush2.bf16.xpose.msra.mxu0 0
    %1382 = vmatprep.subr.bf16.mxu0 0
    %1383 = vmatpush2.bf16.xpose.msra.mxu0 0
    %1384 = vmatprep.mubr.bf16.mxu0 0
    %1385 = vmatmul.mubr.bf16.gmra.mxu0 %v1347
    %v1386 = vpop.f32.mrf.mxu0
    %v1387 = vadd.f32 0.0, %v1386
    %v1388 = vpop.f32.mrf.mxu0
    %v1389 = vpop.f32.mrf.mxu0
    %v1390 = vpop.f32.mrf.mxu0
    %1391 = vdwg.mxu0
    %v1392 = vsel %vm183, %v1387, -inf
    %1393 = vmax.xlane.f32.xlu0 %v1392
    %v1394 = vpop.xlane.xlu0 %1393
    %v1395 = vsub.f32 %v1387, %v1394
    %v1396 = vmul.f32 %v1395, 1.442695
    %v1397 = vpow.pop %v1396
    %v1398 = vsel %vm183, %v1397, 0.0
    %1399 = vadd.xlane.f32.xlu0 %v1398
    %v1400 = vpop.xlane.xlu0 %1399
    %v1401 = vrcp.pop %v1400
    %v1402 = vmul.f32 %v1400, %v1401
    %v1403 = vsub.f32 2.0, %v1402
    %v1404 = vmul.f32 %v1401, %v1403
    %v1405 = vpack.c.bf16 %v1397, %v1397
    %1406 = vrot.lane.b32.xlu0 %v1340, 56
    %v1407 = vpop.permute.xlu0 %1406
    %v1409 = vsel %vm183, %v1405, 0
    %v1412 = vsel %vm203, %v1407, 0
    %1414 = vmatprep.subr.bf16.mxu0 0
    %1415 = vmatpush1.bf16.msra.mxu0 0
    %1416 = vmatprep.subr.bf16.mxu0 0
    %1417 = vmatpush1.bf16.msra.mxu0 0
    %1418 = vmatprep.subr.bf16.mxu0 0
    %1419 = vmatpush1.bf16.msra.mxu0 0
    %1420 = vmatprep.subr.bf16.mxu0 0
    %1421 = vmatpush1.bf16.msra.mxu0 0
    %1422 = vmatprep.subr.bf16.mxu0 0
    %1423 = vmatpush1.bf16.msra.mxu0 0
    %1424 = vmatprep.subr.bf16.mxu0 0
    %1425 = vmatpush1.bf16.msra.mxu0 0
    %1426 = vmatprep.subr.bf16.mxu0 0
    %1427 = vmatpush1.bf16.msra.mxu0 0
    %1428 = vmatprep.subr.bf16.mxu0 0
    %1429 = vmatpush1.bf16.msra.mxu0 %v1412
    %1430 = vmatprep.subr.bf16.mxu0 0
    %1431 = vmatpush2.bf16.msra.mxu0 0
    %1432 = vmatprep.subr.bf16.mxu0 0
    %1433 = vmatpush2.bf16.msra.mxu0 0
    %1434 = vmatprep.subr.bf16.mxu0 0
    %1435 = vmatpush2.bf16.msra.mxu0 0
    %1436 = vmatprep.subr.bf16.mxu0 0
    %1437 = vmatpush2.bf16.msra.mxu0 0
    %1438 = vmatprep.subr.bf16.mxu0 0
    %1439 = vmatpush2.bf16.msra.mxu0 0
    %1440 = vmatprep.subr.bf16.mxu0 0
    %1441 = vmatpush2.bf16.msra.mxu0 0
    %1442 = vmatprep.subr.bf16.mxu0 0
    %1443 = vmatpush2.bf16.msra.mxu0 0
    %1444 = vmatprep.subr.bf16.mxu0 0
    %1445 = vmatpush2.bf16.msra.mxu0 0
    %1446 = vmatprep.mubr.bf16.mxu0 0
    %1447 = vmatmul.mubr.bf16.gmra.mxu0 %v1409
    %v1448 = vpop.f32.mrf.mxu0
    %v1449 = vadd.f32 0.0, %v1448
    %v1450 = vpop.f32.mrf.mxu0
    %v1451 = vpop.f32.mrf.mxu0
    %v1452 = vpop.f32.mrf.mxu0
    %1453 = vdwg.mxu0
    %v1454 = vmul.f32 %v1449, %v1404
    %1456 = vrot.lane.b32.xlu0 %v1454, 8
    %v1457 = vpop.permute.xlu0 %1456
    %1459 = vst.msk [vmem:[#allocation3 + $0x8] sm:$0xff] %vm491, %v1457
    %v1460 = vld [vmem:[#allocation2 + $0x8] sm:$0xff]
    %v1461 = vpack.c.bf16 %v1460, %v1460
    %1463 = vrot.lane.b32.xlu0 %v1461, 116
    %v1464 = vpop.permute.xlu0 %1463
    %1465 = vrot.lane.b32.xlu0 %v1461, 84
    %v1466 = vpop.permute.xlu0 %1465
    %v1468 = vsel %vm136, %v1464, 0
    %v1471 = vsel %vm136, %v1466, 0
    %1473 = vmatprep.subr.bf16.mxu0 0
    %1474 = vmatpush1.bf16.xpose.msra.mxu0 0
    %1475 = vmatprep.subr.bf16.mxu0 0
    %1476 = vmatpush1.bf16.xpose.msra.mxu0 0
    %1477 = vmatprep.subr.bf16.mxu0 0
    %1478 = vmatpush1.bf16.xpose.msra.mxu0 0
    %1479 = vmatprep.subr.bf16.mxu0 0
    %1480 = vmatpush1.bf16.xpose.msra.mxu0 0
    %1481 = vmatprep.subr.bf16.mxu0 0
    %1482 = vmatpush1.bf16.xpose.msra.mxu0 0
    %1483 = vmatprep.subr.bf16.mxu0 0
    %1484 = vmatpush1.bf16.xpose.msra.mxu0 0
    %1485 = vmatprep.subr.bf16.mxu0 0
    %1486 = vmatpush1.bf16.xpose.msra.mxu0 0
    %1487 = vmatprep.subr.bf16.mxu0 0
    %1488 = vmatpush1.bf16.xpose.msra.mxu0 %v1471
    %1489 = vmatprep.subr.bf16.mxu0 0
    %1490 = vmatpush2.bf16.xpose.msra.mxu0 0
    %1491 = vmatprep.subr.bf16.mxu0 0
    %1492 = vmatpush2.bf16.xpose.msra.mxu0 0
    %1493 = vmatprep.subr.bf16.mxu0 0
    %1494 = vmatpush2.bf16.xpose.msra.mxu0 0
    %1495 = vmatprep.subr.bf16.mxu0 0
    %1496 = vmatpush2.bf16.xpose.msra.mxu0 0
    %1497 = vmatprep.subr.bf16.mxu0 0
    %1498 = vmatpush2.bf16.xpose.msra.mxu0 0
    %1499 = vmatprep.subr.bf16.mxu0 0
    %1500 = vmatpush2.bf16.xpose.msra.mxu0 0
    %1501 = vmatprep.subr.bf16.mxu0 0
    %1502 = vmatpush2.bf16.xpose.msra.mxu0 0
    %1503 = vmatprep.subr.bf16.mxu0 0
    %1504 = vmatpush2.bf16.xpose.msra.mxu0 0
    %1505 = vmatprep.mubr.bf16.mxu0 0
    %1506 = vmatmul.mubr.bf16.gmra.mxu0 %v1468
    %v1507 = vpop.f32.mrf.mxu0
    %v1508 = vadd.f32 0.0, %v1507
    %v1509 = vpop.f32.mrf.mxu0
    %v1510 = vpop.f32.mrf.mxu0
    %v1511 = vpop.f32.mrf.mxu0
    %1512 = vdwg.mxu0
    %v1513 = vsel %vm183, %v1508, -inf
    %1514 = vmax.xlane.f32.xlu0 %v1513
    %v1515 = vpop.xlane.xlu0 %1514
    %v1516 = vsub.f32 %v1508, %v1515
    %v1517 = vmul.f32 %v1516, 1.442695
    %v1518 = vpow.pop %v1517
    %v1519 = vsel %vm183, %v1518, 0.0
    %1520 = vadd.xlane.f32.xlu0 %v1519
    %v1521 = vpop.xlane.xlu0 %1520
    %v1522 = vrcp.pop %v1521
    %v1523 = vmul.f32 %v1521, %v1522
    %v1524 = vsub.f32 2.0, %v1523
    %v1525 = vmul.f32 %v1522, %v1524
    %v1526 = vpack.c.bf16 %v1518, %v1518
    %1527 = vrot.lane.b32.xlu0 %v1461, 52
    %v1528 = vpop.permute.xlu0 %1527
    %v1530 = vsel %vm183, %v1526, 0
    %v1533 = vsel %vm203, %v1528, 0
    %1535 = vmatprep.subr.bf16.mxu0 0
    %1536 = vmatpush1.bf16.msra.mxu0 0
    %1537 = vmatprep.subr.bf16.mxu0 0
    %1538 = vmatpush1.bf16.msra.mxu0 0
    %1539 = vmatprep.subr.bf16.mxu0 0
    %1540 = vmatpush1.bf16.msra.mxu0 0
    %1541 = vmatprep.subr.bf16.mxu0 0
    %1542 = vmatpush1.bf16.msra.mxu0 0
    %1543 = vmatprep.subr.bf16.mxu0 0
    %1544 = vmatpush1.bf16.msra.mxu0 0
    %1545 = vmatprep.subr.bf16.mxu0 0
    %1546 = vmatpush1.bf16.msra.mxu0 0
    %1547 = vmatprep.subr.bf16.mxu0 0
    %1548 = vmatpush1.bf16.msra.mxu0 0
    %1549 = vmatprep.subr.bf16.mxu0 0
    %1550 = vmatpush1.bf16.msra.mxu0 %v1533
    %1551 = vmatprep.subr.bf16.mxu0 0
    %1552 = vmatpush2.bf16.msra.mxu0 0
    %1553 = vmatprep.subr.bf16.mxu0 0
    %1554 = vmatpush2.bf16.msra.mxu0 0
    %1555 = vmatprep.subr.bf16.mxu0 0
    %1556 = vmatpush2.bf16.msra.mxu0 0
    %1557 = vmatprep.subr.bf16.mxu0 0
    %1558 = vmatpush2.bf16.msra.mxu0 0
    %1559 = vmatprep.subr.bf16.mxu0 0
    %1560 = vmatpush2.bf16.msra.mxu0 0
    %1561 = vmatprep.subr.bf16.mxu0 0
    %1562 = vmatpush2.bf16.msra.mxu0 0
    %1563 = vmatprep.subr.bf16.mxu0 0
    %1564 = vmatpush2.bf16.msra.mxu0 0
    %1565 = vmatprep.subr.bf16.mxu0 0
    %1566 = vmatpush2.bf16.msra.mxu0 0
    %1567 = vmatprep.mubr.bf16.mxu0 0
    %1568 = vmatmul.mubr.bf16.gmra.mxu0 %v1530
    %v1569 = vpop.f32.mrf.mxu0
    %v1570 = vadd.f32 0.0, %v1569
    %v1571 = vpop.f32.mrf.mxu0
    %v1572 = vpop.f32.mrf.mxu0
    %v1573 = vpop.f32.mrf.mxu0
    %1574 = vdwg.mxu0
    %v1575 = vmul.f32 %v1570, %v1525
    %1577 = vrot.lane.b32.xlu0 %v1575, 12
    %v1578 = vpop.permute.xlu0 %1577
    %1580 = vst.msk [vmem:[#allocation3 + $0x8] sm:$0xff] %vm613, %v1578
    %v1581 = vld [vmem:[#allocation2 + $0x8] sm:$0xff]
    %v1582 = vpack.c.bf16 %v1581, %v1581
    %1584 = vrot.lane.b32.xlu0 %v1582, 112
    %v1585 = vpop.permute.xlu0 %1584
    %1586 = vrot.lane.b32.xlu0 %v1582, 80
    %v1587 = vpop.permute.xlu0 %1586
    %v1589 = vsel %vm136, %v1585, 0
    %v1592 = vsel %vm136, %v1587, 0
    %1594 = vmatprep.subr.bf16.mxu0 0
    %1595 = vmatpush1.bf16.xpose.msra.mxu0 0
    %1596 = vmatprep.subr.bf16.mxu0 0
    %1597 = vmatpush1.bf16.xpose.msra.mxu0 0
    %1598 = vmatprep.subr.bf16.mxu0 0
    %1599 = vmatpush1.bf16.xpose.msra.mxu0 0
    %1600 = vmatprep.subr.bf16.mxu0 0
    %1601 = vmatpush1.bf16.xpose.msra.mxu0 0
    %1602 = vmatprep.subr.bf16.mxu0 0
    %1603 = vmatpush1.bf16.xpose.msra.mxu0 0
    %1604 = vmatprep.subr.bf16.mxu0 0
    %1605 = vmatpush1.bf16.xpose.msra.mxu0 0
    %1606 = vmatprep.subr.bf16.mxu0 0
    %1607 = vmatpush1.bf16.xpose.msra.mxu0 0
    %1608 = vmatprep.subr.bf16.mxu0 0
    %1609 = vmatpush1.bf16.xpose.msra.mxu0 %v1592
    %1610 = vmatprep.subr.bf16.mxu0 0
    %1611 = vmatpush2.bf16.xpose.msra.mxu0 0
    %1612 = vmatprep.subr.bf16.mxu0 0
    %1613 = vmatpush2.bf16.xpose.msra.mxu0 0
    %1614 = vmatprep.subr.bf16.mxu0 0
    %1615 = vmatpush2.bf16.xpose.msra.mxu0 0
    %1616 = vmatprep.subr.bf16.mxu0 0
    %1617 = vmatpush2.bf16.xpose.msra.mxu0 0
    %1618 = vmatprep.subr.bf16.mxu0 0
    %1619 = vmatpush2.bf16.xpose.msra.mxu0 0
    %1620 = vmatprep.subr.bf16.mxu0 0
    %1621 = vmatpush2.bf16.xpose.msra.mxu0 0
    %1622 = vmatprep.subr.bf16.mxu0 0
    %1623 = vmatpush2.bf16.xpose.msra.mxu0 0
    %1624 = vmatprep.subr.bf16.mxu0 0
    %1625 = vmatpush2.bf16.xpose.msra.mxu0 0
    %1626 = vmatprep.mubr.bf16.mxu0 0
    %1627 = vmatmul.mubr.bf16.gmra.mxu0 %v1589
    %v1628 = vpop.f32.mrf.mxu0
    %v1629 = vadd.f32 0.0, %v1628
    %v1630 = vpop.f32.mrf.mxu0
    %v1631 = vpop.f32.mrf.mxu0
    %v1632 = vpop.f32.mrf.mxu0
    %1633 = vdwg.mxu0
    %v1634 = vsel %vm183, %v1629, -inf
    %1635 = vmax.xlane.f32.xlu0 %v1634
    %v1636 = vpop.xlane.xlu0 %1635
    %v1637 = vsub.f32 %v1629, %v1636
    %v1638 = vmul.f32 %v1637, 1.442695
    %v1639 = vpow.pop %v1638
    %v1640 = vsel %vm183, %v1639, 0.0
    %1641 = vadd.xlane.f32.xlu0 %v1640
    %v1642 = vpop.xlane.xlu0 %1641
    %v1643 = vrcp.pop %v1642
    %v1644 = vmul.f32 %v1642, %v1643
    %v1645 = vsub.f32 2.0, %v1644
    %v1646 = vmul.f32 %v1643, %v1645
    %v1647 = vpack.c.bf16 %v1639, %v1639
    %1648 = vrot.lane.b32.xlu0 %v1582, 48
    %v1649 = vpop.permute.xlu0 %1648
    %v1651 = vsel %vm183, %v1647, 0
    %v1654 = vsel %vm203, %v1649, 0
    %1656 = vmatprep.subr.bf16.mxu0 0
    %1657 = vmatpush1.bf16.msra.mxu0 0
    %1658 = vmatprep.subr.bf16.mxu0 0
    %1659 = vmatpush1.bf16.msra.mxu0 0
    %1660 = vmatprep.subr.bf16.mxu0 0
    %1661 = vmatpush1.bf16.msra.mxu0 0
    %1662 = vmatprep.subr.bf16.mxu0 0
    %1663 = vmatpush1.bf16.msra.mxu0 0
    %1664 = vmatprep.subr.bf16.mxu0 0
    %1665 = vmatpush1.bf16.msra.mxu0 0
    %1666 = vmatprep.subr.bf16.mxu0 0
    %1667 = vmatpush1.bf16.msra.mxu0 0
    %1668 = vmatprep.subr.bf16.mxu0 0
    %1669 = vmatpush1.bf16.msra.mxu0 0
    %1670 = vmatprep.subr.bf16.mxu0 0
    %1671 = vmatpush1.bf16.msra.mxu0 %v1654
    %1672 = vmatprep.subr.bf16.mxu0 0
    %1673 = vmatpush2.bf16.msra.mxu0 0
    %1674 = vmatprep.subr.bf16.mxu0 0
    %1675 = vmatpush2.bf16.msra.mxu0 0
    %1676 = vmatprep.subr.bf16.mxu0 0
    %1677 = vmatpush2.bf16.msra.mxu0 0
    %1678 = vmatprep.subr.bf16.mxu0 0
    %1679 = vmatpush2.bf16.msra.mxu0 0
    %1680 = vmatprep.subr.bf16.mxu0 0
    %1681 = vmatpush2.bf16.msra.mxu0 0
    %1682 = vmatprep.subr.bf16.mxu0 0
    %1683 = vmatpush2.bf16.msra.mxu0 0
    %1684 = vmatprep.subr.bf16.mxu0 0
    %1685 = vmatpush2.bf16.msra.mxu0 0
    %1686 = vmatprep.subr.bf16.mxu0 0
    %1687 = vmatpush2.bf16.msra.mxu0 0
    %1688 = vmatprep.mubr.bf16.mxu0 0
    %1689 = vmatmul.mubr.bf16.gmra.mxu0 %v1651
    %v1690 = vpop.f32.mrf.mxu0
    %v1691 = vadd.f32 0.0, %v1690
    %v1692 = vpop.f32.mrf.mxu0
    %v1693 = vpop.f32.mrf.mxu0
    %v1694 = vpop.f32.mrf.mxu0
    %1695 = vdwg.mxu0
    %v1696 = vmul.f32 %v1691, %v1646
    %1698 = vrot.lane.b32.xlu0 %v1696, 16
    %v1699 = vpop.permute.xlu0 %1698
    %1701 = vst.msk [vmem:[#allocation3 + $0x8] sm:$0xff] %vm735, %v1699
    %v1702 = vld [vmem:[#allocation2 + $0x8] sm:$0xff]
    %v1703 = vpack.c.bf16 %v1702, %v1702
    %1705 = vrot.lane.b32.xlu0 %v1703, 108
    %v1706 = vpop.permute.xlu0 %1705
    %1707 = vrot.lane.b32.xlu0 %v1703, 76
    %v1708 = vpop.permute.xlu0 %1707
    %v1710 = vsel %vm136, %v1706, 0
    %v1713 = vsel %vm136, %v1708, 0
    %1715 = vmatprep.subr.bf16.mxu0 0
    %1716 = vmatpush1.bf16.xpose.msra.mxu0 0
    %1717 = vmatprep.subr.bf16.mxu0 0
    %1718 = vmatpush1.bf16.xpose.msra.mxu0 0
    %1719 = vmatprep.subr.bf16.mxu0 0
    %1720 = vmatpush1.bf16.xpose.msra.mxu0 0
    %1721 = vmatprep.subr.bf16.mxu0 0
    %1722 = vmatpush1.bf16.xpose.msra.mxu0 0
    %1723 = vmatprep.subr.bf16.mxu0 0
    %1724 = vmatpush1.bf16.xpose.msra.mxu0 0
    %1725 = vmatprep.subr.bf16.mxu0 0
    %1726 = vmatpush1.bf16.xpose.msra.mxu0 0
    %1727 = vmatprep.subr.bf16.mxu0 0
    %1728 = vmatpush1.bf16.xpose.msra.mxu0 0
    %1729 = vmatprep.subr.bf16.mxu0 0
    %1730 = vmatpush1.bf16.xpose.msra.mxu0 %v1713
    %1731 = vmatprep.subr.bf16.mxu0 0
    %1732 = vmatpush2.bf16.xpose.msra.mxu0 0
    %1733 = vmatprep.subr.bf16.mxu0 0
    %1734 = vmatpush2.bf16.xpose.msra.mxu0 0
    %1735 = vmatprep.subr.bf16.mxu0 0
    %1736 = vmatpush2.bf16.xpose.msra.mxu0 0
    %1737 = vmatprep.subr.bf16.mxu0 0
    %1738 = vmatpush2.bf16.xpose.msra.mxu0 0
    %1739 = vmatprep.subr.bf16.mxu0 0
    %1740 = vmatpush2.bf16.xpose.msra.mxu0 0
    %1741 = vmatprep.subr.bf16.mxu0 0
    %1742 = vmatpush2.bf16.xpose.msra.mxu0 0
    %1743 = vmatprep.subr.bf16.mxu0 0
    %1744 = vmatpush2.bf16.xpose.msra.mxu0 0
    %1745 = vmatprep.subr.bf16.mxu0 0
    %1746 = vmatpush2.bf16.xpose.msra.mxu0 0
    %1747 = vmatprep.mubr.bf16.mxu0 0
    %1748 = vmatmul.mubr.bf16.gmra.mxu0 %v1710
    %v1749 = vpop.f32.mrf.mxu0
    %v1750 = vadd.f32 0.0, %v1749
    %v1751 = vpop.f32.mrf.mxu0
    %v1752 = vpop.f32.mrf.mxu0
    %v1753 = vpop.f32.mrf.mxu0
    %1754 = vdwg.mxu0
    %v1755 = vsel %vm183, %v1750, -inf
    %1756 = vmax.xlane.f32.xlu0 %v1755
    %v1757 = vpop.xlane.xlu0 %1756
    %v1758 = vsub.f32 %v1750, %v1757
    %v1759 = vmul.f32 %v1758, 1.442695
    %v1760 = vpow.pop %v1759
    %v1761 = vsel %vm183, %v1760, 0.0
    %1762 = vadd.xlane.f32.xlu0 %v1761
    %v1763 = vpop.xlane.xlu0 %1762
    %v1764 = vrcp.pop %v1763
    %v1765 = vmul.f32 %v1763, %v1764
    %v1766 = vsub.f32 2.0, %v1765
    %v1767 = vmul.f32 %v1764, %v1766
    %v1768 = vpack.c.bf16 %v1760, %v1760
    %1769 = vrot.lane.b32.xlu0 %v1703, 44
    %v1770 = vpop.permute.xlu0 %1769
    %v1772 = vsel %vm183, %v1768, 0
    %v1775 = vsel %vm203, %v1770, 0
    %1777 = vmatprep.subr.bf16.mxu0 0
    %1778 = vmatpush1.bf16.msra.mxu0 0
    %1779 = vmatprep.subr.bf16.mxu0 0
    %1780 = vmatpush1.bf16.msra.mxu0 0
    %1781 = vmatprep.subr.bf16.mxu0 0
    %1782 = vmatpush1.bf16.msra.mxu0 0
    %1783 = vmatprep.subr.bf16.mxu0 0
    %1784 = vmatpush1.bf16.msra.mxu0 0
    %1785 = vmatprep.subr.bf16.mxu0 0
    %1786 = vmatpush1.bf16.msra.mxu0 0
    %1787 = vmatprep.subr.bf16.mxu0 0
    %1788 = vmatpush1.bf16.msra.mxu0 0
    %1789 = vmatprep.subr.bf16.mxu0 0
    %1790 = vmatpush1.bf16.msra.mxu0 0
    %1791 = vmatprep.subr.bf16.mxu0 0
    %1792 = vmatpush1.bf16.msra.mxu0 %v1775
    %1793 = vmatprep.subr.bf16.mxu0 0
    %1794 = vmatpush2.bf16.msra.mxu0 0
    %1795 = vmatprep.subr.bf16.mxu0 0
    %1796 = vmatpush2.bf16.msra.mxu0 0
    %1797 = vmatprep.subr.bf16.mxu0 0
    %1798 = vmatpush2.bf16.msra.mxu0 0
    %1799 = vmatprep.subr.bf16.mxu0 0
    %1800 = vmatpush2.bf16.msra.mxu0 0
    %1801 = vmatprep.subr.bf16.mxu0 0
    %1802 = vmatpush2.bf16.msra.mxu0 0
    %1803 = vmatprep.subr.bf16.mxu0 0
    %1804 = vmatpush2.bf16.msra.mxu0 0
    %1805 = vmatprep.subr.bf16.mxu0 0
    %1806 = vmatpush2.bf16.msra.mxu0 0
    %1807 = vmatprep.subr.bf16.mxu0 0
    %1808 = vmatpush2.bf16.msra.mxu0 0
    %1809 = vmatprep.mubr.bf16.mxu0 0
    %1810 = vmatmul.mubr.bf16.gmra.mxu0 %v1772
    %v1811 = vpop.f32.mrf.mxu0
    %v1812 = vadd.f32 0.0, %v1811
    %v1813 = vpop.f32.mrf.mxu0
    %v1814 = vpop.f32.mrf.mxu0
    %v1815 = vpop.f32.mrf.mxu0
    %1816 = vdwg.mxu0
    %v1817 = vmul.f32 %v1812, %v1767
    %1819 = vrot.lane.b32.xlu0 %v1817, 20
    %v1820 = vpop.permute.xlu0 %1819
    %1822 = vst.msk [vmem:[#allocation3 + $0x8] sm:$0xff] %vm857, %v1820
    %v1823 = vld [vmem:[#allocation2 + $0x8] sm:$0xff]
    %v1824 = vpack.c.bf16 %v1823, %v1823
    %1826 = vrot.lane.b32.xlu0 %v1824, 104
    %v1827 = vpop.permute.xlu0 %1826
    %1828 = vrot.lane.b32.xlu0 %v1824, 72
    %v1829 = vpop.permute.xlu0 %1828
    %v1831 = vsel %vm136, %v1827, 0
    %v1834 = vsel %vm136, %v1829, 0
    %1836 = vmatprep.subr.bf16.mxu0 0
    %1837 = vmatpush1.bf16.xpose.msra.mxu0 0
    %1838 = vmatprep.subr.bf16.mxu0 0
    %1839 = vmatpush1.bf16.xpose.msra.mxu0 0
    %1840 = vmatprep.subr.bf16.mxu0 0
    %1841 = vmatpush1.bf16.xpose.msra.mxu0 0
    %1842 = vmatprep.subr.bf16.mxu0 0
    %1843 = vmatpush1.bf16.xpose.msra.mxu0 0
    %1844 = vmatprep.subr.bf16.mxu0 0
    %1845 = vmatpush1.bf16.xpose.msra.mxu0 0
    %1846 = vmatprep.subr.bf16.mxu0 0
    %1847 = vmatpush1.bf16.xpose.msra.mxu0 0
    %1848 = vmatprep.subr.bf16.mxu0 0
    %1849 = vmatpush1.bf16.xpose.msra.mxu0 0
    %1850 = vmatprep.subr.bf16.mxu0 0
    %1851 = vmatpush1.bf16.xpose.msra.mxu0 %v1834
    %1852 = vmatprep.subr.bf16.mxu0 0
    %1853 = vmatpush2.bf16.xpose.msra.mxu0 0
    %1854 = vmatprep.subr.bf16.mxu0 0
    %1855 = vmatpush2.bf16.xpose.msra.mxu0 0
    %1856 = vmatprep.subr.bf16.mxu0 0
    %1857 = vmatpush2.bf16.xpose.msra.mxu0 0
    %1858 = vmatprep.subr.bf16.mxu0 0
    %1859 = vmatpush2.bf16.xpose.msra.mxu0 0
    %1860 = vmatprep.subr.bf16.mxu0 0
    %1861 = vmatpush2.bf16.xpose.msra.mxu0 0
    %1862 = vmatprep.subr.bf16.mxu0 0
    %1863 = vmatpush2.bf16.xpose.msra.mxu0 0
    %1864 = vmatprep.subr.bf16.mxu0 0
    %1865 = vmatpush2.bf16.xpose.msra.mxu0 0
    %1866 = vmatprep.subr.bf16.mxu0 0
    %1867 = vmatpush2.bf16.xpose.msra.mxu0 0
    %1868 = vmatprep.mubr.bf16.mxu0 0
    %1869 = vmatmul.mubr.bf16.gmra.mxu0 %v1831
    %v1870 = vpop.f32.mrf.mxu0
    %v1871 = vadd.f32 0.0, %v1870
    %v1872 = vpop.f32.mrf.mxu0
    %v1873 = vpop.f32.mrf.mxu0
    %v1874 = vpop.f32.mrf.mxu0
    %1875 = vdwg.mxu0
    %v1876 = vsel %vm183, %v1871, -inf
    %1877 = vmax.xlane.f32.xlu0 %v1876
    %v1878 = vpop.xlane.xlu0 %1877
    %v1879 = vsub.f32 %v1871, %v1878
    %v1880 = vmul.f32 %v1879, 1.442695
    %v1881 = vpow.pop %v1880
    %v1882 = vsel %vm183, %v1881, 0.0
    %1883 = vadd.xlane.f32.xlu0 %v1882
    %v1884 = vpop.xlane.xlu0 %1883
    %v1885 = vrcp.pop %v1884
    %v1886 = vmul.f32 %v1884, %v1885
    %v1887 = vsub.f32 2.0, %v1886
    %v1888 = vmul.f32 %v1885, %v1887
    %v1889 = vpack.c.bf16 %v1881, %v1881
    %1890 = vrot.lane.b32.xlu0 %v1824, 40
    %v1891 = vpop.permute.xlu0 %1890
    %v1893 = vsel %vm183, %v1889, 0
    %v1896 = vsel %vm203, %v1891, 0
    %1898 = vmatprep.subr.bf16.mxu0 0
    %1899 = vmatpush1.bf16.msra.mxu0 0
    %1900 = vmatprep.subr.bf16.mxu0 0
    %1901 = vmatpush1.bf16.msra.mxu0 0
    %1902 = vmatprep.subr.bf16.mxu0 0
    %1903 = vmatpush1.bf16.msra.mxu0 0
    %1904 = vmatprep.subr.bf16.mxu0 0
    %1905 = vmatpush1.bf16.msra.mxu0 0
    %1906 = vmatprep.subr.bf16.mxu0 0
    %1907 = vmatpush1.bf16.msra.mxu0 0
    %1908 = vmatprep.subr.bf16.mxu0 0
    %1909 = vmatpush1.bf16.msra.mxu0 0
    %1910 = vmatprep.subr.bf16.mxu0 0
    %1911 = vmatpush1.bf16.msra.mxu0 0
    %1912 = vmatprep.subr.bf16.mxu0 0
    %1913 = vmatpush1.bf16.msra.mxu0 %v1896
    %1914 = vmatprep.subr.bf16.mxu0 0
    %1915 = vmatpush2.bf16.msra.mxu0 0
    %1916 = vmatprep.subr.bf16.mxu0 0
    %1917 = vmatpush2.bf16.msra.mxu0 0
    %1918 = vmatprep.subr.bf16.mxu0 0
    %1919 = vmatpush2.bf16.msra.mxu0 0
    %1920 = vmatprep.subr.bf16.mxu0 0
    %1921 = vmatpush2.bf16.msra.mxu0 0
    %1922 = vmatprep.subr.bf16.mxu0 0
    %1923 = vmatpush2.bf16.msra.mxu0 0
    %1924 = vmatprep.subr.bf16.mxu0 0
    %1925 = vmatpush2.bf16.msra.mxu0 0
    %1926 = vmatprep.subr.bf16.mxu0 0
    %1927 = vmatpush2.bf16.msra.mxu0 0
    %1928 = vmatprep.subr.bf16.mxu0 0
    %1929 = vmatpush2.bf16.msra.mxu0 0
    %1930 = vmatprep.mubr.bf16.mxu0 0
    %1931 = vmatmul.mubr.bf16.gmra.mxu0 %v1893
    %v1932 = vpop.f32.mrf.mxu0
    %v1933 = vadd.f32 0.0, %v1932
    %v1934 = vpop.f32.mrf.mxu0
    %v1935 = vpop.f32.mrf.mxu0
    %v1936 = vpop.f32.mrf.mxu0
    %1937 = vdwg.mxu0
    %v1938 = vmul.f32 %v1933, %v1888
    %1940 = vrot.lane.b32.xlu0 %v1938, 24
    %v1941 = vpop.permute.xlu0 %1940
    %1943 = vst.msk [vmem:[#allocation3 + $0x8] sm:$0xff] %vm979, %v1941
    %v1944 = vld [vmem:[#allocation2 + $0x8] sm:$0xff]
    %v1945 = vpack.c.bf16 %v1944, %v1944
    %1947 = vrot.lane.b32.xlu0 %v1945, 100
    %v1948 = vpop.permute.xlu0 %1947
    %1949 = vrot.lane.b32.xlu0 %v1945, 68
    %v1950 = vpop.permute.xlu0 %1949
    %v1952 = vsel %vm136, %v1948, 0
    %v1955 = vsel %vm136, %v1950, 0
    %1957 = vmatprep.subr.bf16.mxu0 0
    %1958 = vmatpush1.bf16.xpose.msra.mxu0 0
    %1959 = vmatprep.subr.bf16.mxu0 0
    %1960 = vmatpush1.bf16.xpose.msra.mxu0 0
    %1961 = vmatprep.subr.bf16.mxu0 0
    %1962 = vmatpush1.bf16.xpose.msra.mxu0 0
    %1963 = vmatprep.subr.bf16.mxu0 0
    %1964 = vmatpush1.bf16.xpose.msra.mxu0 0
    %1965 = vmatprep.subr.bf16.mxu0 0
    %1966 = vmatpush1.bf16.xpose.msra.mxu0 0
    %1967 = vmatprep.subr.bf16.mxu0 0
    %1968 = vmatpush1.bf16.xpose.msra.mxu0 0
    %1969 = vmatprep.subr.bf16.mxu0 0
    %1970 = vmatpush1.bf16.xpose.msra.mxu0 0
    %1971 = vmatprep.subr.bf16.mxu0 0
    %1972 = vmatpush1.bf16.xpose.msra.mxu0 %v1955
    %1973 = vmatprep.subr.bf16.mxu0 0
    %1974 = vmatpush2.bf16.xpose.msra.mxu0 0
    %1975 = vmatprep.subr.bf16.mxu0 0
    %1976 = vmatpush2.bf16.xpose.msra.mxu0 0
    %1977 = vmatprep.subr.bf16.mxu0 0
    %1978 = vmatpush2.bf16.xpose.msra.mxu0 0
    %1979 = vmatprep.subr.bf16.mxu0 0
    %1980 = vmatpush2.bf16.xpose.msra.mxu0 0
    %1981 = vmatprep.subr.bf16.mxu0 0
    %1982 = vmatpush2.bf16.xpose.msra.mxu0 0
    %1983 = vmatprep.subr.bf16.mxu0 0
    %1984 = vmatpush2.bf16.xpose.msra.mxu0 0
    %1985 = vmatprep.subr.bf16.mxu0 0
    %1986 = vmatpush2.bf16.xpose.msra.mxu0 0
    %1987 = vmatprep.subr.bf16.mxu0 0
    %1988 = vmatpush2.bf16.xpose.msra.mxu0 0
    %1989 = vmatprep.mubr.bf16.mxu0 0
    %1990 = vmatmul.mubr.bf16.gmra.mxu0 %v1952
    %v1991 = vpop.f32.mrf.mxu0
    %v1992 = vadd.f32 0.0, %v1991
    %v1993 = vpop.f32.mrf.mxu0
    %v1994 = vpop.f32.mrf.mxu0
    %v1995 = vpop.f32.mrf.mxu0
    %1996 = vdwg.mxu0
    %v1997 = vsel %vm183, %v1992, -inf
    %1998 = vmax.xlane.f32.xlu0 %v1997
    %v1999 = vpop.xlane.xlu0 %1998
    %v2000 = vsub.f32 %v1992, %v1999
    %v2001 = vmul.f32 %v2000, 1.442695
    %v2002 = vpow.pop %v2001
    %v2003 = vsel %vm183, %v2002, 0.0
    %2004 = vadd.xlane.f32.xlu0 %v2003
    %v2005 = vpop.xlane.xlu0 %2004
    %v2006 = vrcp.pop %v2005
    %v2007 = vmul.f32 %v2005, %v2006
    %v2008 = vsub.f32 2.0, %v2007
    %v2009 = vmul.f32 %v2006, %v2008
    %v2010 = vpack.c.bf16 %v2002, %v2002
    %2011 = vrot.lane.b32.xlu0 %v1945, 36
    %v2012 = vpop.permute.xlu0 %2011
    %v2014 = vsel %vm183, %v2010, 0
    %v2017 = vsel %vm203, %v2012, 0
    %2019 = vmatprep.subr.bf16.mxu0 0
    %2020 = vmatpush1.bf16.msra.mxu0 0
    %2021 = vmatprep.subr.bf16.mxu0 0
    %2022 = vmatpush1.bf16.msra.mxu0 0
    %2023 = vmatprep.subr.bf16.mxu0 0
    %2024 = vmatpush1.bf16.msra.mxu0 0
    %2025 = vmatprep.subr.bf16.mxu0 0
    %2026 = vmatpush1.bf16.msra.mxu0 0
    %2027 = vmatprep.subr.bf16.mxu0 0
    %2028 = vmatpush1.bf16.msra.mxu0 0
    %2029 = vmatprep.subr.bf16.mxu0 0
    %2030 = vmatpush1.bf16.msra.mxu0 0
    %2031 = vmatprep.subr.bf16.mxu0 0
    %2032 = vmatpush1.bf16.msra.mxu0 0
    %2033 = vmatprep.subr.bf16.mxu0 0
    %2034 = vmatpush1.bf16.msra.mxu0 %v2017
    %2035 = vmatprep.subr.bf16.mxu0 0
    %2036 = vmatpush2.bf16.msra.mxu0 0
    %2037 = vmatprep.subr.bf16.mxu0 0
    %2038 = vmatpush2.bf16.msra.mxu0 0
    %2039 = vmatprep.subr.bf16.mxu0 0
    %2040 = vmatpush2.bf16.msra.mxu0 0
    %2041 = vmatprep.subr.bf16.mxu0 0
    %2042 = vmatpush2.bf16.msra.mxu0 0
    %2043 = vmatprep.subr.bf16.mxu0 0
    %2044 = vmatpush2.bf16.msra.mxu0 0
    %2045 = vmatprep.subr.bf16.mxu0 0
    %2046 = vmatpush2.bf16.msra.mxu0 0
    %2047 = vmatprep.subr.bf16.mxu0 0
    %2048 = vmatpush2.bf16.msra.mxu0 0
    %2049 = vmatprep.subr.bf16.mxu0 0
    %2050 = vmatpush2.bf16.msra.mxu0 0
    %2051 = vmatprep.mubr.bf16.mxu0 0
    %2052 = vmatmul.mubr.bf16.gmra.mxu0 %v2014
    %v2053 = vpop.f32.mrf.mxu0
    %v2054 = vadd.f32 0.0, %v2053
    %v2055 = vpop.f32.mrf.mxu0
    %v2056 = vpop.f32.mrf.mxu0
    %v2057 = vpop.f32.mrf.mxu0
    %2058 = vdwg.mxu0
    %v2059 = vmul.f32 %v2054, %v2009
    %2061 = vrot.lane.b32.xlu0 %v2059, 28
    %v2062 = vpop.permute.xlu0 %2061
    %2064 = vst.msk [vmem:[#allocation3 + $0x8] sm:$0xff] %vm1101, %v2062
    %v2065 = vld [vmem:[#allocation3] sm:$0xff]
    %v2066 = vld [vmem:[#allocation3 + $0x8] sm:$0xff]
    %v2067 = vpack.c.bf16 %v2066, %v2065
    %v2068 = vld [vmem:[#allocation9] sm:$0xf]
    %v2069 = vld [vmem:[#allocation9 + $0x4] sm:$0xf]
    %v2070 = vld [vmem:[#allocation9 + $0x8] sm:$0xf]
    %v2071 = vld [vmem:[#allocation9 + $0xc] sm:$0xf]
    %v2072 = vld [vmem:[%s3] sm:$0x1]
    %v2074 = vlaneseq
    %v2075 = vshrl.u32 %v2074, 7
    %v2076 = vsub.s32 0, %v2075
    %v2077 = vrot.slane %v2072, %v2076
    %v2083 = vunpack.c.l.b16 %v2068
    %v2084 = vunpack.c.l.b16 %v2069
    %v2085 = vunpack.c.l.b16 %v2070
    %v2086 = vunpack.c.l.b16 %v2071
    %v2087 = vpack.c.b16 %v2084, %v2083
    %v2088 = vpack.c.b16 %v2086, %v2085
    %v2092 = vsel %vm83, %v2067, 0
    %2094 = vmatprep.subr.bf16.mxu0 0
    %2095 = vmatpush1.bf16.msra.mxu0 0
    %2096 = vmatprep.subr.bf16.mxu0 0
    %2097 = vmatpush1.bf16.msra.mxu0 0
    %2098 = vmatprep.subr.bf16.mxu0 0
    %2099 = vmatpush1.bf16.msra.mxu0 0
    %2100 = vmatprep.subr.bf16.mxu0 0
    %2101 = vmatpush1.bf16.msra.mxu0 0
    %2102 = vmatprep.subr.bf16.mxu0 0
    %2103 = vmatpush1.bf16.msra.mxu0 0
    %2104 = vmatprep.subr.bf16.mxu0 0
    %2105 = vmatpush1.bf16.msra.mxu0 0
    %2106 = vmatprep.subr.bf16.mxu0 0
    %2107 = vmatpush1.bf16.msra.mxu0 %v2088
    %2108 = vmatprep.subr.bf16.mxu0 0
    %2109 = vmatpush1.bf16.msra.mxu0 %v2087
    %2110 = vmatprep.subr.bf16.mxu0 0
    %2111 = vmatpush2.bf16.msra.mxu0 0
    %2112 = vmatprep.subr.bf16.mxu0 0
    %2113 = vmatpush2.bf16.msra.mxu0 0
    %2114 = vmatprep.subr.bf16.mxu0 0
    %2115 = vmatpush2.bf16.msra.mxu0 0
    %2116 = vmatprep.subr.bf16.mxu0 0
    %2117 = vmatpush2.bf16.msra.mxu0 0
    %2118 = vmatprep.subr.bf16.mxu0 0
    %2119 = vmatpush2.bf16.msra.mxu0 0
    %2120 = vmatprep.subr.bf16.mxu0 0
    %2121 = vmatpush2.bf16.msra.mxu0 0
    %2122 = vmatprep.subr.bf16.mxu0 0
    %2123 = vmatpush2.bf16.msra.mxu0 0
    %2124 = vmatprep.subr.bf16.mxu0 0
    %2125 = vmatpush2.bf16.msra.mxu0 0
    %2126 = vmatprep.mubr.bf16.mxu0 0
    %2127 = vmatmul.mubr.bf16.gmra.mxu0 %v2092
    %v2128 = vpop.f32.mrf.mxu0
    %v2129 = vadd.f32 %v2077, %v2128
    %v2130 = vpop.f32.mrf.mxu0
    %v2131 = vpop.f32.mrf.mxu0
    %v2132 = vadd.f32 %v2077, %v2131
    %v2133 = vpop.f32.mrf.mxu0
    %2134 = vdwg.mxu0
    %2135 = vst.msk [vmem:[#allocation10] sm:$0xff] %vm83, %v2129
    %2136 = vst.msk [vmem:[#allocation10 + $0x8] sm:$0xff] %vm83, %v2132
    // Predicated region
    $region30: #{tpu_custom_call.1} parent=1 // pred_check
      _
    $region31: #{tpu_custom_call.1} parent=1 // pred_check_branch
      %2138 = sbr.rel (0) target = $region33
    $region32: #{tpu_custom_call.1} parent=1 // pred_region
      %s2140 = ssub.s32 256, 256
      %2141 = vsyncadd [#allocation6], %s2140
      %s2142 = sshll.u32 [#allocation10], 4
      %s2143 = int_to_ptr.vmem [resolvable:$true] %s2142
      %2148 = dma.vmem_to_hbm [thread:$0]  %s2143, 256, %s4, [#allocation6], 128, 128, 8
    $region33: #{tpu_custom_call.1} parent=1 // pred_fallthru
      _
    // Predicated region
    $region34: #{tpu_custom_call.1} parent=1 // pred_check
      _
    $region35: #{tpu_custom_call.1} parent=1 // pred_check_branch
      %2150 = sbr.rel (0) target = $region37
    $region36: #{tpu_custom_call.1} parent=1 // pred_region
      %2151 = dma.done [#allocation6], 256
    $region37: #{tpu_custom_call.1} parent=1 // pred_fallthru
      _
    %2152 = vsyncpa [#allocation5], 1
    %2153 = vsyncpa [#allocation8], 1
    %2154 = vsyncpa [#allocation6], 1

</llo_original>
